<compile_context>
chip_gen: v6e
topology: v6e:2x2x1
jax: 0.10.0
libtpu: 0.0.40
codegen_flags: <defaults>
</compile_context>

<pallas_src>
import math

import jax
import jax.numpy as jnp
from jax.experimental import pallas as pl
from jax.experimental.pallas import tpu as pltpu

# ---------------- scaled-down ViT config ----------------
BATCH = 32
CHANNELS = 3
IMG = 32
PATCH = 16
HIDDEN = 64
HEADS = 4
HEAD_DIM = HIDDEN // HEADS
MLP = 128
LAYERS = 2
N_PATCH = (IMG // PATCH) ** 2          # 4
SEQ = N_PATCH + 1                      # CLS + patches = 5
SEQ_PAD = 8                            # padded to sublane multiple
B_TILE = 16                            # sequences per grid step
ROWS = B_TILE * SEQ_PAD                # 128 MXU rows per matmul
CPP = CHANNELS * PATCH * PATCH         # 768
EPS = 1e-12                            # HF ViT layer_norm_eps
NEG = -1e30

assert BATCH % B_TILE == 0
assert B_TILE & (B_TILE - 1) == 0      # power of two (bitwise sequence-id trick)


# ---------------- in-kernel helpers ----------------
def _layernorm(x, g, b):
    mu = jnp.mean(x, axis=-1, keepdims=True)
    var = jnp.mean(jnp.square(x - mu), axis=-1, keepdims=True)
    return (x - mu) * jax.lax.rsqrt(var + EPS) * g + b


def _gelu(x):
    # tanh-GELU: 1 EUP tanh + a handful of VPU ops (vs ~12-op erf polynomial).
    c = math.sqrt(2.0 / math.pi)
    return 0.5 * x * (1.0 + jnp.tanh(c * (x + 0.044715 * x * x * x)))


# ---------------- patch-embedding kernel (outside the layer sweep) ----------------
def _embed_kernel(patch_ref, pw_ref, add_ref, o_ref):
    # (ROWS, CPP) bf16 @ (CPP, HIDDEN) bf16 -> f32, plus CLS/pos/bias term.
    o_ref[...] = jnp.dot(patch_ref[...], pw_ref[...],
                         preferred_element_type=jnp.float32) + add_ref[...]


# ---------------- fused transformer-encoder kernel ----------------
def _encoder_kernel(emb_ref,
                    ln1g_ref, ln1b_ref, wqkv_ref, bqkv_ref, wo_ref, bo_ref,
                    ln2g_ref, ln2b_ref, w1_ref, b1_ref, w2_ref, b2_ref,
                    lnfg_ref, lnfb_ref, o_ref, res_ref):
    """grid = (batch_tile, layer); residual stream resident in VMEM scratch.

    Packed-row layout (interleaved): row r holds (pos = r // B_TILE,
    seq = r % B_TILE).  CLS rows of all B_TILE sequences are rows 0..B_TILE-1.
    """
    l = pl.program_id(1)

    # ---- load embedded activations into the residual scratch at layer 0 ----
    @pl.when(l == 0)
    def _():
        res_ref[...] = emb_ref[...]

    x = res_ref[...]                                          # (ROWS, H) f32

    # block-diagonal (same-sequence) + key-padding additive attention bias
    row = jax.lax.broadcasted_iota(jnp.int32, (ROWS, ROWS), 0)
    col = jax.lax.broadcasted_iota(jnp.int32, (ROWS, ROWS), 1)
    same_seq = (row & (B_TILE - 1)) == (col & (B_TILE - 1))
    valid_key = col < SEQ * B_TILE                            # pos(col) < SEQ
    bias = jnp.where(same_seq & valid_key, 0.0, NEG)

    # ---- attention block (pre-LN); 1/sqrt(Dh) already folded into wqkv ----
    h = _layernorm(x, ln1g_ref[0], ln1b_ref[0])
    qkv = jnp.dot(h.astype(jnp.bfloat16), wqkv_ref[0],
                  preferred_element_type=jnp.float32) + bqkv_ref[0]   # (ROWS, 3H)

    wo = wo_ref[0]                                            # (H, H) bf16
    attn = jnp.zeros((ROWS, HIDDEN), jnp.float32)
    for hd in range(HEADS):                                   # unrolled
        lo = hd * HEAD_DIM
        qh = qkv[:, lo:lo + HEAD_DIM].astype(jnp.bfloat16)
        kh = qkv[:, HIDDEN + lo:HIDDEN + lo + HEAD_DIM].astype(jnp.bfloat16)
        vh = qkv[:, 2 * HIDDEN + lo:2 * HIDDEN + lo + HEAD_DIM].astype(jnp.bfloat16)
        s = jax.lax.dot_general(qh, kh, (((1,), (1,)), ((), ())),
                                preferred_element_type=jnp.float32) + bias
        s = s - jnp.max(s, axis=-1, keepdims=True)
        p = jnp.exp(s)
        p = p / jnp.sum(p, axis=-1, keepdims=True)            # exact normalize
        ctx = jnp.dot(p.astype(jnp.bfloat16), vh,
                      preferred_element_type=jnp.float32)      # (ROWS, Dh)
        # fused head-merge + output projection (block-matmul against wo rows)
        attn = attn + jnp.dot(ctx.astype(jnp.bfloat16), wo[lo:lo + HEAD_DIM, :],
                              preferred_element_type=jnp.float32)
    x = x + attn + bo_ref[0]

    # ---- MLP block (pre-LN) ----
    h2 = _layernorm(x, ln2g_ref[0], ln2b_ref[0])
    m = jnp.dot(h2.astype(jnp.bfloat16), w1_ref[0],
                preferred_element_type=jnp.float32) + b1_ref[0]
    m = _gelu(m)
    m = jnp.dot(m.astype(jnp.bfloat16), w2_ref[0],
                preferred_element_type=jnp.float32) + b2_ref[0]
    x = x + m

    res_ref[...] = x

    # ---- final LayerNorm on the CLS rows only; one write per batch tile ----
    @pl.when(l == pl.num_programs(1) - 1)
    def _():
        o_ref[...] = _layernorm(x[:B_TILE, :], lnfg_ref[...], lnfb_ref[...])


# ---------------- parameters ----------------
def init_params(key):
    ks = iter(jax.random.split(key, 16))

    def nrm(shape, scale=0.02):
        return scale * jax.random.normal(next(ks), shape, dtype=jnp.float32)

    wqkv = nrm((LAYERS, HIDDEN, 3 * HIDDEN))
    bqkv = jnp.zeros((LAYERS, 1, 3 * HIDDEN), jnp.float32)
    # fold the attention scale into the Q projection (static weight transform)
    scale = 1.0 / math.sqrt(HEAD_DIM)
    wqkv = wqkv.at[:, :, :HIDDEN].multiply(scale)
    bqkv = bqkv.at[:, :, :HIDDEN].multiply(scale)

    return {
        # Conv2d(C, HIDDEN, kernel=PATCH, stride=PATCH) folded to a matmul:
        # weight (HIDDEN, C, P, P) reshaped to (C*P*P, HIDDEN) [c, kh, kw order]
        "patch_w": nrm((CPP, HIDDEN)).astype(jnp.bfloat16),
        "patch_b": jnp.zeros((HIDDEN,), jnp.float32),
        "cls": nrm((HIDDEN,)),
        "pos": nrm((SEQ, HIDDEN)),
        # per-layer weights stacked with a leading LAYERS axis
        "ln1_g": jnp.ones((LAYERS, 1, HIDDEN), jnp.float32),
        "ln1_b": jnp.zeros((LAYERS, 1, HIDDEN), jnp.float32),
        "wqkv": wqkv.astype(jnp.bfloat16),
        "bqkv": bqkv,
        "wo": nrm((LAYERS, HIDDEN, HIDDEN)).astype(jnp.bfloat16),
        "bo": jnp.zeros((LAYERS, 1, HIDDEN), jnp.float32),
        "ln2_g": jnp.ones((LAYERS, 1, HIDDEN), jnp.float32),
        "ln2_b": jnp.zeros((LAYERS, 1, HIDDEN), jnp.float32),
        "w1": nrm((LAYERS, HIDDEN, MLP)).astype(jnp.bfloat16),
        "b1": jnp.zeros((LAYERS, 1, MLP), jnp.float32),
        "w2": nrm((LAYERS, MLP, HIDDEN)).astype(jnp.bfloat16),
        "b2": jnp.zeros((LAYERS, 1, HIDDEN), jnp.float32),
        "lnf_g": jnp.ones((1, HIDDEN), jnp.float32),
        "lnf_b": jnp.zeros((1, HIDDEN), jnp.float32),
    }


# ---------------- forward ----------------
def vit_encoder_forward(pixel_values, params):
    B = pixel_values.shape[0]
    assert B % B_TILE == 0
    n_tiles = B // B_TILE
    hp = IMG // PATCH

    # patchify NCHW (conv stride==kernel -> non-overlapping patches + matmul)
    patches = pixel_values.reshape(B, CHANNELS, hp, PATCH, hp, PATCH)
    patches = patches.transpose(0, 2, 4, 1, 3, 5).reshape(B, N_PATCH, CPP)
    # pad positions to SEQ_PAD (row 0 = CLS slot, rows SEQ.. = padding), then
    # interleave B_TILE sequences per tile: packed row r = pos*B_TILE + b_local
    patches = jnp.pad(patches, ((0, 0), (1, SEQ_PAD - SEQ), (0, 0)))
    patches = (patches.reshape(n_tiles, B_TILE, SEQ_PAD, CPP)
               .transpose(0, 2, 1, 3)
               .reshape(n_tiles * ROWS, CPP)
               .astype(jnp.bfloat16))                       # bf16 halves the DMA

    # per-position additive term: row0 = cls + pos[0]; rows 1..N_PATCH = bias+pos
    add = jnp.zeros((SEQ_PAD, HIDDEN), jnp.float32)
    add = add.at[0].set(params["cls"] + params["pos"][0])
    add = add.at[1:SEQ].set(params["patch_b"][None, :] + params["pos"][1:SEQ])
    add = jnp.repeat(add, B_TILE, axis=0)                   # interleaved layout

    # ---- 1) patch embedding (kept out of the layer sweep -> no CPP-wide
    #         blocks resident in VMEM during the transformer layers) ----
    embedded = pl.pallas_call(
        _embed_kernel,
        out_shape=jax.ShapeDtypeStruct((n_tiles * ROWS, HIDDEN), jnp.float32),
        grid=(n_tiles,),
        in_specs=[pl.BlockSpec((ROWS, CPP), lambda t: (t, 0)),
                  pl.BlockSpec((CPP, HIDDEN), lambda t: (0, 0)),
                  pl.BlockSpec((ROWS, HIDDEN), lambda t: (0, 0))],
        out_specs=pl.BlockSpec((ROWS, HIDDEN), lambda t: (t, 0)),
        compiler_params=pltpu.CompilerParams(
            dimension_semantics=("parallel",)),
    )(patches, params["patch_w"], add)

    # ---- 2) transformer layers + final LayerNorm (CLS rows only) ----
    def batched(shape):
        return pl.BlockSpec(shape, lambda b, l: (b, 0))

    def layer3(shape):
        return pl.BlockSpec(shape, lambda b, l: (l, 0, 0))

    def const2(shape):
        return pl.BlockSpec(shape, lambda b, l: (0, 0))

    cls = pl.pallas_call(
        _encoder_kernel,
        out_shape=jax.ShapeDtypeStruct((B, HIDDEN), jnp.float32),
        grid=(n_tiles, LAYERS),
        in_specs=[
            batched((ROWS, HIDDEN)),                   # embedded residual init
            layer3((1, 1, HIDDEN)),                    # ln1_g
            layer3((1, 1, HIDDEN)),                    # ln1_b
            layer3((1, HIDDEN, 3 * HIDDEN)),           # wqkv (scale folded in)
            layer3((1, 1, 3 * HIDDEN)),                # bqkv
            layer3((1, HIDDEN, HIDDEN)),               # wo
            layer3((1, 1, HIDDEN)),                    # bo
            layer3((1, 1, HIDDEN)),                    # ln2_g
            layer3((1, 1, HIDDEN)),                    # ln2_b
            layer3((1, HIDDEN, MLP)),                  # w1
            layer3((1, 1, MLP)),                       # b1
            layer3((1, MLP, HIDDEN)),                  # w2
            layer3((1, 1, HIDDEN)),                    # b2
            const2((1, HIDDEN)),                       # lnf_g
            const2((1, HIDDEN)),                       # lnf_b
        ],
        out_specs=pl.BlockSpec((B_TILE, HIDDEN), lambda b, l: (b, 0)),
        scratch_shapes=[pltpu.VMEM((ROWS, HIDDEN), jnp.float32)],
        compiler_params=pltpu.CompilerParams(
            dimension_semantics=("parallel", "arbitrary"),
            vmem_limit_bytes=64 * 1024 * 1024),
    )(embedded, params["ln1_g"], params["ln1_b"], params["wqkv"], params["bqkv"],
      params["wo"], params["bo"], params["ln2_g"], params["ln2_b"],
      params["w1"], params["b1"], params["w2"], params["b2"],
      params["lnf_g"], params["lnf_b"])

    return cls                                         # CLS embedding (B, HIDDEN)


if __name__ == "__main__":
    key = jax.random.PRNGKey(0)
    pkey, xkey = jax.random.split(key)
    params = init_params(pkey)
    pixel_values = jax.random.normal(
        xkey, (BATCH, CHANNELS, IMG, IMG), dtype=jnp.float32)

    cls_embedding = jax.jit(vit_encoder_forward)(pixel_values, params)
    jax.block_until_ready(cls_embedding)
    assert cls_embedding.shape == (BATCH, HIDDEN)
    assert bool(jnp.all(jnp.isfinite(cls_embedding)))
    print("KERNEL_OK")
</pallas_src>

<mosaic_0001>
module attributes {stable_mosaic.version = 11 : i64} {
  func.func @_embed_kernel(%arg0: i32, %arg1: memref<128x768xbf16, #tpu.memory_space<vmem>>, %arg2: memref<768x64xbf16, #tpu.memory_space<vmem>>, %arg3: memref<128x64xf32, #tpu.memory_space<vmem>>, %arg4: memref<128x64xf32, #tpu.memory_space<vmem>>) attributes {dimension_semantics = [#tpu.dimension_semantics<parallel>], iteration_bounds = array<i64: 2>, scalar_prefetch = 0 : i64, scratch_operands = 0 : i64, tpu.core_type = #tpu.core_type<tc>, window_params = [{transform_indices = @transform_0, window_bounds = array<i64: 128, 768>}, {pipeline_mode = #tpu.pipeline_mode<synchronous>, transform_indices = @transform_1, window_bounds = array<i64: 768, 64>}, {pipeline_mode = #tpu.pipeline_mode<synchronous>, transform_indices = @transform_2, window_bounds = array<i64: 128, 64>}, {transform_indices = @transform_3, window_bounds = array<i64: 128, 64>}]} {
    %c0 = arith.constant 0 : index
    %c0_0 = arith.constant 0 : index
    %0 = vector.load %arg1[%c0, %c0_0] : memref<128x768xbf16, #tpu.memory_space<vmem>>, vector<128x768xbf16>
    %c0_1 = arith.constant 0 : index
    %c0_2 = arith.constant 0 : index
    %1 = vector.load %arg2[%c0_1, %c0_2] : memref<768x64xbf16, #tpu.memory_space<vmem>>, vector<768x64xbf16>
    %cst = arith.constant dense<0.000000e+00> : vector<128x64xf32>
    %2 = tpu.matmul %0, %1, %cst {dimension_numbers = #tpu.dot_dimension_numbers<[1], [0], [0], [1], [0, 0, 1, 1], [], []>} : vector<128x768xbf16>, vector<768x64xbf16>, vector<128x64xf32> -> vector<128x64xf32>
    %c0_3 = arith.constant 0 : index
    %c0_4 = arith.constant 0 : index
    %3 = vector.load %arg3[%c0_3, %c0_4] : memref<128x64xf32, #tpu.memory_space<vmem>>, vector<128x64xf32>
    %4 = arith.addf %2, %3 : vector<128x64xf32>
    %c0_5 = arith.constant 0 : index
    %c0_6 = arith.constant 0 : index
    %5 = vector.load %arg4[%c0_5, %c0_6] : memref<128x64xf32, #tpu.memory_space<vmem>>, vector<128x64xf32>
    tpu.vector_store %arg4[%c0_5, %c0_6], %4 {strides = array<i32>} : memref<128x64xf32, #tpu.memory_space<vmem>>, vector<128x64xf32>,
    return
  }
  func.func @transform_0(%arg0: i32) -> (i32, i32) {
    %c0_i32 = arith.constant 0 : i32
    %c0_i32_0 = arith.constant 0 : i32
    return %arg0, %c0_i32 : i32, i32
  }
  func.func @transform_1(%arg0: i32) -> (i32, i32) {
    %c0_i32 = arith.constant 0 : i32
    %c0_i32_0 = arith.constant 0 : i32
    %c0_i32_1 = arith.constant 0 : i32
    return %c0_i32, %c0_i32_0 : i32, i32
  }
  func.func @transform_2(%arg0: i32) -> (i32, i32) {
    %c0_i32 = arith.constant 0 : i32
    %c0_i32_0 = arith.constant 0 : i32
    %c0_i32_1 = arith.constant 0 : i32
    return %c0_i32, %c0_i32_0 : i32, i32
  }
  func.func @transform_3(%arg0: i32) -> (i32, i32) {
    %c0_i32 = arith.constant 0 : i32
    %c0_i32_0 = arith.constant 0 : i32
    return %arg0, %c0_i32 : i32, i32
  }
}

module attributes {stable_mosaic.version = 11 : i64} {
  func.func @_encoder_kernel(%arg0: i32, %arg1: i32, %arg2: memref<128x64xf32, #tpu.memory_space<vmem>>, %arg3: memref<1x1x64xf32, #tpu.memory_space<vmem>>, %arg4: memref<1x1x64xf32, #tpu.memory_space<vmem>>, %arg5: memref<1x64x192xbf16, #tpu.memory_space<vmem>>, %arg6: memref<1x1x192xf32, #tpu.memory_space<vmem>>, %arg7: memref<1x64x64xbf16, #tpu.memory_space<vmem>>, %arg8: memref<1x1x64xf32, #tpu.memory_space<vmem>>, %arg9: memref<1x1x64xf32, #tpu.memory_space<vmem>>, %arg10: memref<1x1x64xf32, #tpu.memory_space<vmem>>, %arg11: memref<1x64x128xbf16, #tpu.memory_space<vmem>>, %arg12: memref<1x1x128xf32, #tpu.memory_space<vmem>>, %arg13: memref<1x128x64xbf16, #tpu.memory_space<vmem>>, %arg14: memref<1x1x64xf32, #tpu.memory_space<vmem>>, %arg15: memref<1x64xf32, #tpu.memory_space<vmem>>, %arg16: memref<1x64xf32, #tpu.memory_space<vmem>>, %arg17: memref<16x64xf32, #tpu.memory_space<vmem>>, %arg18: memref<128x64xf32, #tpu.memory_space<vmem>>) attributes {dimension_semantics = [#tpu.dimension_semantics<parallel>, #tpu.dimension_semantics<arbitrary>], iteration_bounds = array<i64: 2, 2>, scalar_prefetch = 0 : i64, scratch_operands = 1 : i64, tpu.core_type = #tpu.core_type<tc>, window_params = [{transform_indices = @transform_0, window_bounds = array<i64: 128, 64>}, {transform_indices = @transform_1, window_bounds = array<i64: 1, 1, 64>}, {transform_indices = @transform_2, window_bounds = array<i64: 1, 1, 64>}, {transform_indices = @transform_3, window_bounds = array<i64: 1, 64, 192>}, {transform_indices = @transform_4, window_bounds = array<i64: 1, 1, 192>}, {transform_indices = @transform_5, window_bounds = array<i64: 1, 64, 64>}, {transform_indices = @transform_6, window_bounds = array<i64: 1, 1, 64>}, {transform_indices = @transform_7, window_bounds = array<i64: 1, 1, 64>}, {transform_indices = @transform_8, window_bounds = array<i64: 1, 1, 64>}, {transform_indices = @transform_9, window_bounds = array<i64: 1, 64, 128>}, {transform_indices = @transform_10, window_bounds = array<i64: 1, 1, 128>}, {transform_indices = @transform_11, window_bounds = array<i64: 1, 128, 64>}, {transform_indices = @transform_12, window_bounds = array<i64: 1, 1, 64>}, {pipeline_mode = #tpu.pipeline_mode<synchronous>, transform_indices = @transform_13, window_bounds = array<i64: 1, 64>}, {pipeline_mode = #tpu.pipeline_mode<synchronous>, transform_indices = @transform_14, window_bounds = array<i64: 1, 64>}, {transform_indices = @transform_15, window_bounds = array<i64: 16, 64>}]} {
    %c0_i32 = arith.constant 0 : i32
    %0 = arith.cmpi eq, %arg1, %c0_i32 : i32
    %1 = arith.extui %0 : i1 to i32
    %c0_i32_0 = arith.constant 0 : i32
    %2 = arith.cmpi ne, %1, %c0_i32_0 : i32
    scf.if %2 {
      %c0_81 = arith.constant 0 : index
      %c0_82 = arith.constant 0 : index
      %211 = vector.load %arg2[%c0_81, %c0_82] : memref<128x64xf32, #tpu.memory_space<vmem>>, vector<128x64xf32>
      %c0_83 = arith.constant 0 : index
      %c0_84 = arith.constant 0 : index
      %212 = vector.load %arg18[%c0_83, %c0_84] : memref<128x64xf32, #tpu.memory_space<vmem>>, vector<128x64xf32>
      tpu.vector_store %arg18[%c0_83, %c0_84], %211 {strides = array<i32>} : memref<128x64xf32, #tpu.memory_space<vmem>>, vector<128x64xf32>,
    } else {
    }
    %c0 = arith.constant 0 : index
    %c0_1 = arith.constant 0 : index
    %3 = vector.load %arg18[%c0, %c0_1] : memref<128x64xf32, #tpu.memory_space<vmem>>, vector<128x64xf32>
    %4 = tpu.iota {dimensions = array<i32: 0>} : vector<128x128xi32>
    %5 = tpu.iota {dimensions = array<i32: 1>} : vector<128x128xi32>
    %c15_i32 = arith.constant 15 : i32
    %6 = vector.broadcast %c15_i32 : i32 to vector<128x128xi32>
    %7 = arith.andi %4, %6 : vector<128x128xi32>
    %c15_i32_2 = arith.constant 15 : i32
    %8 = vector.broadcast %c15_i32_2 : i32 to vector<128x128xi32>
    %9 = arith.andi %5, %8 : vector<128x128xi32>
    %10 = arith.cmpi eq, %7, %9 : vector<128x128xi32>
    %c80_i32 = arith.constant 80 : i32
    %11 = vector.broadcast %c80_i32 : i32 to vector<128x128xi32>
    %12 = arith.cmpi slt, %5, %11 : vector<128x128xi32>
    %13 = arith.andi %10, %12 : vector<128x128xi1>
    %cst = arith.constant 0.000000e+00 : f32
    %cst_3 = arith.constant -1.000000e+30 : f32
    %14 = vector.broadcast %cst : f32 to vector<128x128xf32>
    %15 = vector.broadcast %cst_3 : f32 to vector<128x128xf32>
    %16 = arith.select %13, %14, %15 : vector<128x128xi1>, vector<128x128xf32>
    %c0_4 = arith.constant 0 : index
    %c0_5 = arith.constant 0 : index
    %c0_6 = arith.constant 0 : index
    %17 = vector.load %arg3[%c0_4, %c0_5, %c0_6] : memref<1x1x64xf32, #tpu.memory_space<vmem>>, vector<1x1x64xf32>
    %18 = vector.shape_cast %17 : vector<1x1x64xf32> to vector<1x64xf32>
    %c0_7 = arith.constant 0 : index
    %c0_8 = arith.constant 0 : index
    %c0_9 = arith.constant 0 : index
    %19 = vector.load %arg4[%c0_7, %c0_8, %c0_9] : memref<1x1x64xf32, #tpu.memory_space<vmem>>, vector<1x1x64xf32>
    %20 = vector.shape_cast %19 : vector<1x1x64xf32> to vector<1x64xf32>
    %cst_10 = arith.constant dense<0.000000e+00> : vector<128xf32>
    %21 = vector.multi_reduction <add>, %3, %cst_10 [1] : vector<128x64xf32> to vector<128xf32>
    %22 = vector.shape_cast %21 : vector<128xf32> to vector<128x1xf32>
    %cst_11 = arith.constant 6.400000e+01 : f32
    %23 = vector.broadcast %cst_11 : f32 to vector<128x1xf32>
    %24 = arith.divf %22, %23 : vector<128x1xf32>
    %25 = vector.broadcast %24 : vector<128x1xf32> to vector<128x64xf32>
    %26 = arith.subf %3, %25 : vector<128x64xf32>
    %27 = arith.mulf %26, %26 : vector<128x64xf32>
    %cst_12 = arith.constant dense<0.000000e+00> : vector<128xf32>
    %28 = vector.multi_reduction <add>, %27, %cst_12 [1] : vector<128x64xf32> to vector<128xf32>
    %29 = vector.shape_cast %28 : vector<128xf32> to vector<128x1xf32>
    %cst_13 = arith.constant 6.400000e+01 : f32
    %30 = vector.broadcast %cst_13 : f32 to vector<128x1xf32>
    %31 = arith.divf %29, %30 : vector<128x1xf32>
    %32 = vector.broadcast %24 : vector<128x1xf32> to vector<128x64xf32>
    %33 = arith.subf %3, %32 : vector<128x64xf32>
    %cst_14 = arith.constant 9.99999996E-13 : f32
    %34 = vector.broadcast %cst_14 : f32 to vector<128x1xf32>
    %35 = arith.addf %31, %34 : vector<128x1xf32>
    %36 = math.rsqrt %35 : vector<128x1xf32>
    %37 = vector.broadcast %36 : vector<128x1xf32> to vector<128x64xf32>
    %38 = arith.mulf %33, %37 : vector<128x64xf32>
    %39 = vector.broadcast %18 : vector<1x64xf32> to vector<128x64xf32>
    %40 = arith.mulf %38, %39 : vector<128x64xf32>
    %41 = vector.broadcast %20 : vector<1x64xf32> to vector<128x64xf32>
    %42 = arith.addf %40, %41 : vector<128x64xf32>
    %43 = arith.truncf %42 : vector<128x64xf32> to vector<128x64xbf16>
    %c0_15 = arith.constant 0 : index
    %c0_16 = arith.constant 0 : index
    %c0_17 = arith.constant 0 : index
    %44 = vector.load %arg5[%c0_15, %c0_16, %c0_17] : memref<1x64x192xbf16, #tpu.memory_space<vmem>>, vector<1x64x192xbf16>
    %45 = vector.shape_cast %44 : vector<1x64x192xbf16> to vector<64x192xbf16>
    %cst_18 = arith.constant dense<0.000000e+00> : vector<128x192xf32>
    %46 = tpu.matmul %43, %45, %cst_18 {dimension_numbers = #tpu.dot_dimension_numbers<[1], [0], [0], [1], [0, 0, 1, 1], [], []>} : vector<128x64xbf16>, vector<64x192xbf16>, vector<128x192xf32> -> vector<128x192xf32>
    %c0_19 = arith.constant 0 : index
    %c0_20 = arith.constant 0 : index
    %c0_21 = arith.constant 0 : index
    %47 = vector.load %arg6[%c0_19, %c0_20, %c0_21] : memref<1x1x192xf32, #tpu.memory_space<vmem>>, vector<1x1x192xf32>
    %48 = vector.shape_cast %47 : vector<1x1x192xf32> to vector<1x192xf32>
    %49 = vector.broadcast %48 : vector<1x192xf32> to vector<128x192xf32>
    %50 = arith.addf %46, %49 : vector<128x192xf32>
    %c0_22 = arith.constant 0 : index
    %c0_23 = arith.constant 0 : index
    %c0_24 = arith.constant 0 : index
    %51 = vector.load %arg7[%c0_22, %c0_23, %c0_24] : memref<1x64x64xbf16, #tpu.memory_space<vmem>>, vector<1x64x64xbf16>
    %52 = vector.shape_cast %51 : vector<1x64x64xbf16> to vector<64x64xbf16>
    %cst_25 = arith.constant 0.000000e+00 : f32
    %53 = vector.broadcast %cst_25 : f32 to vector<128x64xf32>
    %54 = vector.extract_strided_slice %50 {offsets = [0, 0], sizes = [128, 16], strides = [1, 1]} : vector<128x192xf32> to vector<128x16xf32>
    %55 = arith.truncf %54 : vector<128x16xf32> to vector<128x16xbf16>
    %56 = vector.extract_strided_slice %50 {offsets = [0, 64], sizes = [128, 16], strides = [1, 1]} : vector<128x192xf32> to vector<128x16xf32>
    %57 = arith.truncf %56 : vector<128x16xf32> to vector<128x16xbf16>
    %58 = vector.extract_strided_slice %50 {offsets = [0, 128], sizes = [128, 16], strides = [1, 1]} : vector<128x192xf32> to vector<128x16xf32>
    %59 = arith.truncf %58 : vector<128x16xf32> to vector<128x16xbf16>
    %cst_26 = arith.constant dense<0.000000e+00> : vector<128x128xf32>
    %60 = tpu.matmul %55, %57, %cst_26 {dimension_numbers = #tpu.dot_dimension_numbers<[1], [1], [0], [0], [0, 0, 1, 0], [], []>} : vector<128x16xbf16>, vector<128x16xbf16>, vector<128x128xf32> -> vector<128x128xf32>
    %61 = arith.addf %60, %16 : vector<128x128xf32>
    %cst_27 = arith.constant dense<0xFF800000> : vector<128xf32>
    %62 = vector.multi_reduction <maximumf>, %61, %cst_27 [1] : vector<128x128xf32> to vector<128xf32>
    %63 = vector.shape_cast %62 : vector<128xf32> to vector<128x1xf32>
    %64 = vector.broadcast %63 : vector<128x1xf32> to vector<128x128xf32>
    %65 = arith.subf %61, %64 : vector<128x128xf32>
    %66 = math.exp %65 : vector<128x128xf32>
    %cst_28 = arith.constant dense<0.000000e+00> : vector<128xf32>
    %67 = vector.multi_reduction <add>, %66, %cst_28 [1] : vector<128x128xf32> to vector<128xf32>
    %68 = vector.shape_cast %67 : vector<128xf32> to vector<128x1xf32>
    %69 = vector.broadcast %68 : vector<128x1xf32> to vector<128x128xf32>
    %70 = arith.divf %66, %69 : vector<128x128xf32>
    %71 = arith.truncf %70 : vector<128x128xf32> to vector<128x128xbf16>
    %cst_29 = arith.constant dense<0.000000e+00> : vector<128x16xf32>
    %72 = tpu.matmul %71, %59, %cst_29 {dimension_numbers = #tpu.dot_dimension_numbers<[1], [0], [0], [1], [0, 0, 1, 1], [], []>} : vector<128x128xbf16>, vector<128x16xbf16>, vector<128x16xf32> -> vector<128x16xf32>
    %73 = arith.truncf %72 : vector<128x16xf32> to vector<128x16xbf16>
    %74 = vector.extract_strided_slice %52 {offsets = [0, 0], sizes = [16, 64], strides = [1, 1]} : vector<64x64xbf16> to vector<16x64xbf16>
    %cst_30 = arith.constant dense<0.000000e+00> : vector<128x64xf32>
    %75 = tpu.matmul %73, %74, %cst_30 {dimension_numbers = #tpu.dot_dimension_numbers<[1], [0], [0], [1], [0, 0, 1, 1], [], []>} : vector<128x16xbf16>, vector<16x64xbf16>, vector<128x64xf32> -> vector<128x64xf32>
    %76 = arith.addf %53, %75 : vector<128x64xf32>
    %77 = vector.extract_strided_slice %50 {offsets = [0, 16], sizes = [128, 16], strides = [1, 1]} : vector<128x192xf32> to vector<128x16xf32>
    %78 = arith.truncf %77 : vector<128x16xf32> to vector<128x16xbf16>
    %79 = vector.extract_strided_slice %50 {offsets = [0, 80], sizes = [128, 16], strides = [1, 1]} : vector<128x192xf32> to vector<128x16xf32>
    %80 = arith.truncf %79 : vector<128x16xf32> to vector<128x16xbf16>
    %81 = vector.extract_strided_slice %50 {offsets = [0, 144], sizes = [128, 16], strides = [1, 1]} : vector<128x192xf32> to vector<128x16xf32>
    %82 = arith.truncf %81 : vector<128x16xf32> to vector<128x16xbf16>
    %cst_31 = arith.constant dense<0.000000e+00> : vector<128x128xf32>
    %83 = tpu.matmul %78, %80, %cst_31 {dimension_numbers = #tpu.dot_dimension_numbers<[1], [1], [0], [0], [0, 0, 1, 0], [], []>} : vector<128x16xbf16>, vector<128x16xbf16>, vector<128x128xf32> -> vector<128x128xf32>
    %84 = arith.addf %83, %16 : vector<128x128xf32>
    %cst_32 = arith.constant dense<0xFF800000> : vector<128xf32>
    %85 = vector.multi_reduction <maximumf>, %84, %cst_32 [1] : vector<128x128xf32> to vector<128xf32>
    %86 = vector.shape_cast %85 : vector<128xf32> to vector<128x1xf32>
    %87 = vector.broadcast %86 : vector<128x1xf32> to vector<128x128xf32>
    %88 = arith.subf %84, %87 : vector<128x128xf32>
    %89 = math.exp %88 : vector<128x128xf32>
    %cst_33 = arith.constant dense<0.000000e+00> : vector<128xf32>
    %90 = vector.multi_reduction <add>, %89, %cst_33 [1] : vector<128x128xf32> to vector<128xf32>
    %91 = vector.shape_cast %90 : vector<128xf32> to vector<128x1xf32>
    %92 = vector.broadcast %91 : vector<128x1xf32> to vector<128x128xf32>
    %93 = arith.divf %89, %92 : vector<128x128xf32>
    %94 = arith.truncf %93 : vector<128x128xf32> to vector<128x128xbf16>
    %cst_34 = arith.constant dense<0.000000e+00> : vector<128x16xf32>
    %95 = tpu.matmul %94, %82, %cst_34 {dimension_numbers = #tpu.dot_dimension_numbers<[1], [0], [0], [1], [0, 0, 1, 1], [], []>} : vector<128x128xbf16>, vector<128x16xbf16>, vector<128x16xf32> -> vector<128x16xf32>
    %96 = arith.truncf %95 : vector<128x16xf32> to vector<128x16xbf16>
    %97 = vector.extract_strided_slice %52 {offsets = [16, 0], sizes = [16, 64], strides = [1, 1]} : vector<64x64xbf16> to vector<16x64xbf16>
    %cst_35 = arith.constant dense<0.000000e+00> : vector<128x64xf32>
    %98 = tpu.matmul %96, %97, %cst_35 {dimension_numbers = #tpu.dot_dimension_numbers<[1], [0], [0], [1], [0, 0, 1, 1], [], []>} : vector<128x16xbf16>, vector<16x64xbf16>, vector<128x64xf32> -> vector<128x64xf32>
    %99 = arith.addf %76, %98 : vector<128x64xf32>
    %100 = vector.extract_strided_slice %50 {offsets = [0, 32], sizes = [128, 16], strides = [1, 1]} : vector<128x192xf32> to vector<128x16xf32>
    %101 = arith.truncf %100 : vector<128x16xf32> to vector<128x16xbf16>
    %102 = vector.extract_strided_slice %50 {offsets = [0, 96], sizes = [128, 16], strides = [1, 1]} : vector<128x192xf32> to vector<128x16xf32>
    %103 = arith.truncf %102 : vector<128x16xf32> to vector<128x16xbf16>
    %104 = vector.extract_strided_slice %50 {offsets = [0, 160], sizes = [128, 16], strides = [1, 1]} : vector<128x192xf32> to vector<128x16xf32>
    %105 = arith.truncf %104 : vector<128x16xf32> to vector<128x16xbf16>
    %cst_36 = arith.constant dense<0.000000e+00> : vector<128x128xf32>
    %106 = tpu.matmul %101, %103, %cst_36 {dimension_numbers = #tpu.dot_dimension_numbers<[1], [1], [0], [0], [0, 0, 1, 0], [], []>} : vector<128x16xbf16>, vector<128x16xbf16>, vector<128x128xf32> -> vector<128x128xf32>
    %107 = arith.addf %106, %16 : vector<128x128xf32>
    %cst_37 = arith.constant dense<0xFF800000> : vector<128xf32>
    %108 = vector.multi_reduction <maximumf>, %107, %cst_37 [1] : vector<128x128xf32> to vector<128xf32>
    %109 = vector.shape_cast %108 : vector<128xf32> to vector<128x1xf32>
    %110 = vector.broadcast %109 : vector<128x1xf32> to vector<128x128xf32>
    %111 = arith.subf %107, %110 : vector<128x128xf32>
    %112 = math.exp %111 : vector<128x128xf32>
    %cst_38 = arith.constant dense<0.000000e+00> : vector<128xf32>
    %113 = vector.multi_reduction <add>, %112, %cst_38 [1] : vector<128x128xf32> to vector<128xf32>
    %114 = vector.shape_cast %113 : vector<128xf32> to vector<128x1xf32>
    %115 = vector.broadcast %114 : vector<128x1xf32> to vector<128x128xf32>
    %116 = arith.divf %112, %115 : vector<128x128xf32>
    %117 = arith.truncf %116 : vector<128x128xf32> to vector<128x128xbf16>
    %cst_39 = arith.constant dense<0.000000e+00> : vector<128x16xf32>
    %118 = tpu.matmul %117, %105, %cst_39 {dimension_numbers = #tpu.dot_dimension_numbers<[1], [0], [0], [1], [0, 0, 1, 1], [], []>} : vector<128x128xbf16>, vector<128x16xbf16>, vector<128x16xf32> -> vector<128x16xf32>
    %119 = arith.truncf %118 : vector<128x16xf32> to vector<128x16xbf16>
    %120 = vector.extract_strided_slice %52 {offsets = [32, 0], sizes = [16, 64], strides = [1, 1]} : vector<64x64xbf16> to vector<16x64xbf16>
    %cst_40 = arith.constant dense<0.000000e+00> : vector<128x64xf32>
    %121 = tpu.matmul %119, %120, %cst_40 {dimension_numbers = #tpu.dot_dimension_numbers<[1], [0], [0], [1], [0, 0, 1, 1], [], []>} : vector<128x16xbf16>, vector<16x64xbf16>, vector<128x64xf32> -> vector<128x64xf32>
    %122 = arith.addf %99, %121 : vector<128x64xf32>
    %123 = vector.extract_strided_slice %50 {offsets = [0, 48], sizes = [128, 16], strides = [1, 1]} : vector<128x192xf32> to vector<128x16xf32>
    %124 = arith.truncf %123 : vector<128x16xf32> to vector<128x16xbf16>
    %125 = vector.extract_strided_slice %50 {offsets = [0, 112], sizes = [128, 16], strides = [1, 1]} : vector<128x192xf32> to vector<128x16xf32>
    %126 = arith.truncf %125 : vector<128x16xf32> to vector<128x16xbf16>
    %127 = vector.extract_strided_slice %50 {offsets = [0, 176], sizes = [128, 16], strides = [1, 1]} : vector<128x192xf32> to vector<128x16xf32>
    %128 = arith.truncf %127 : vector<128x16xf32> to vector<128x16xbf16>
    %cst_41 = arith.constant dense<0.000000e+00> : vector<128x128xf32>
    %129 = tpu.matmul %124, %126, %cst_41 {dimension_numbers = #tpu.dot_dimension_numbers<[1], [1], [0], [0], [0, 0, 1, 0], [], []>} : vector<128x16xbf16>, vector<128x16xbf16>, vector<128x128xf32> -> vector<128x128xf32>
    %130 = arith.addf %129, %16 : vector<128x128xf32>
    %cst_42 = arith.constant dense<0xFF800000> : vector<128xf32>
    %131 = vector.multi_reduction <maximumf>, %130, %cst_42 [1] : vector<128x128xf32> to vector<128xf32>
    %132 = vector.shape_cast %131 : vector<128xf32> to vector<128x1xf32>
    %133 = vector.broadcast %132 : vector<128x1xf32> to vector<128x128xf32>
    %134 = arith.subf %130, %133 : vector<128x128xf32>
    %135 = math.exp %134 : vector<128x128xf32>
    %cst_43 = arith.constant dense<0.000000e+00> : vector<128xf32>
    %136 = vector.multi_reduction <add>, %135, %cst_43 [1] : vector<128x128xf32> to vector<128xf32>
    %137 = vector.shape_cast %136 : vector<128xf32> to vector<128x1xf32>
    %138 = vector.broadcast %137 : vector<128x1xf32> to vector<128x128xf32>
    %139 = arith.divf %135, %138 : vector<128x128xf32>
    %140 = arith.truncf %139 : vector<128x128xf32> to vector<128x128xbf16>
    %cst_44 = arith.constant dense<0.000000e+00> : vector<128x16xf32>
    %141 = tpu.matmul %140, %128, %cst_44 {dimension_numbers = #tpu.dot_dimension_numbers<[1], [0], [0], [1], [0, 0, 1, 1], [], []>} : vector<128x128xbf16>, vector<128x16xbf16>, vector<128x16xf32> -> vector<128x16xf32>
    %142 = arith.truncf %141 : vector<128x16xf32> to vector<128x16xbf16>
    %143 = vector.extract_strided_slice %52 {offsets = [48, 0], sizes = [16, 64], strides = [1, 1]} : vector<64x64xbf16> to vector<16x64xbf16>
    %cst_45 = arith.constant dense<0.000000e+00> : vector<128x64xf32>
    %144 = tpu.matmul %142, %143, %cst_45 {dimension_numbers = #tpu.dot_dimension_numbers<[1], [0], [0], [1], [0, 0, 1, 1], [], []>} : vector<128x16xbf16>, vector<16x64xbf16>, vector<128x64xf32> -> vector<128x64xf32>
    %145 = arith.addf %122, %144 : vector<128x64xf32>
    %146 = arith.addf %3, %145 : vector<128x64xf32>
    %c0_46 = arith.constant 0 : index
    %c0_47 = arith.constant 0 : index
    %c0_48 = arith.constant 0 : index
    %147 = vector.load %arg8[%c0_46, %c0_47, %c0_48] : memref<1x1x64xf32, #tpu.memory_space<vmem>>, vector<1x1x64xf32>
    %148 = vector.shape_cast %147 : vector<1x1x64xf32> to vector<1x64xf32>
    %149 = vector.broadcast %148 : vector<1x64xf32> to vector<128x64xf32>
    %150 = arith.addf %146, %149 : vector<128x64xf32>
    %c0_49 = arith.constant 0 : index
    %c0_50 = arith.constant 0 : index
    %c0_51 = arith.constant 0 : index
    %151 = vector.load %arg9[%c0_49, %c0_50, %c0_51] : memref<1x1x64xf32, #tpu.memory_space<vmem>>, vector<1x1x64xf32>
    %152 = vector.shape_cast %151 : vector<1x1x64xf32> to vector<1x64xf32>
    %c0_52 = arith.constant 0 : index
    %c0_53 = arith.constant 0 : index
    %c0_54 = arith.constant 0 : index
    %153 = vector.load %arg10[%c0_52, %c0_53, %c0_54] : memref<1x1x64xf32, #tpu.memory_space<vmem>>, vector<1x1x64xf32>
    %154 = vector.shape_cast %153 : vector<1x1x64xf32> to vector<1x64xf32>
    %cst_55 = arith.constant dense<0.000000e+00> : vector<128xf32>
    %155 = vector.multi_reduction <add>, %150, %cst_55 [1] : vector<128x64xf32> to vector<128xf32>
    %156 = vector.shape_cast %155 : vector<128xf32> to vector<128x1xf32>
    %cst_56 = arith.constant 6.400000e+01 : f32
    %157 = vector.broadcast %cst_56 : f32 to vector<128x1xf32>
    %158 = arith.divf %156, %157 : vector<128x1xf32>
    %159 = vector.broadcast %158 : vector<128x1xf32> to vector<128x64xf32>
    %160 = arith.subf %150, %159 : vector<128x64xf32>
    %161 = arith.mulf %160, %160 : vector<128x64xf32>
    %cst_57 = arith.constant dense<0.000000e+00> : vector<128xf32>
    %162 = vector.multi_reduction <add>, %161, %cst_57 [1] : vector<128x64xf32> to vector<128xf32>
    %163 = vector.shape_cast %162 : vector<128xf32> to vector<128x1xf32>
    %cst_58 = arith.constant 6.400000e+01 : f32
    %164 = vector.broadcast %cst_58 : f32 to vector<128x1xf32>
    %165 = arith.divf %163, %164 : vector<128x1xf32>
    %166 = vector.broadcast %158 : vector<128x1xf32> to vector<128x64xf32>
    %167 = arith.subf %150, %166 : vector<128x64xf32>
    %cst_59 = arith.constant 9.99999996E-13 : f32
    %168 = vector.broadcast %cst_59 : f32 to vector<128x1xf32>
    %169 = arith.addf %165, %168 : vector<128x1xf32>
    %170 = math.rsqrt %169 : vector<128x1xf32>
    %171 = vector.broadcast %170 : vector<128x1xf32> to vector<128x64xf32>
    %172 = arith.mulf %167, %171 : vector<128x64xf32>
    %173 = vector.broadcast %152 : vector<1x64xf32> to vector<128x64xf32>
    %174 = arith.mulf %172, %173 : vector<128x64xf32>
    %175 = vector.broadcast %154 : vector<1x64xf32> to vector<128x64xf32>
    %176 = arith.addf %174, %175 : vector<128x64xf32>
    %177 = arith.truncf %176 : vector<128x64xf32> to vector<128x64xbf16>
    %c0_60 = arith.constant 0 : index
    %c0_61 = arith.constant 0 : index
    %c0_62 = arith.constant 0 : index
    %178 = vector.load %arg11[%c0_60, %c0_61, %c0_62] : memref<1x64x128xbf16, #tpu.memory_space<vmem>>, vector<1x64x128xbf16>
    %179 = vector.shape_cast %178 : vector<1x64x128xbf16> to vector<64x128xbf16>
    %cst_63 = arith.constant dense<0.000000e+00> : vector<128x128xf32>
    %180 = tpu.matmul %177, %179, %cst_63 {dimension_numbers = #tpu.dot_dimension_numbers<[1], [0], [0], [1], [0, 0, 1, 1], [], []>} : vector<128x64xbf16>, vector<64x128xbf16>, vector<128x128xf32> -> vector<128x128xf32>
    %c0_64 = arith.constant 0 : index
    %c0_65 = arith.constant 0 : index
    %c0_66 = arith.constant 0 : index
    %181 = vector.load %arg12[%c0_64, %c0_65, %c0_66] : memref<1x1x128xf32, #tpu.memory_space<vmem>>, vector<1x1x128xf32>
    %182 = vector.shape_cast %181 : vector<1x1x128xf32> to vector<1x128xf32>
    %183 = vector.broadcast %182 : vector<1x128xf32> to vector<128x128xf32>
    %184 = arith.addf %180, %183 : vector<128x128xf32>
    %cst_67 = arith.constant 5.000000e-01 : f32
    %185 = vector.broadcast %cst_67 : f32 to vector<128x128xf32>
    %186 = arith.mulf %185, %184 : vector<128x128xf32>
    %cst_68 = arith.constant 4.471500e-02 : f32
    %187 = vector.broadcast %cst_68 : f32 to vector<128x128xf32>
    %188 = arith.mulf %187, %184 : vector<128x128xf32>
    %189 = arith.mulf %188, %184 : vector<128x128xf32>
    %190 = arith.mulf %189, %184 : vector<128x128xf32>
    %191 = arith.addf %184, %190 : vector<128x128xf32>
    %cst_69 = arith.constant 0.797884583 : f32
    %192 = vector.broadcast %cst_69 : f32 to vector<128x128xf32>
    %193 = arith.mulf %192, %191 : vector<128x128xf32>
    %194 = math.tanh %193 : vector<128x128xf32>
    %cst_70 = arith.constant 1.000000e+00 : f32
    %195 = vector.broadcast %cst_70 : f32 to vector<128x128xf32>
    %196 = arith.addf %195, %194 : vector<128x128xf32>
    %197 = arith.mulf %186, %196 : vector<128x128xf32>
    %198 = arith.truncf %197 : vector<128x128xf32> to vector<128x128xbf16>
    %c0_71 = arith.constant 0 : index
    %c0_72 = arith.constant 0 : index
    %c0_73 = arith.constant 0 : index
    %199 = vector.load %arg13[%c0_71, %c0_72, %c0_73] : memref<1x128x64xbf16, #tpu.memory_space<vmem>>, vector<1x128x64xbf16>
    %200 = vector.shape_cast %199 : vector<1x128x64xbf16> to vector<128x64xbf16>
    %cst_74 = arith.constant dense<0.000000e+00> : vector<128x64xf32>
    %201 = tpu.matmul %198, %200, %cst_74 {dimension_numbers = #tpu.dot_dimension_numbers<[1], [0], [0], [1], [0, 0, 1, 1], [], []>} : vector<128x128xbf16>, vector<128x64xbf16>, vector<128x64xf32> -> vector<128x64xf32>
    %c0_75 = arith.constant 0 : index
    %c0_76 = arith.constant 0 : index
    %c0_77 = arith.constant 0 : index
    %202 = vector.load %arg14[%c0_75, %c0_76, %c0_77] : memref<1x1x64xf32, #tpu.memory_space<vmem>>, vector<1x1x64xf32>
    %203 = vector.shape_cast %202 : vector<1x1x64xf32> to vector<1x64xf32>
    %204 = vector.broadcast %203 : vector<1x64xf32> to vector<128x64xf32>
    %205 = arith.addf %201, %204 : vector<128x64xf32>
    %206 = arith.addf %150, %205 : vector<128x64xf32>
    %c0_78 = arith.constant 0 : index
    %c0_79 = arith.constant 0 : index
    %207 = vector.load %arg18[%c0_78, %c0_79] : memref<128x64xf32, #tpu.memory_space<vmem>>, vector<128x64xf32>
    tpu.vector_store %arg18[%c0_78, %c0_79], %206 {strides = array<i32>} : memref<128x64xf32, #tpu.memory_space<vmem>>, vector<128x64xf32>,
    %c1_i32 = arith.constant 1 : i32
    %208 = arith.cmpi eq, %arg1, %c1_i32 : i32
    %209 = arith.extui %208 : i1 to i32
    %c0_i32_80 = arith.constant 0 : i32
    %210 = arith.cmpi ne, %209, %c0_i32_80 : i32
    scf.if %210 {
      %211 = vector.extract_strided_slice %206 {offsets = [0, 0], sizes = [16, 64], strides = [1, 1]} : vector<128x64xf32> to vector<16x64xf32>
      %c0_81 = arith.constant 0 : index
      %c0_82 = arith.constant 0 : index
      %212 = vector.load %arg15[%c0_81, %c0_82] : memref<1x64xf32, #tpu.memory_space<vmem>>, vector<1x64xf32>
      %c0_83 = arith.constant 0 : index
      %c0_84 = arith.constant 0 : index
      %213 = vector.load %arg16[%c0_83, %c0_84] : memref<1x64xf32, #tpu.memory_space<vmem>>, vector<1x64xf32>
      %cst_85 = arith.constant dense<0.000000e+00> : vector<16xf32>
      %214 = vector.multi_reduction <add>, %211, %cst_85 [1] : vector<16x64xf32> to vector<16xf32>
      %215 = vector.shape_cast %214 : vector<16xf32> to vector<16x1xf32>
      %cst_86 = arith.constant 6.400000e+01 : f32
      %216 = vector.broadcast %cst_86 : f32 to vector<16x1xf32>
      %217 = arith.divf %215, %216 : vector<16x1xf32>
      %218 = vector.broadcast %217 : vector<16x1xf32> to vector<16x64xf32>
      %219 = arith.subf %211, %218 : vector<16x64xf32>
      %220 = arith.mulf %219, %219 : vector<16x64xf32>
      %cst_87 = arith.constant dense<0.000000e+00> : vector<16xf32>
      %221 = vector.multi_reduction <add>, %220, %cst_87 [1] : vector<16x64xf32> to vector<16xf32>
      %222 = vector.shape_cast %221 : vector<16xf32> to vector<16x1xf32>
      %cst_88 = arith.constant 6.400000e+01 : f32
      %223 = vector.broadcast %cst_88 : f32 to vector<16x1xf32>
      %224 = arith.divf %222, %223 : vector<16x1xf32>
      %225 = vector.broadcast %217 : vector<16x1xf32> to vector<16x64xf32>
      %226 = arith.subf %211, %225 : vector<16x64xf32>
      %cst_89 = arith.constant 9.99999996E-13 : f32
      %227 = vector.broadcast %cst_89 : f32 to vector<16x1xf32>
      %228 = arith.addf %224, %227 : vector<16x1xf32>
      %229 = math.rsqrt %228 : vector<16x1xf32>
      %230 = vector.broadcast %229 : vector<16x1xf32> to vector<16x64xf32>
      %231 = arith.mulf %226, %230 : vector<16x64xf32>
      %232 = vector.broadcast %212 : vector<1x64xf32> to vector<16x64xf32>
      %233 = arith.mulf %231, %232 : vector<16x64xf32>
      %234 = vector.broadcast %213 : vector<1x64xf32> to vector<16x64xf32>
      %235 = arith.addf %233, %234 : vector<16x64xf32>
      %c0_90 = arith.constant 0 : index
      %c0_91 = arith.constant 0 : index
      %236 = vector.load %arg17[%c0_90, %c0_91] : memref<16x64xf32, #tpu.memory_space<vmem>>, vector<16x64xf32>
      tpu.vector_store %arg17[%c0_90, %c0_91], %235 {strides = array<i32>} : memref<16x64xf32, #tpu.memory_space<vmem>>, vector<16x64xf32>,
    } else {
    }
    return
  }
  func.func @transform_0(%arg0: i32, %arg1: i32) -> (i32, i32) {
    %c0_i32 = arith.constant 0 : i32
    %c0_i32_0 = arith.constant 0 : i32
    return %arg0, %c0_i32 : i32, i32
  }
  func.func @transform_1(%arg0: i32, %arg1: i32) -> (i32, i32, i32) {
    %c0_i32 = arith.constant 0 : i32
    %c0_i32_0 = arith.constant 0 : i32
    %c0_i32_1 = arith.constant 0 : i32
    return %arg1, %c0_i32, %c0_i32_0 : i32, i32, i32
  }
  func.func @transform_2(%arg0: i32, %arg1: i32) -> (i32, i32, i32) {
    %c0_i32 = arith.constant 0 : i32
    %c0_i32_0 = arith.constant 0 : i32
    %c0_i32_1 = arith.constant 0 : i32
    return %arg1, %c0_i32, %c0_i32_0 : i32, i32, i32
  }
  func.func @transform_3(%arg0: i32, %arg1: i32) -> (i32, i32, i32) {
    %c0_i32 = arith.constant 0 : i32
    %c0_i32_0 = arith.constant 0 : i32
    %c0_i32_1 = arith.constant 0 : i32
    return %arg1, %c0_i32, %c0_i32_0 : i32, i32, i32
  }
  func.func @transform_4(%arg0: i32, %arg1: i32) -> (i32, i32, i32) {
    %c0_i32 = arith.constant 0 : i32
    %c0_i32_0 = arith.constant 0 : i32
    %c0_i32_1 = arith.constant 0 : i32
    return %arg1, %c0_i32, %c0_i32_0 : i32, i32, i32
  }
  func.func @transform_5(%arg0: i32, %arg1: i32) -> (i32, i32, i32) {
    %c0_i32 = arith.constant 0 : i32
    %c0_i32_0 = arith.constant 0 : i32
    %c0_i32_1 = arith.constant 0 : i32
    return %arg1, %c0_i32, %c0_i32_0 : i32, i32, i32
  }
  func.func @transform_6(%arg0: i32, %arg1: i32) -> (i32, i32, i32) {
    %c0_i32 = arith.constant 0 : i32
    %c0_i32_0 = arith.constant 0 : i32
    %c0_i32_1 = arith.constant 0 : i32
    return %arg1, %c0_i32, %c0_i32_0 : i32, i32, i32
  }
  func.func @transform_7(%arg0: i32, %arg1: i32) -> (i32, i32, i32) {
    %c0_i32 = arith.constant 0 : i32
    %c0_i32_0 = arith.constant 0 : i32
    %c0_i32_1 = arith.constant 0 : i32
    return %arg1, %c0_i32, %c0_i32_0 : i32, i32, i32
  }
  func.func @transform_8(%arg0: i32, %arg1: i32) -> (i32, i32, i32) {
    %c0_i32 = arith.constant 0 : i32
    %c0_i32_0 = arith.constant 0 : i32
    %c0_i32_1 = arith.constant 0 : i32
    return %arg1, %c0_i32, %c0_i32_0 : i32, i32, i32
  }
  func.func @transform_9(%arg0: i32, %arg1: i32) -> (i32, i32, i32) {
    %c0_i32 = arith.constant 0 : i32
    %c0_i32_0 = arith.constant 0 : i32
    %c0_i32_1 = arith.constant 0 : i32
    return %arg1, %c0_i32, %c0_i32_0 : i32, i32, i32
  }
  func.func @transform_10(%arg0: i32, %arg1: i32) -> (i32, i32, i32) {
    %c0_i32 = arith.constant 0 : i32
    %c0_i32_0 = arith.constant 0 : i32
    %c0_i32_1 = arith.constant 0 : i32
    return %arg1, %c0_i32, %c0_i32_0 : i32, i32, i32
  }
  func.func @transform_11(%arg0: i32, %arg1: i32) -> (i32, i32, i32) {
    %c0_i32 = arith.constant 0 : i32
    %c0_i32_0 = arith.constant 0 : i32
    %c0_i32_1 = arith.constant 0 : i32
    return %arg1, %c0_i32, %c0_i32_0 : i32, i32, i32
  }
  func.func @transform_12(%arg0: i32, %arg1: i32) -> (i32, i32, i32) {
    %c0_i32 = arith.constant 0 : i32
    %c0_i32_0 = arith.constant 0 : i32
    %c0_i32_1 = arith.constant 0 : i32
    return %arg1, %c0_i32, %c0_i32_0 : i32, i32, i32
  }
  func.func @transform_13(%arg0: i32, %arg1: i32) -> (i32, i32) {
    %c0_i32 = arith.constant 0 : i32
    %c0_i32_0 = arith.constant 0 : i32
    %c0_i32_1 = arith.constant 0 : i32
    return %c0_i32, %c0_i32_0 : i32, i32
  }
  func.func @transform_14(%arg0: i32, %arg1: i32) -> (i32, i32) {
    %c0_i32 = arith.constant 0 : i32
    %c0_i32_0 = arith.constant 0 : i32
    %c0_i32_1 = arith.constant 0 : i32
    return %c0_i32, %c0_i32_0 : i32, i32
  }
  func.func @transform_15(%arg0: i32, %arg1: i32) -> (i32, i32) {
    %c0_i32 = arith.constant 0 : i32
    %c0_i32_0 = arith.constant 0 : i32
    return %arg0, %c0_i32 : i32, i32
  }
}

</mosaic_0001>

<llo_original>
// kernel: vit_encoder_forward.2
$region0: #{vit_encoder_forward.2}
  #allocation0 [shape = 'u32[]', space=smem, size = 0x4, offset = 0x4, fixed_abs, tag = 'smem constant byte address 0x4 - core index']
  #allocation1 [shape = 'u32[144,128]{1,0:T(1,128)}', space=vmem, size = 0x12000, scoped, tag = 'internal scratch']
  %s0 = inlined_call_operand.vmem [shape: bf16[256,768], index: 0, kind: input, shape index: {}]
  %s1 = inlined_call_operand.vmem [shape: bf16[768,64], index: 1, kind: input, shape index: {}]
  %s2 = inlined_call_operand.vmem [shape: f32[128,64], index: 2, kind: input, shape index: {}]
  %s3 = inlined_call_operand.vmem [shape: f32[256,64], index: 3, kind: output, shape index: {}]
  %s4 = sld [smem:[#allocation0]]
  $region45: #{vit_encoder_forward.2} parent=0
    _
  %s6 = ssub.s32 1, %s4
  %s7 = scalar_select 0, %s6, %s4
  loop: start=0, step=1, limit=4
  $region2: #{vit_encoder_forward.2} parent=0 // loop_pre_header
    _
  $region3: #{vit_encoder_forward.2} parent=0 // loop_header
    %s9 = sphi 0, %s13
    %p10 = scmp.ge.s32.totalorder %s9, 4
    %s19 = sphi 0, %s21
    %s22 = sphi 0, %s19
    %s23 = sphi 0, %s22
    %s39 = sphi 0, %s23
    %s43 = sphi 0, %s43
    %s45 = sphi 0, %s43
    %s46 = sphi 0, %s45
    %s60 = sphi 0, %s46
    %s64 = sphi 0, %s64
    %s66 = sphi 0, %s64
    %s67 = sphi 0, %s66
    %s81 = sphi 0, %s67
    %s87 = sphi 0, %s89
    %s90 = sphi 0, %s87
    %s91 = sphi 0, %s90
    %s107 = sphi 0, %s91
  $region4: #{vit_encoder_forward.2} parent=0 // loop_header_branch
    %12 = sbr.rel (%p10) target = $region8
  $region5: #{vit_encoder_forward.2} parent=0 // loop_body
    %s14 = ssub.s32 %s9, 1
    %s15 = ssub.s32 %s9, 2
    %s16 = sadd.s32 %s9, 1
    %s17 = ssub.s32 %s9, %s16
    %p18 = scmp.eq.s32.totalorder %s17, 0
    %s20 = sadd.s32 %s19, 1
    %s21 = scalar_select %p18, %s19, %s20
    %p24 = pneg %p18
    %p25 = scmp.eq.s32.totalorder %s9, 1
    %p26 = por %p24, %p25
    %p27 = scmp.ne.s32.totalorder %s19, %s22
    %p28 = scmp.eq.s32.totalorder %s9, 0
    %p29 = por %p27, %p28
    %p30 = scmp.ne.s32.totalorder %s19, %s22
    %p31 = scmp.eq.s32.totalorder %s14, 1
    %p32 = por %p30, %p31
    %p33 = scmp.ne.s32.totalorder %s22, %s23
    %p34 = scmp.eq.s32.totalorder %s14, 0
    %p35 = por %p33, %p34
    %p36 = scmp.ne.s32.totalorder %s22, %s23
    %p37 = scmp.eq.s32.totalorder %s15, 1
    %p38 = por %p36, %p37
    %p40 = scmp.ne.s32.totalorder %s23, %s39
    %p41 = scmp.eq.s32.totalorder %s15, 0
    %p42 = por %p40, %p41
    %s44 = sadd.s32 %s43, 1
    %p47 = scmp.eq.s32.totalorder %s9, 1
    %p48 = scmp.ne.s32.totalorder %s43, %s45
    %p49 = scmp.eq.s32.totalorder %s9, 0
    %p50 = por %p48, %p49
    %p51 = scmp.ne.s32.totalorder %s43, %s45
    %p52 = scmp.eq.s32.totalorder %s14, 1
    %p53 = por %p51, %p52
    %p54 = scmp.ne.s32.totalorder %s45, %s46
    %p55 = scmp.eq.s32.totalorder %s14, 0
    %p56 = por %p54, %p55
    %p57 = scmp.ne.s32.totalorder %s45, %s46
    %p58 = scmp.eq.s32.totalorder %s15, 1
    %p59 = por %p57, %p58
    %p61 = scmp.ne.s32.totalorder %s46, %s60
    %p62 = scmp.eq.s32.totalorder %s15, 0
    %p63 = por %p61, %p62
    %s65 = sadd.s32 %s64, 1
    %p68 = scmp.eq.s32.totalorder %s9, 1
    %p69 = scmp.ne.s32.totalorder %s64, %s66
    %p70 = scmp.eq.s32.totalorder %s9, 0
    %p71 = por %p69, %p70
    %p72 = scmp.ne.s32.totalorder %s64, %s66
    %p73 = scmp.eq.s32.totalorder %s14, 1
    %p74 = por %p72, %p73
    %p75 = scmp.ne.s32.totalorder %s66, %s67
    %p76 = scmp.eq.s32.totalorder %s14, 0
    %p77 = por %p75, %p76
    %p78 = scmp.ne.s32.totalorder %s66, %s67
    %p79 = scmp.eq.s32.totalorder %s15, 1
    %p80 = por %p78, %p79
    %p82 = scmp.ne.s32.totalorder %s67, %s81
    %p83 = scmp.eq.s32.totalorder %s15, 0
    %p84 = por %p82, %p83
    %s85 = ssub.s32 %s9, %s16
    %p86 = scmp.eq.s32.totalorder %s85, 0
    %s88 = sadd.s32 %s87, 1
    %s89 = scalar_select %p86, %s87, %s88
    %p92 = pneg %p86
    %p93 = scmp.eq.s32.totalorder %s9, 1
    %p94 = por %p92, %p93
    %p95 = scmp.ne.s32.totalorder %s87, %s90
    %p96 = scmp.eq.s32.totalorder %s9, 0
    %p97 = por %p95, %p96
    %p98 = scmp.ne.s32.totalorder %s87, %s90
    %p99 = scmp.eq.s32.totalorder %s14, 1
    %p100 = por %p98, %p99
    %p101 = scmp.ne.s32.totalorder %s90, %s91
    %p102 = scmp.eq.s32.totalorder %s14, 0
    %p103 = por %p101, %p102
    %p104 = scmp.ne.s32.totalorder %s90, %s91
    %p105 = scmp.eq.s32.totalorder %s15, 1
    %p106 = por %p104, %p105
    %p108 = scmp.ne.s32.totalorder %s91, %s107
    %p109 = scmp.eq.s32.totalorder %s15, 0
    %p110 = por %p108, %p109
    %p111 = scmp.le.s32.totalorder 1, %s9
    %p112 = scmp.lt.s32.totalorder %s9, 3
    %p113 = pnand %p111, %p112
    %p114 = pneg %p113
    // Predicated region
    $region9: #{vit_encoder_forward.2} parent=5 // pred_check
      _
    $region10: #{vit_encoder_forward.2} parent=5 // pred_check_branch
      %116 = sbr.rel (%p113) target = $region12
    $region11: #{vit_encoder_forward.2} parent=5 // pred_region
      %s117 = ssub.s32 %s9, 1
      // Predicated region
      $region13: #{vit_encoder_forward.2} parent=11 // pred_check
        %p118 = pneg %p56
      $region14: #{vit_encoder_forward.2} parent=11 // pred_check_branch
        %120 = sbr.rel (%p118) target = $region16
      $region15: #{vit_encoder_forward.2} parent=11 // pred_region
        _
      $region16: #{vit_encoder_forward.2} parent=11 // pred_fallthru
        _
      // Predicated region
      $region17: #{vit_encoder_forward.2} parent=11 // pred_check
        %p121 = pneg %p77
      $region18: #{vit_encoder_forward.2} parent=11 // pred_check_branch
        %123 = sbr.rel (%p121) target = $region20
      $region19: #{vit_encoder_forward.2} parent=11 // pred_region
        _
      $region20: #{vit_encoder_forward.2} parent=11 // pred_fallthru
        _
    $region12: #{vit_encoder_forward.2} parent=5 // pred_fallthru
      _
    %p124 = scmp.lt.s32.totalorder %s9, 2
    // Predicated region
    $region21: #{vit_encoder_forward.2} parent=5 // pred_check
      %p125 = pneg %p124
    $region22: #{vit_encoder_forward.2} parent=5 // pred_check_branch
      %127 = sbr.rel (%p125) target = $region24
    $region23: #{vit_encoder_forward.2} parent=5 // pred_region
      // Predicated region
      $region25: #{vit_encoder_forward.2} parent=23 // pred_check
        %p128 = pneg %p29
      $region26: #{vit_encoder_forward.2} parent=23 // pred_check_branch
        %130 = sbr.rel (%p128) target = $region28
      $region27: #{vit_encoder_forward.2} parent=23 // pred_region
        %s131 = smul.u32 16, %s9
        %p132 = scmp.lt.s32.totalorder %s131, 31
        %s133 = scalar_select %p132, %s131, 31
        %s134 = smul.addr %s133, 6
        %s135 = smul.addr %s134, 4
        %s136 = scalar_lea.vmem %s0, %s135
        %s137 = smul.u32 16, %s9
      $region28: #{vit_encoder_forward.2} parent=23 // pred_fallthru
        _
    $region24: #{vit_encoder_forward.2} parent=5 // pred_fallthru
      _
    %p138 = scmp.le.s32.totalorder 1, %s9
    %p139 = scmp.lt.s32.totalorder %s9, 3
    %p140 = pnand %p138, %p139
    %p141 = pneg %p140
    // Predicated region
    $region29: #{vit_encoder_forward.2} parent=5 // pred_check
      _
    $region30: #{vit_encoder_forward.2} parent=5 // pred_check_branch
      %143 = sbr.rel (%p140) target = $region32
    $region31: #{vit_encoder_forward.2} parent=5 // pred_region
      %s144 = ssub.s32 %s9, 1
      %s145 = smul.u32 16, %s14
      %p146 = scmp.lt.s32.totalorder %s145, 31
      %s147 = scalar_select %p146, %s145, 31
      %s148 = smul.addr %s147, 6
      %s149 = smul.addr %s148, 4
      %s150 = scalar_lea.vmem %s0, %s149
      %p151 = pneg %p35
      %p152 = pneg %p32
      %p153 = pneg %p56
      %p154 = pneg %p53
      %p155 = pneg %p77
      %p156 = pneg %p74
      %p157 = pneg %p103
      %p158 = pneg %p100
      %s159 = smul.u32 16, %s14
      %p160 = scmp.lt.s32.totalorder %s159, 31
      %s161 = scalar_select %p160, %s159, 31
      %s162 = smul.addr %s161, 8
      %s163 = scalar_lea.vmem %s3, %s162
      %s164 = smul.u32 16, %s14
      %p165 = scmp.lt.s32.totalorder %s164, 31
      %s166 = scalar_select %p165, %s164, 31
      %s167 = smul.addr %s166, 6
      %s168 = smul.addr %s167, 4
      %s169 = scalar_lea.vmem %s0, %s168
      %s170 = smul.u32 16, %s14
      %s171 = smul.u32 16, %s14
      %p172 = scmp.lt.s32.totalorder %s171, 31
      %s173 = scalar_select %p172, %s171, 31
      %s174 = smul.addr %s173, 8
      %s175 = scalar_lea.vmem %s3, %s174
      %s176 = smul.u32 16, %s14
      %v178 = vld [vmem:[%s169] sm:$0xff]
      %v179 = vld [vmem:[%s169 + $0x8] sm:$0xff]
      %v180 = vld [vmem:[%s169 + $0x10] sm:$0xff]
      %v181 = vld [vmem:[%s169 + $0x18] sm:$0xff]
      %v182 = vld [vmem:[%s169 + $0x20] sm:$0xff]
      %v183 = vld [vmem:[%s169 + $0x28] sm:$0xff]
      %v184 = vld [vmem:[%s169 + $0x30] sm:$0xff]
      %v185 = vld [vmem:[%s169 + $0x38] sm:$0xff]
      %v186 = vld [vmem:[%s169 + $0x40] sm:$0xff]
      %v187 = vld [vmem:[%s169 + $0x48] sm:$0xff]
      %v188 = vld [vmem:[%s169 + $0x50] sm:$0xff]
      %v189 = vld [vmem:[%s169 + $0x58] sm:$0xff]
      %v190 = vld [vmem:[%s169 + $0x60] sm:$0xff]
      %v191 = vld [vmem:[%s169 + $0x68] sm:$0xff]
      %v192 = vld [vmem:[%s169 + $0x70] sm:$0xff]
      %v193 = vld [vmem:[%s169 + $0x78] sm:$0xff]
      %v194 = vld [vmem:[%s169 + $0x80] sm:$0xff]
      %v195 = vld [vmem:[%s169 + $0x88] sm:$0xff]
      %v196 = vld [vmem:[%s169 + $0x90] sm:$0xff]
      %v197 = vld [vmem:[%s169 + $0x98] sm:$0xff]
      %v198 = vld [vmem:[%s169 + $0xa0] sm:$0xff]
      %v199 = vld [vmem:[%s169 + $0xa8] sm:$0xff]
      %v200 = vld [vmem:[%s169 + $0xb0] sm:$0xff]
      %v201 = vld [vmem:[%s169 + $0xb8] sm:$0xff]
      %v202 = vld [vmem:[%s169 + $0xc0] sm:$0xff]
      %v203 = vld [vmem:[%s169 + $0xc8] sm:$0xff]
      %v204 = vld [vmem:[%s169 + $0xd0] sm:$0xff]
      %v205 = vld [vmem:[%s169 + $0xd8] sm:$0xff]
      %v206 = vld [vmem:[%s169 + $0xe0] sm:$0xff]
      %v207 = vld [vmem:[%s169 + $0xe8] sm:$0xff]
      %v208 = vld [vmem:[%s169 + $0xf0] sm:$0xff]
      %v209 = vld [vmem:[%s169 + $0xf8] sm:$0xff]
      %v210 = vld [vmem:[%s169 + $0x100] sm:$0xff]
      %v211 = vld [vmem:[%s169 + $0x108] sm:$0xff]
      %v212 = vld [vmem:[%s169 + $0x110] sm:$0xff]
      %v213 = vld [vmem:[%s169 + $0x118] sm:$0xff]
      %v214 = vld [vmem:[%s169 + $0x120] sm:$0xff]
      %v215 = vld [vmem:[%s169 + $0x128] sm:$0xff]
      %v216 = vld [vmem:[%s169 + $0x130] sm:$0xff]
      %v217 = vld [vmem:[%s169 + $0x138] sm:$0xff]
      %v218 = vld [vmem:[%s169 + $0x140] sm:$0xff]
      %v219 = vld [vmem:[%s169 + $0x148] sm:$0xff]
      %v220 = vld [vmem:[%s169 + $0x150] sm:$0xff]
      %v221 = vld [vmem:[%s169 + $0x158] sm:$0xff]
      %v222 = vld [vmem:[%s169 + $0x160] sm:$0xff]
      %v223 = vld [vmem:[%s169 + $0x168] sm:$0xff]
      %v224 = vld [vmem:[%s169 + $0x170] sm:$0xff]
      %v225 = vld [vmem:[%s169 + $0x178] sm:$0xff]
      %v226 = vld [vmem:[%s1] sm:$0xf]
      %v227 = vld [vmem:[%s1 + $0x4] sm:$0xf]
      %v228 = vld [vmem:[%s1 + $0x8] sm:$0xf]
      %v229 = vld [vmem:[%s1 + $0xc] sm:$0xf]
      %v230 = vld [vmem:[%s1 + $0x10] sm:$0xf]
      %v231 = vld [vmem:[%s1 + $0x14] sm:$0xf]
      %v232 = vld [vmem:[%s1 + $0x18] sm:$0xf]
      %v233 = vld [vmem:[%s1 + $0x1c] sm:$0xf]
      %v234 = vld [vmem:[%s1 + $0x20] sm:$0xf]
      %v235 = vld [vmem:[%s1 + $0x24] sm:$0xf]
      %v236 = vld [vmem:[%s1 + $0x28] sm:$0xf]
      %v237 = vld [vmem:[%s1 + $0x2c] sm:$0xf]
      %v238 = vld [vmem:[%s1 + $0x30] sm:$0xf]
      %v239 = vld [vmem:[%s1 + $0x34] sm:$0xf]
      %v240 = vld [vmem:[%s1 + $0x38] sm:$0xf]
      %v241 = vld [vmem:[%s1 + $0x3c] sm:$0xf]
      %v242 = vld [vmem:[%s1 + $0x40] sm:$0xf]
      %v243 = vld [vmem:[%s1 + $0x44] sm:$0xf]
      %v244 = vld [vmem:[%s1 + $0x48] sm:$0xf]
      %v245 = vld [vmem:[%s1 + $0x4c] sm:$0xf]
      %v246 = vld [vmem:[%s1 + $0x50] sm:$0xf]
      %v247 = vld [vmem:[%s1 + $0x54] sm:$0xf]
      %v248 = vld [vmem:[%s1 + $0x58] sm:$0xf]
      %v249 = vld [vmem:[%s1 + $0x5c] sm:$0xf]
      %v250 = vld [vmem:[%s1 + $0x60] sm:$0xf]
      %v251 = vld [vmem:[%s1 + $0x64] sm:$0xf]
      %v252 = vld [vmem:[%s1 + $0x68] sm:$0xf]
      %v253 = vld [vmem:[%s1 + $0x6c] sm:$0xf]
      %v254 = vld [vmem:[%s1 + $0x70] sm:$0xf]
      %v255 = vld [vmem:[%s1 + $0x74] sm:$0xf]
      %v256 = vld [vmem:[%s1 + $0x78] sm:$0xf]
      %v257 = vld [vmem:[%s1 + $0x7c] sm:$0xf]
      %v258 = vld [vmem:[%s1 + $0x80] sm:$0xf]
      %v259 = vld [vmem:[%s1 + $0x84] sm:$0xf]
      %v260 = vld [vmem:[%s1 + $0x88] sm:$0xf]
      %v261 = vld [vmem:[%s1 + $0x8c] sm:$0xf]
      %v262 = vld [vmem:[%s1 + $0x90] sm:$0xf]
      %v263 = vld [vmem:[%s1 + $0x94] sm:$0xf]
      %v264 = vld [vmem:[%s1 + $0x98] sm:$0xf]
      %v265 = vld [vmem:[%s1 + $0x9c] sm:$0xf]
      %v266 = vld [vmem:[%s1 + $0xa0] sm:$0xf]
      %v267 = vld [vmem:[%s1 + $0xa4] sm:$0xf]
      %v268 = vld [vmem:[%s1 + $0xa8] sm:$0xf]
      %v269 = vld [vmem:[%s1 + $0xac] sm:$0xf]
      %v270 = vld [vmem:[%s1 + $0xb0] sm:$0xf]
      %v271 = vld [vmem:[%s1 + $0xb4] sm:$0xf]
      %v272 = vld [vmem:[%s1 + $0xb8] sm:$0xf]
      %v273 = vld [vmem:[%s1 + $0xbc] sm:$0xf]
      %v274 = vld [vmem:[%s1 + $0xc0] sm:$0xf]
      %v275 = vld [vmem:[%s1 + $0xc4] sm:$0xf]
      %v276 = vld [vmem:[%s1 + $0xc8] sm:$0xf]
      %v277 = vld [vmem:[%s1 + $0xcc] sm:$0xf]
      %v278 = vld [vmem:[%s1 + $0xd0] sm:$0xf]
      %v279 = vld [vmem:[%s1 + $0xd4] sm:$0xf]
      %v280 = vld [vmem:[%s1 + $0xd8] sm:$0xf]
      %v281 = vld [vmem:[%s1 + $0xdc] sm:$0xf]
      %v282 = vld [vmem:[%s1 + $0xe0] sm:$0xf]
      %v283 = vld [vmem:[%s1 + $0xe4] sm:$0xf]
      %v284 = vld [vmem:[%s1 + $0xe8] sm:$0xf]
      %v285 = vld [vmem:[%s1 + $0xec] sm:$0xf]
      %v286 = vld [vmem:[%s1 + $0xf0] sm:$0xf]
      %v287 = vld [vmem:[%s1 + $0xf4] sm:$0xf]
      %v288 = vld [vmem:[%s1 + $0xf8] sm:$0xf]
      %v289 = vld [vmem:[%s1 + $0xfc] sm:$0xf]
      %v290 = vld [vmem:[%s1 + $0x100] sm:$0xf]
      %v291 = vld [vmem:[%s1 + $0x104] sm:$0xf]
      %v292 = vld [vmem:[%s1 + $0x108] sm:$0xf]
      %v293 = vld [vmem:[%s1 + $0x10c] sm:$0xf]
      %v294 = vld [vmem:[%s1 + $0x110] sm:$0xf]
      %v295 = vld [vmem:[%s1 + $0x114] sm:$0xf]
      %v296 = vld [vmem:[%s1 + $0x118] sm:$0xf]
      %v297 = vld [vmem:[%s1 + $0x11c] sm:$0xf]
      %v298 = vld [vmem:[%s1 + $0x120] sm:$0xf]
      %v299 = vld [vmem:[%s1 + $0x124] sm:$0xf]
      %v300 = vld [vmem:[%s1 + $0x128] sm:$0xf]
      %v301 = vld [vmem:[%s1 + $0x12c] sm:$0xf]
      %v302 = vld [vmem:[%s1 + $0x130] sm:$0xf]
      %v303 = vld [vmem:[%s1 + $0x134] sm:$0xf]
      %v304 = vld [vmem:[%s1 + $0x138] sm:$0xf]
      %v305 = vld [vmem:[%s1 + $0x13c] sm:$0xf]
      %v306 = vld [vmem:[%s1 + $0x140] sm:$0xf]
      %v307 = vld [vmem:[%s1 + $0x144] sm:$0xf]
      %v308 = vld [vmem:[%s1 + $0x148] sm:$0xf]
      %v309 = vld [vmem:[%s1 + $0x14c] sm:$0xf]
      %v310 = vld [vmem:[%s1 + $0x150] sm:$0xf]
      %v311 = vld [vmem:[%s1 + $0x154] sm:$0xf]
      %v312 = vld [vmem:[%s1 + $0x158] sm:$0xf]
      %v313 = vld [vmem:[%s1 + $0x15c] sm:$0xf]
      %v314 = vld [vmem:[%s1 + $0x160] sm:$0xf]
      %v315 = vld [vmem:[%s1 + $0x164] sm:$0xf]
      %v316 = vld [vmem:[%s1 + $0x168] sm:$0xf]
      %v317 = vld [vmem:[%s1 + $0x16c] sm:$0xf]
      %v318 = vld [vmem:[%s1 + $0x170] sm:$0xf]
      %v319 = vld [vmem:[%s1 + $0x174] sm:$0xf]
      %v320 = vld [vmem:[%s1 + $0x178] sm:$0xf]
      %v321 = vld [vmem:[%s1 + $0x17c] sm:$0xf]
      %v322 = vld [vmem:[%s2] sm:$0xff]
      %v323 = vld [vmem:[%s2 + $0x8] sm:$0xff]
      %v324 = vld [vmem:[%s2 + $0x10] sm:$0xff]
      %v325 = vld [vmem:[%s2 + $0x18] sm:$0xff]
      %v326 = vld [vmem:[%s2 + $0x20] sm:$0xff]
      %v327 = vld [vmem:[%s2 + $0x28] sm:$0xff]
      %v328 = vld [vmem:[%s2 + $0x30] sm:$0xff]
      %v329 = vld [vmem:[%s2 + $0x38] sm:$0xff]
      %v330 = vld [vmem:[%s2 + $0x40] sm:$0xff]
      %v331 = vld [vmem:[%s2 + $0x48] sm:$0xff]
      %v332 = vld [vmem:[%s2 + $0x50] sm:$0xff]
      %v333 = vld [vmem:[%s2 + $0x58] sm:$0xff]
      %v334 = vld [vmem:[%s2 + $0x60] sm:$0xff]
      %v335 = vld [vmem:[%s2 + $0x68] sm:$0xff]
      %v336 = vld [vmem:[%s2 + $0x70] sm:$0xff]
      %v337 = vld [vmem:[%s2 + $0x78] sm:$0xff]
      %v386 = vunpack.c.l.b16 %v178
      %v387 = vunpack.c.h.b16 %v178
      %v388 = vunpack.c.l.b16 %v179
      %v389 = vunpack.c.h.b16 %v179
      %v390 = vunpack.c.l.b16 %v180
      %v391 = vunpack.c.h.b16 %v180
      %v392 = vunpack.c.l.b16 %v181
      %v393 = vunpack.c.h.b16 %v181
      %v394 = vunpack.c.l.b16 %v182
      %v395 = vunpack.c.h.b16 %v182
      %v396 = vunpack.c.l.b16 %v183
      %v397 = vunpack.c.h.b16 %v183
      %v398 = vunpack.c.l.b16 %v184
      %v399 = vunpack.c.h.b16 %v184
      %v400 = vunpack.c.l.b16 %v185
      %v401 = vunpack.c.h.b16 %v185
      %v402 = vunpack.c.l.b16 %v186
      %v403 = vunpack.c.h.b16 %v186
      %v404 = vunpack.c.l.b16 %v187
      %v405 = vunpack.c.h.b16 %v187
      %v406 = vunpack.c.l.b16 %v188
      %v407 = vunpack.c.h.b16 %v188
      %v408 = vunpack.c.l.b16 %v189
      %v409 = vunpack.c.h.b16 %v189
      %v410 = vunpack.c.l.b16 %v190
      %v411 = vunpack.c.h.b16 %v190
      %v412 = vunpack.c.l.b16 %v191
      %v413 = vunpack.c.h.b16 %v191
      %v414 = vunpack.c.l.b16 %v192
      %v415 = vunpack.c.h.b16 %v192
      %v416 = vunpack.c.l.b16 %v193
      %v417 = vunpack.c.h.b16 %v193
      %v418 = vunpack.c.l.b16 %v194
      %v419 = vunpack.c.h.b16 %v194
      %v420 = vunpack.c.l.b16 %v195
      %v421 = vunpack.c.h.b16 %v195
      %v422 = vunpack.c.l.b16 %v196
      %v423 = vunpack.c.h.b16 %v196
      %v424 = vunpack.c.l.b16 %v197
      %v425 = vunpack.c.h.b16 %v197
      %v426 = vunpack.c.l.b16 %v198
      %v427 = vunpack.c.h.b16 %v198
      %v428 = vunpack.c.l.b16 %v199
      %v429 = vunpack.c.h.b16 %v199
      %v430 = vunpack.c.l.b16 %v200
      %v431 = vunpack.c.h.b16 %v200
      %v432 = vunpack.c.l.b16 %v201
      %v433 = vunpack.c.h.b16 %v201
      %v434 = vunpack.c.l.b16 %v202
      %v435 = vunpack.c.h.b16 %v202
      %v436 = vunpack.c.l.b16 %v203
      %v437 = vunpack.c.h.b16 %v203
      %v438 = vunpack.c.l.b16 %v204
      %v439 = vunpack.c.h.b16 %v204
      %v440 = vunpack.c.l.b16 %v205
      %v441 = vunpack.c.h.b16 %v205
      %v442 = vunpack.c.l.b16 %v206
      %v443 = vunpack.c.h.b16 %v206
      %v444 = vunpack.c.l.b16 %v207
      %v445 = vunpack.c.h.b16 %v207
      %v446 = vunpack.c.l.b16 %v208
      %v447 = vunpack.c.h.b16 %v208
      %v448 = vunpack.c.l.b16 %v209
      %v449 = vunpack.c.h.b16 %v209
      %v450 = vunpack.c.l.b16 %v210
      %v451 = vunpack.c.h.b16 %v210
      %v452 = vunpack.c.l.b16 %v211
      %v453 = vunpack.c.h.b16 %v211
      %v454 = vunpack.c.l.b16 %v212
      %v455 = vunpack.c.h.b16 %v212
      %v456 = vunpack.c.l.b16 %v213
      %v457 = vunpack.c.h.b16 %v213
      %v458 = vunpack.c.l.b16 %v214
      %v459 = vunpack.c.h.b16 %v214
      %v460 = vunpack.c.l.b16 %v215
      %v461 = vunpack.c.h.b16 %v215
      %v462 = vunpack.c.l.b16 %v216
      %v463 = vunpack.c.h.b16 %v216
      %v464 = vunpack.c.l.b16 %v217
      %v465 = vunpack.c.h.b16 %v217
      %v466 = vunpack.c.l.b16 %v218
      %v467 = vunpack.c.h.b16 %v218
      %v468 = vunpack.c.l.b16 %v219
      %v469 = vunpack.c.h.b16 %v219
      %v470 = vunpack.c.l.b16 %v220
      %v471 = vunpack.c.h.b16 %v220
      %v472 = vunpack.c.l.b16 %v221
      %v473 = vunpack.c.h.b16 %v221
      %v474 = vunpack.c.l.b16 %v222
      %v475 = vunpack.c.h.b16 %v222
      %v476 = vunpack.c.l.b16 %v223
      %v477 = vunpack.c.h.b16 %v223
      %v478 = vunpack.c.l.b16 %v224
      %v479 = vunpack.c.h.b16 %v224
      %v480 = vunpack.c.l.b16 %v225
      %v481 = vunpack.c.h.b16 %v225
      %v482 = vpack.c.b16 %v392, %v386
      %v483 = vpack.c.b16 %v393, %v387
      %v484 = vpack.c.b16 %v394, %v388
      %v485 = vpack.c.b16 %v395, %v389
      %v486 = vpack.c.b16 %v396, %v390
      %v487 = vpack.c.b16 %v397, %v391
      %v488 = vpack.c.b16 %v404, %v398
      %v489 = vpack.c.b16 %v405, %v399
      %v490 = vpack.c.b16 %v406, %v400
      %v491 = vpack.c.b16 %v407, %v401
      %v492 = vpack.c.b16 %v408, %v402
      %v493 = vpack.c.b16 %v409, %v403
      %v494 = vpack.c.b16 %v416, %v410
      %v495 = vpack.c.b16 %v417, %v411
      %v496 = vpack.c.b16 %v418, %v412
      %v497 = vpack.c.b16 %v419, %v413
      %v498 = vpack.c.b16 %v420, %v414
      %v499 = vpack.c.b16 %v421, %v415
      %v500 = vpack.c.b16 %v428, %v422
      %v501 = vpack.c.b16 %v429, %v423
      %v502 = vpack.c.b16 %v430, %v424
      %v503 = vpack.c.b16 %v431, %v425
      %v504 = vpack.c.b16 %v432, %v426
      %v505 = vpack.c.b16 %v433, %v427
      %v506 = vpack.c.b16 %v440, %v434
      %v507 = vpack.c.b16 %v441, %v435
      %v508 = vpack.c.b16 %v442, %v436
      %v509 = vpack.c.b16 %v443, %v437
      %v510 = vpack.c.b16 %v444, %v438
      %v511 = vpack.c.b16 %v445, %v439
      %v512 = vpack.c.b16 %v452, %v446
      %v513 = vpack.c.b16 %v453, %v447
      %v514 = vpack.c.b16 %v454, %v448
      %v515 = vpack.c.b16 %v455, %v449
      %v516 = vpack.c.b16 %v456, %v450
      %v517 = vpack.c.b16 %v457, %v451
      %v518 = vpack.c.b16 %v464, %v458
      %v519 = vpack.c.b16 %v465, %v459
      %v520 = vpack.c.b16 %v466, %v460
      %v521 = vpack.c.b16 %v467, %v461
      %v522 = vpack.c.b16 %v468, %v462
      %v523 = vpack.c.b16 %v469, %v463
      %v524 = vpack.c.b16 %v476, %v470
      %v525 = vpack.c.b16 %v477, %v471
      %v526 = vpack.c.b16 %v478, %v472
      %v527 = vpack.c.b16 %v479, %v473
      %v528 = vpack.c.b16 %v480, %v474
      %v529 = vpack.c.b16 %v481, %v475
      %v674 = vunpack.c.l.b16 %v226
      %v675 = vunpack.c.l.b16 %v227
      %v676 = vunpack.c.l.b16 %v228
      %v677 = vunpack.c.l.b16 %v229
      %v678 = vunpack.c.l.b16 %v230
      %v679 = vunpack.c.l.b16 %v231
      %v680 = vunpack.c.l.b16 %v232
      %v681 = vunpack.c.l.b16 %v233
      %v682 = vunpack.c.l.b16 %v234
      %v683 = vunpack.c.l.b16 %v235
      %v684 = vunpack.c.l.b16 %v236
      %v685 = vunpack.c.l.b16 %v237
      %v686 = vunpack.c.l.b16 %v238
      %v687 = vunpack.c.l.b16 %v239
      %v688 = vunpack.c.l.b16 %v240
      %v689 = vunpack.c.l.b16 %v241
      %v690 = vunpack.c.l.b16 %v242
      %v691 = vunpack.c.l.b16 %v243
      %v692 = vunpack.c.l.b16 %v244
      %v693 = vunpack.c.l.b16 %v245
      %v694 = vunpack.c.l.b16 %v246
      %v695 = vunpack.c.l.b16 %v247
      %v696 = vunpack.c.l.b16 %v248
      %v697 = vunpack.c.l.b16 %v249
      %v698 = vunpack.c.l.b16 %v250
      %v699 = vunpack.c.l.b16 %v251
      %v700 = vunpack.c.l.b16 %v252
      %v701 = vunpack.c.l.b16 %v253
      %v702 = vunpack.c.l.b16 %v254
      %v703 = vunpack.c.l.b16 %v255
      %v704 = vunpack.c.l.b16 %v256
      %v705 = vunpack.c.l.b16 %v257
      %v706 = vunpack.c.l.b16 %v258
      %v707 = vunpack.c.l.b16 %v259
      %v708 = vunpack.c.l.b16 %v260
      %v709 = vunpack.c.l.b16 %v261
      %v710 = vunpack.c.l.b16 %v262
      %v711 = vunpack.c.l.b16 %v263
      %v712 = vunpack.c.l.b16 %v264
      %v713 = vunpack.c.l.b16 %v265
      %v714 = vunpack.c.l.b16 %v266
      %v715 = vunpack.c.l.b16 %v267
      %v716 = vunpack.c.l.b16 %v268
      %v717 = vunpack.c.l.b16 %v269
      %v718 = vunpack.c.l.b16 %v270
      %v719 = vunpack.c.l.b16 %v271
      %v720 = vunpack.c.l.b16 %v272
      %v721 = vunpack.c.l.b16 %v273
      %v722 = vunpack.c.l.b16 %v274
      %v723 = vunpack.c.l.b16 %v275
      %v724 = vunpack.c.l.b16 %v276
      %v725 = vunpack.c.l.b16 %v277
      %v726 = vunpack.c.l.b16 %v278
      %v727 = vunpack.c.l.b16 %v279
      %v728 = vunpack.c.l.b16 %v280
      %v729 = vunpack.c.l.b16 %v281
      %v730 = vunpack.c.l.b16 %v282
      %v731 = vunpack.c.l.b16 %v283
      %v732 = vunpack.c.l.b16 %v284
      %v733 = vunpack.c.l.b16 %v285
      %v734 = vunpack.c.l.b16 %v286
      %v735 = vunpack.c.l.b16 %v287
      %v736 = vunpack.c.l.b16 %v288
      %v737 = vunpack.c.l.b16 %v289
      %v738 = vunpack.c.l.b16 %v290
      %v739 = vunpack.c.l.b16 %v291
      %v740 = vunpack.c.l.b16 %v292
      %v741 = vunpack.c.l.b16 %v293
      %v742 = vunpack.c.l.b16 %v294
      %v743 = vunpack.c.l.b16 %v295
      %v744 = vunpack.c.l.b16 %v296
      %v745 = vunpack.c.l.b16 %v297
      %v746 = vunpack.c.l.b16 %v298
      %v747 = vunpack.c.l.b16 %v299
      %v748 = vunpack.c.l.b16 %v300
      %v749 = vunpack.c.l.b16 %v301
      %v750 = vunpack.c.l.b16 %v302
      %v751 = vunpack.c.l.b16 %v303
      %v752 = vunpack.c.l.b16 %v304
      %v753 = vunpack.c.l.b16 %v305
      %v754 = vunpack.c.l.b16 %v306
      %v755 = vunpack.c.l.b16 %v307
      %v756 = vunpack.c.l.b16 %v308
      %v757 = vunpack.c.l.b16 %v309
      %v758 = vunpack.c.l.b16 %v310
      %v759 = vunpack.c.l.b16 %v311
      %v760 = vunpack.c.l.b16 %v312
      %v761 = vunpack.c.l.b16 %v313
      %v762 = vunpack.c.l.b16 %v314
      %v763 = vunpack.c.l.b16 %v315
      %v764 = vunpack.c.l.b16 %v316
      %v765 = vunpack.c.l.b16 %v317
      %v766 = vunpack.c.l.b16 %v318
      %v767 = vunpack.c.l.b16 %v319
      %v768 = vunpack.c.l.b16 %v320
      %v769 = vunpack.c.l.b16 %v321
      %v770 = vpack.c.b16 %v675, %v674
      %v771 = vpack.c.b16 %v677, %v676
      %v772 = vpack.c.b16 %v679, %v678
      %v773 = vpack.c.b16 %v681, %v680
      %v774 = vpack.c.b16 %v683, %v682
      %v775 = vpack.c.b16 %v685, %v684
      %v776 = vpack.c.b16 %v687, %v686
      %v777 = vpack.c.b16 %v689, %v688
      %v778 = vpack.c.b16 %v691, %v690
      %v779 = vpack.c.b16 %v693, %v692
      %v780 = vpack.c.b16 %v695, %v694
      %v781 = vpack.c.b16 %v697, %v696
      %v782 = vpack.c.b16 %v699, %v698
      %v783 = vpack.c.b16 %v701, %v700
      %v784 = vpack.c.b16 %v703, %v702
      %v785 = vpack.c.b16 %v705, %v704
      %v786 = vpack.c.b16 %v707, %v706
      %v787 = vpack.c.b16 %v709, %v708
      %v788 = vpack.c.b16 %v711, %v710
      %v789 = vpack.c.b16 %v713, %v712
      %v790 = vpack.c.b16 %v715, %v714
      %v791 = vpack.c.b16 %v717, %v716
      %v792 = vpack.c.b16 %v719, %v718
      %v793 = vpack.c.b16 %v721, %v720
      %v794 = vpack.c.b16 %v723, %v722
      %v795 = vpack.c.b16 %v725, %v724
      %v796 = vpack.c.b16 %v727, %v726
      %v797 = vpack.c.b16 %v729, %v728
      %v798 = vpack.c.b16 %v731, %v730
      %v799 = vpack.c.b16 %v733, %v732
      %v800 = vpack.c.b16 %v735, %v734
      %v801 = vpack.c.b16 %v737, %v736
      %v802 = vpack.c.b16 %v739, %v738
      %v803 = vpack.c.b16 %v741, %v740
      %v804 = vpack.c.b16 %v743, %v742
      %v805 = vpack.c.b16 %v745, %v744
      %v806 = vpack.c.b16 %v747, %v746
      %v807 = vpack.c.b16 %v749, %v748
      %v808 = vpack.c.b16 %v751, %v750
      %v809 = vpack.c.b16 %v753, %v752
      %v810 = vpack.c.b16 %v755, %v754
      %v811 = vpack.c.b16 %v757, %v756
      %v812 = vpack.c.b16 %v759, %v758
      %v813 = vpack.c.b16 %v761, %v760
      %v814 = vpack.c.b16 %v763, %v762
      %v815 = vpack.c.b16 %v765, %v764
      %v816 = vpack.c.b16 %v767, %v766
      %v817 = vpack.c.b16 %v769, %v768
      %866 = vmatprep.subr.bf16.mxu0 0
      %867 = vmatpush1.bf16.msra.mxu0 %v777
      %868 = vmatprep.subr.bf16.mxu0 0
      %869 = vmatpush1.bf16.msra.mxu0 %v776
      %870 = vmatprep.subr.bf16.mxu0 0
      %871 = vmatpush1.bf16.msra.mxu0 %v775
      %872 = vmatprep.subr.bf16.mxu0 0
      %873 = vmatpush1.bf16.msra.mxu0 %v774
      %874 = vmatprep.subr.bf16.mxu0 0
      %875 = vmatpush1.bf16.msra.mxu0 %v773
      %876 = vmatprep.subr.bf16.mxu0 0
      %877 = vmatpush1.bf16.msra.mxu0 %v772
      %878 = vmatprep.subr.bf16.mxu0 0
      %879 = vmatpush1.bf16.msra.mxu0 %v771
      %880 = vmatprep.subr.bf16.mxu0 0
      %881 = vmatpush1.bf16.msra.mxu0 %v770
      %882 = vmatprep.subr.bf16.mxu0 0
      %883 = vmatpush2.bf16.msra.mxu0 %v785
      %884 = vmatprep.subr.bf16.mxu0 0
      %885 = vmatpush2.bf16.msra.mxu0 %v784
      %886 = vmatprep.subr.bf16.mxu0 0
      %887 = vmatpush2.bf16.msra.mxu0 %v783
      %888 = vmatprep.subr.bf16.mxu0 0
      %889 = vmatpush2.bf16.msra.mxu0 %v782
      %890 = vmatprep.subr.bf16.mxu0 0
      %891 = vmatpush2.bf16.msra.mxu0 %v781
      %892 = vmatprep.subr.bf16.mxu0 0
      %893 = vmatpush2.bf16.msra.mxu0 %v780
      %894 = vmatprep.subr.bf16.mxu0 0
      %895 = vmatpush2.bf16.msra.mxu0 %v779
      %896 = vmatprep.subr.bf16.mxu0 0
      %897 = vmatpush2.bf16.msra.mxu0 %v778
      %898 = vmatprep.mubr.bf16.mxu0 %v483
      %899 = vmatmul.mubr.bf16.gmra.mxu0 %v482
      %v900 = vpop.f32.mrf.mxu0
      %v901 = vadd.f32 %v322, %v900
      %v902 = vpop.f32.mrf.mxu0
      %v903 = vpop.f32.mrf.mxu0
      %v904 = vadd.f32 %v323, %v903
      %v905 = vpop.f32.mrf.mxu0
      %906 = vmatprep.mubr.bf16.mxu0 %v489
      %907 = vmatmul.mubr.bf16.gmra.mxu0 %v488
      %v908 = vpop.f32.mrf.mxu0
      %v909 = vadd.f32 %v324, %v908
      %v910 = vpop.f32.mrf.mxu0
      %v911 = vpop.f32.mrf.mxu0
      %v912 = vadd.f32 %v325, %v911
      %v913 = vpop.f32.mrf.mxu0
      %914 = vmatprep.mubr.bf16.mxu0 %v495
      %915 = vmatmul.mubr.bf16.gmra.mxu0 %v494
      %v916 = vpop.f32.mrf.mxu0
      %v917 = vadd.f32 %v326, %v916
      %v918 = vpop.f32.mrf.mxu0
      %v919 = vpop.f32.mrf.mxu0
      %v920 = vadd.f32 %v327, %v919
      %v921 = vpop.f32.mrf.mxu0
      %922 = vmatprep.mubr.bf16.mxu0 %v501
      %923 = vmatmul.mubr.bf16.gmra.mxu0 %v500
      %v924 = vpop.f32.mrf.mxu0
      %v925 = vadd.f32 %v328, %v924
      %v926 = vpop.f32.mrf.mxu0
      %v927 = vpop.f32.mrf.mxu0
      %v928 = vadd.f32 %v329, %v927
      %v929 = vpop.f32.mrf.mxu0
      %930 = vmatprep.mubr.bf16.mxu0 %v507
      %931 = vmatmul.mubr.bf16.gmra.mxu0 %v506
      %v932 = vpop.f32.mrf.mxu0
      %v933 = vadd.f32 %v330, %v932
      %v934 = vpop.f32.mrf.mxu0
      %v935 = vpop.f32.mrf.mxu0
      %v936 = vadd.f32 %v331, %v935
      %v937 = vpop.f32.mrf.mxu0
      %938 = vmatprep.mubr.bf16.mxu0 %v513
      %939 = vmatmul.mubr.bf16.gmra.mxu0 %v512
      %v940 = vpop.f32.mrf.mxu0
      %v941 = vadd.f32 %v332, %v940
      %v942 = vpop.f32.mrf.mxu0
      %v943 = vpop.f32.mrf.mxu0
      %v944 = vadd.f32 %v333, %v943
      %v945 = vpop.f32.mrf.mxu0
      %946 = vmatprep.mubr.bf16.mxu0 %v519
      %947 = vmatmul.mubr.bf16.gmra.mxu0 %v518
      %v948 = vpop.f32.mrf.mxu0
      %v949 = vadd.f32 %v334, %v948
      %v950 = vpop.f32.mrf.mxu0
      %v951 = vpop.f32.mrf.mxu0
      %v952 = vadd.f32 %v335, %v951
      %v953 = vpop.f32.mrf.mxu0
      %954 = vmatprep.mubr.bf16.mxu0 %v525
      %955 = vmatmul.mubr.bf16.gmra.mxu0 %v524
      %v956 = vpop.f32.mrf.mxu0
      %v957 = vadd.f32 %v336, %v956
      %v958 = vpop.f32.mrf.mxu0
      %v959 = vpop.f32.mrf.mxu0
      %v960 = vadd.f32 %v337, %v959
      %v961 = vpop.f32.mrf.mxu0
      %962 = vdwg.mxu0
      %963 = vmatprep.subr.bf16.mxu0 0
      %964 = vmatpush1.bf16.msra.mxu0 %v793
      %965 = vmatprep.subr.bf16.mxu0 0
      %966 = vmatpush1.bf16.msra.mxu0 %v792
      %967 = vmatprep.subr.bf16.mxu0 0
      %968 = vmatpush1.bf16.msra.mxu0 %v791
      %969 = vmatprep.subr.bf16.mxu0 0
      %970 = vmatpush1.bf16.msra.mxu0 %v790
      %971 = vmatprep.subr.bf16.mxu0 0
      %972 = vmatpush1.bf16.msra.mxu0 %v789
      %973 = vmatprep.subr.bf16.mxu0 0
      %974 = vmatpush1.bf16.msra.mxu0 %v788
      %975 = vmatprep.subr.bf16.mxu0 0
      %976 = vmatpush1.bf16.msra.mxu0 %v787
      %977 = vmatprep.subr.bf16.mxu0 0
      %978 = vmatpush1.bf16.msra.mxu0 %v786
      %979 = vmatprep.subr.bf16.mxu0 0
      %980 = vmatpush2.bf16.msra.mxu0 %v801
      %981 = vmatprep.subr.bf16.mxu0 0
      %982 = vmatpush2.bf16.msra.mxu0 %v800
      %983 = vmatprep.subr.bf16.mxu0 0
      %984 = vmatpush2.bf16.msra.mxu0 %v799
      %985 = vmatprep.subr.bf16.mxu0 0
      %986 = vmatpush2.bf16.msra.mxu0 %v798
      %987 = vmatprep.subr.bf16.mxu0 0
      %988 = vmatpush2.bf16.msra.mxu0 %v797
      %989 = vmatprep.subr.bf16.mxu0 0
      %990 = vmatpush2.bf16.msra.mxu0 %v796
      %991 = vmatprep.subr.bf16.mxu0 0
      %992 = vmatpush2.bf16.msra.mxu0 %v795
      %993 = vmatprep.subr.bf16.mxu0 0
      %994 = vmatpush2.bf16.msra.mxu0 %v794
      %995 = vmatprep.mubr.bf16.mxu0 %v485
      %996 = vmatmul.mubr.bf16.gmra.mxu0 %v484
      %v997 = vpop.f32.mrf.mxu0
      %v998 = vadd.f32 %v901, %v997
      %v999 = vpop.f32.mrf.mxu0
      %v1000 = vpop.f32.mrf.mxu0
      %v1001 = vadd.f32 %v904, %v1000
      %v1002 = vpop.f32.mrf.mxu0
      %1003 = vmatprep.mubr.bf16.mxu0 %v491
      %1004 = vmatmul.mubr.bf16.gmra.mxu0 %v490
      %v1005 = vpop.f32.mrf.mxu0
      %v1006 = vadd.f32 %v909, %v1005
      %v1007 = vpop.f32.mrf.mxu0
      %v1008 = vpop.f32.mrf.mxu0
      %v1009 = vadd.f32 %v912, %v1008
      %v1010 = vpop.f32.mrf.mxu0
      %1011 = vmatprep.mubr.bf16.mxu0 %v497
      %1012 = vmatmul.mubr.bf16.gmra.mxu0 %v496
      %v1013 = vpop.f32.mrf.mxu0
      %v1014 = vadd.f32 %v917, %v1013
      %v1015 = vpop.f32.mrf.mxu0
      %v1016 = vpop.f32.mrf.mxu0
      %v1017 = vadd.f32 %v920, %v1016
      %v1018 = vpop.f32.mrf.mxu0
      %1019 = vmatprep.mubr.bf16.mxu0 %v503
      %1020 = vmatmul.mubr.bf16.gmra.mxu0 %v502
      %v1021 = vpop.f32.mrf.mxu0
      %v1022 = vadd.f32 %v925, %v1021
      %v1023 = vpop.f32.mrf.mxu0
      %v1024 = vpop.f32.mrf.mxu0
      %v1025 = vadd.f32 %v928, %v1024
      %v1026 = vpop.f32.mrf.mxu0
      %1027 = vmatprep.mubr.bf16.mxu0 %v509
      %1028 = vmatmul.mubr.bf16.gmra.mxu0 %v508
      %v1029 = vpop.f32.mrf.mxu0
      %v1030 = vadd.f32 %v933, %v1029
      %v1031 = vpop.f32.mrf.mxu0
      %v1032 = vpop.f32.mrf.mxu0
      %v1033 = vadd.f32 %v936, %v1032
      %v1034 = vpop.f32.mrf.mxu0
      %1035 = vmatprep.mubr.bf16.mxu0 %v515
      %1036 = vmatmul.mubr.bf16.gmra.mxu0 %v514
      %v1037 = vpop.f32.mrf.mxu0
      %v1038 = vadd.f32 %v941, %v1037
      %v1039 = vpop.f32.mrf.mxu0
      %v1040 = vpop.f32.mrf.mxu0
      %v1041 = vadd.f32 %v944, %v1040
      %v1042 = vpop.f32.mrf.mxu0
      %1043 = vmatprep.mubr.bf16.mxu0 %v521
      %1044 = vmatmul.mubr.bf16.gmra.mxu0 %v520
      %v1045 = vpop.f32.mrf.mxu0
      %v1046 = vadd.f32 %v949, %v1045
      %v1047 = vpop.f32.mrf.mxu0
      %v1048 = vpop.f32.mrf.mxu0
      %v1049 = vadd.f32 %v952, %v1048
      %v1050 = vpop.f32.mrf.mxu0
      %1051 = vmatprep.mubr.bf16.mxu0 %v527
      %1052 = vmatmul.mubr.bf16.gmra.mxu0 %v526
      %v1053 = vpop.f32.mrf.mxu0
      %v1054 = vadd.f32 %v957, %v1053
      %v1055 = vpop.f32.mrf.mxu0
      %v1056 = vpop.f32.mrf.mxu0
      %v1057 = vadd.f32 %v960, %v1056
      %v1058 = vpop.f32.mrf.mxu0
      %1059 = vdwg.mxu0
      %1060 = vmatprep.subr.bf16.mxu0 0
      %1061 = vmatpush1.bf16.msra.mxu0 %v809
      %1062 = vmatprep.subr.bf16.mxu0 0
      %1063 = vmatpush1.bf16.msra.mxu0 %v808
      %1064 = vmatprep.subr.bf16.mxu0 0
      %1065 = vmatpush1.bf16.msra.mxu0 %v807
      %1066 = vmatprep.subr.bf16.mxu0 0
      %1067 = vmatpush1.bf16.msra.mxu0 %v806
      %1068 = vmatprep.subr.bf16.mxu0 0
      %1069 = vmatpush1.bf16.msra.mxu0 %v805
      %1070 = vmatprep.subr.bf16.mxu0 0
      %1071 = vmatpush1.bf16.msra.mxu0 %v804
      %1072 = vmatprep.subr.bf16.mxu0 0
      %1073 = vmatpush1.bf16.msra.mxu0 %v803
      %1074 = vmatprep.subr.bf16.mxu0 0
      %1075 = vmatpush1.bf16.msra.mxu0 %v802
      %1076 = vmatprep.subr.bf16.mxu0 0
      %1077 = vmatpush2.bf16.msra.mxu0 %v817
      %1078 = vmatprep.subr.bf16.mxu0 0
      %1079 = vmatpush2.bf16.msra.mxu0 %v816
      %1080 = vmatprep.subr.bf16.mxu0 0
      %1081 = vmatpush2.bf16.msra.mxu0 %v815
      %1082 = vmatprep.subr.bf16.mxu0 0
      %1083 = vmatpush2.bf16.msra.mxu0 %v814
      %1084 = vmatprep.subr.bf16.mxu0 0
      %1085 = vmatpush2.bf16.msra.mxu0 %v813
      %1086 = vmatprep.subr.bf16.mxu0 0
      %1087 = vmatpush2.bf16.msra.mxu0 %v812
      %1088 = vmatprep.subr.bf16.mxu0 0
      %1089 = vmatpush2.bf16.msra.mxu0 %v811
      %1090 = vmatprep.subr.bf16.mxu0 0
      %1091 = vmatpush2.bf16.msra.mxu0 %v810
      %1092 = vmatprep.mubr.bf16.mxu0 %v487
      %1093 = vmatmul.mubr.bf16.gmra.mxu0 %v486
      %v1094 = vpop.f32.mrf.mxu0
      %v1095 = vadd.f32 %v998, %v1094
      %v1096 = vpop.f32.mrf.mxu0
      %v1097 = vpop.f32.mrf.mxu0
      %v1098 = vadd.f32 %v1001, %v1097
      %v1099 = vpop.f32.mrf.mxu0
      %1100 = vmatprep.mubr.bf16.mxu0 %v493
      %1101 = vmatmul.mubr.bf16.gmra.mxu0 %v492
      %v1102 = vpop.f32.mrf.mxu0
      %v1103 = vadd.f32 %v1006, %v1102
      %v1104 = vpop.f32.mrf.mxu0
      %v1105 = vpop.f32.mrf.mxu0
      %v1106 = vadd.f32 %v1009, %v1105
      %v1107 = vpop.f32.mrf.mxu0
      %1108 = vmatprep.mubr.bf16.mxu0 %v499
      %1109 = vmatmul.mubr.bf16.gmra.mxu0 %v498
      %v1110 = vpop.f32.mrf.mxu0
      %v1111 = vadd.f32 %v1014, %v1110
      %v1112 = vpop.f32.mrf.mxu0
      %v1113 = vpop.f32.mrf.mxu0
      %v1114 = vadd.f32 %v1017, %v1113
      %v1115 = vpop.f32.mrf.mxu0
      %1116 = vmatprep.mubr.bf16.mxu0 %v505
      %1117 = vmatmul.mubr.bf16.gmra.mxu0 %v504
      %v1118 = vpop.f32.mrf.mxu0
      %v1119 = vadd.f32 %v1022, %v1118
      %v1120 = vpop.f32.mrf.mxu0
      %v1121 = vpop.f32.mrf.mxu0
      %v1122 = vadd.f32 %v1025, %v1121
      %v1123 = vpop.f32.mrf.mxu0
      %1124 = vmatprep.mubr.bf16.mxu0 %v511
      %1125 = vmatmul.mubr.bf16.gmra.mxu0 %v510
      %v1126 = vpop.f32.mrf.mxu0
      %v1127 = vadd.f32 %v1030, %v1126
      %v1128 = vpop.f32.mrf.mxu0
      %v1129 = vpop.f32.mrf.mxu0
      %v1130 = vadd.f32 %v1033, %v1129
      %v1131 = vpop.f32.mrf.mxu0
      %1132 = vmatprep.mubr.bf16.mxu0 %v517
      %1133 = vmatmul.mubr.bf16.gmra.mxu0 %v516
      %v1134 = vpop.f32.mrf.mxu0
      %v1135 = vadd.f32 %v1038, %v1134
      %v1136 = vpop.f32.mrf.mxu0
      %v1137 = vpop.f32.mrf.mxu0
      %v1138 = vadd.f32 %v1041, %v1137
      %v1139 = vpop.f32.mrf.mxu0
      %1140 = vmatprep.mubr.bf16.mxu0 %v523
      %1141 = vmatmul.mubr.bf16.gmra.mxu0 %v522
      %v1142 = vpop.f32.mrf.mxu0
      %v1143 = vadd.f32 %v1046, %v1142
      %v1144 = vpop.f32.mrf.mxu0
      %v1145 = vpop.f32.mrf.mxu0
      %v1146 = vadd.f32 %v1049, %v1145
      %v1147 = vpop.f32.mrf.mxu0
      %1148 = vmatprep.mubr.bf16.mxu0 %v529
      %1149 = vmatmul.mubr.bf16.gmra.mxu0 %v528
      %v1150 = vpop.f32.mrf.mxu0
      %v1151 = vadd.f32 %v1054, %v1150
      %v1152 = vpop.f32.mrf.mxu0
      %v1153 = vpop.f32.mrf.mxu0
      %v1154 = vadd.f32 %v1057, %v1153
      %v1155 = vpop.f32.mrf.mxu0
      %1156 = vdwg.mxu0
      %vm1157 = vcmask 523264
      %1158 = vst.msk [vmem:[%s175] sm:$0xff] %vm1157, %v1095
      %1159 = vst.msk [vmem:[%s175 + $0x8] sm:$0xff] %vm1157, %v1098
      %1160 = vst.msk [vmem:[%s175 + $0x10] sm:$0xff] %vm1157, %v1103
      %1161 = vst.msk [vmem:[%s175 + $0x18] sm:$0xff] %vm1157, %v1106
      %1162 = vst.msk [vmem:[%s175 + $0x20] sm:$0xff] %vm1157, %v1111
      %1163 = vst.msk [vmem:[%s175 + $0x28] sm:$0xff] %vm1157, %v1114
      %1164 = vst.msk [vmem:[%s175 + $0x30] sm:$0xff] %vm1157, %v1119
      %1165 = vst.msk [vmem:[%s175 + $0x38] sm:$0xff] %vm1157, %v1122
      %1166 = vst.msk [vmem:[%s175 + $0x40] sm:$0xff] %vm1157, %v1127
      %1167 = vst.msk [vmem:[%s175 + $0x48] sm:$0xff] %vm1157, %v1130
      %1168 = vst.msk [vmem:[%s175 + $0x50] sm:$0xff] %vm1157, %v1135
      %1169 = vst.msk [vmem:[%s175 + $0x58] sm:$0xff] %vm1157, %v1138
      %1170 = vst.msk [vmem:[%s175 + $0x60] sm:$0xff] %vm1157, %v1143
      %1171 = vst.msk [vmem:[%s175 + $0x68] sm:$0xff] %vm1157, %v1146
      %1172 = vst.msk [vmem:[%s175 + $0x70] sm:$0xff] %vm1157, %v1151
      %1173 = vst.msk [vmem:[%s175 + $0x78] sm:$0xff] %vm1157, %v1154
      %s1174 = smul.u32 16, %s14
      %p1175 = scmp.lt.s32.totalorder %s1174, 31
      %s1176 = scalar_select %p1175, %s1174, 31
      %s1177 = smul.addr %s1176, 8
      %s1178 = scalar_lea.vmem %s3, %s1177
      // Predicated region
      $region33: #{vit_encoder_forward.2} parent=31 // pred_check
        %p1179 = pneg %p100
      $region34: #{vit_encoder_forward.2} parent=31 // pred_check_branch
        %1181 = sbr.rel (%p1179) target = $region36
      $region35: #{vit_encoder_forward.2} parent=31 // pred_region
        %s1182 = smul.u32 16, %s14
      $region36: #{vit_encoder_forward.2} parent=31 // pred_fallthru
        _
    $region32: #{vit_encoder_forward.2} parent=5 // pred_fallthru
      _
    %p1183 = scmp.le.s32.totalorder 2, %s9
    // Predicated region
    $region37: #{vit_encoder_forward.2} parent=5 // pred_check
      %p1184 = pneg %p1183
    $region38: #{vit_encoder_forward.2} parent=5 // pred_check_branch
      %1186 = sbr.rel (%p1184) target = $region40
    $region39: #{vit_encoder_forward.2} parent=5 // pred_region
      %s1187 = ssub.s32 %s9, 2
      // Predicated region
      $region41: #{vit_encoder_forward.2} parent=39 // pred_check
        %p1188 = pneg %p106
      $region42: #{vit_encoder_forward.2} parent=39 // pred_check_branch
        %1190 = sbr.rel (%p1188) target = $region44
      $region43: #{vit_encoder_forward.2} parent=39 // pred_region
        %s1191 = smul.u32 16, %s15
        %p1192 = scmp.lt.s32.totalorder %s1191, 31
        %s1193 = scalar_select %p1192, %s1191, 31
        %s1194 = smul.addr %s1193, 8
        %s1195 = scalar_lea.vmem %s3, %s1194
      $region44: #{vit_encoder_forward.2} parent=39 // pred_fallthru
        _
    $region40: #{vit_encoder_forward.2} parent=5 // pred_fallthru
      _
  $region6: #{vit_encoder_forward.2} parent=0 // loop_footer
    %s13 = sadd.s32 1, %s9
  $region7: #{vit_encoder_forward.2} parent=0 // loop_footer_branch
    %8 = sbr.rel target = $region3
  $region8: #{vit_encoder_forward.2} parent=0 // loop_exit
    _

// kernel: vit_encoder_forward.3
$region0: #{vit_encoder_forward.3}
  #allocation0 [shape = 'u32[]', space=smem, size = 0x4, offset = 0x4, fixed_abs, tag = 'smem constant byte address 0x4 - core index']
  #allocation1 [shape = 'u32[144,128]{1,0:T(1,128)}', space=vmem, size = 0x12000, scoped, tag = 'internal scratch']
  #allocation2 [shape = 'f32[128,64]{1,0:T(8,128)}', space=vmem, size = 0x10000, scoped, tag = 'scratch operand']
  %s0 = inlined_call_operand.vmem [shape: f32[256,64], index: 0, kind: input, shape index: {}]
  %s1 = inlined_call_operand.vmem [shape: f32[2,1,64], index: 1, kind: input, shape index: {}]
  %s2 = inlined_call_operand.vmem [shape: f32[2,1,64], index: 2, kind: input, shape index: {}]
  %s3 = inlined_call_operand.vmem [shape: bf16[2,64,192], index: 3, kind: input, shape index: {}]
  %s4 = inlined_call_operand.vmem [shape: f32[2,1,192], index: 4, kind: input, shape index: {}]
  %s5 = inlined_call_operand.vmem [shape: bf16[2,64,64], index: 5, kind: input, shape index: {}]
  %s6 = inlined_call_operand.vmem [shape: f32[2,1,64], index: 6, kind: input, shape index: {}]
  %s7 = inlined_call_operand.vmem [shape: f32[2,1,64], index: 7, kind: input, shape index: {}]
  %s8 = inlined_call_operand.vmem [shape: f32[2,1,64], index: 8, kind: input, shape index: {}]
  %s9 = inlined_call_operand.vmem [shape: bf16[2,64,128], index: 9, kind: input, shape index: {}]
  %s10 = inlined_call_operand.vmem [shape: f32[2,1,128], index: 10, kind: input, shape index: {}]
  %s11 = inlined_call_operand.vmem [shape: bf16[2,128,64], index: 11, kind: input, shape index: {}]
  %s12 = inlined_call_operand.vmem [shape: f32[2,1,64], index: 12, kind: input, shape index: {}]
  %s13 = inlined_call_operand.vmem [shape: f32[1,64], index: 13, kind: input, shape index: {}]
  %s14 = inlined_call_operand.vmem [shape: f32[1,64], index: 14, kind: input, shape index: {}]
  %s15 = inlined_call_operand.hbm [shape: f32[32,64], index: 15, kind: output, shape index: {}]
  %s16 = sld [smem:[#allocation0]]
  $region101: #{vit_encoder_forward.3} parent=0
    _
  %s18 = ssub.s32 1, %s16
  %s19 = scalar_select 0, %s18, %s16
  $region1: #{vit_encoder_forward.3} parent=0
    #allocation3 [shape = 'u8[16384]{0}', space=vmem, size = 0x4000, scoped, tag = 'output window, operand 0']
    #allocation4 [shape = 's32[2]{0}', space=sflag, size = 0x8, scoped, tag = 'scoped memory for vit_encoder_forward.3']
    %20 = vsyncpa [#allocation4], 0
    %s21 = scalar_lea.sflag [#allocation4], 1
    %22 = vsyncpa %s21, 0
    loop: start=0, step=1, limit=6
    $region2: #{vit_encoder_forward.3} parent=1 // loop_pre_header
      _
    $region3: #{vit_encoder_forward.3} parent=1 // loop_header
      %s24 = sphi 0, %s28
      %p25 = scmp.ge.s32.totalorder %s24, 6
      %s31 = sphi 0, %s43
      %s32 = sphi 0, %s39
      %s33 = sphi 0, %s31
      %s34 = sphi 0, %s32
      %s35 = sphi 0, %s33
      %s36 = sphi 0, %s34
      %s46 = sphi 0, %s48
      %s49 = sphi 0, %s46
      %s50 = sphi 0, %s49
      %s66 = sphi 0, %s50
      %s72 = sphi 0, %s74
      %s75 = sphi 0, %s72
      %s76 = sphi 0, %s75
      %s92 = sphi 0, %s76
      %s98 = sphi 0, %s100
      %s101 = sphi 0, %s98
      %s102 = sphi 0, %s101
      %s118 = sphi 0, %s102
      %s124 = sphi 0, %s126
      %s127 = sphi 0, %s124
      %s128 = sphi 0, %s127
      %s144 = sphi 0, %s128
      %s150 = sphi 0, %s152
      %s153 = sphi 0, %s150
      %s154 = sphi 0, %s153
      %s170 = sphi 0, %s154
      %s176 = sphi 0, %s178
      %s179 = sphi 0, %s176
      %s180 = sphi 0, %s179
      %s196 = sphi 0, %s180
      %s202 = sphi 0, %s204
      %s205 = sphi 0, %s202
      %s206 = sphi 0, %s205
      %s222 = sphi 0, %s206
      %s228 = sphi 0, %s230
      %s231 = sphi 0, %s228
      %s232 = sphi 0, %s231
      %s248 = sphi 0, %s232
      %s254 = sphi 0, %s256
      %s257 = sphi 0, %s254
      %s258 = sphi 0, %s257
      %s274 = sphi 0, %s258
      %s280 = sphi 0, %s282
      %s283 = sphi 0, %s280
      %s284 = sphi 0, %s283
      %s300 = sphi 0, %s284
      %s306 = sphi 0, %s308
      %s309 = sphi 0, %s306
      %s310 = sphi 0, %s309
      %s326 = sphi 0, %s310
      %s332 = sphi 0, %s334
      %s335 = sphi 0, %s332
      %s336 = sphi 0, %s335
      %s352 = sphi 0, %s336
      %s358 = sphi 0, %s360
      %s361 = sphi 0, %s358
      %s362 = sphi 0, %s361
      %s378 = sphi 0, %s362
      %s382 = sphi 0, %s382
      %s384 = sphi 0, %s382
      %s385 = sphi 0, %s384
      %s399 = sphi 0, %s385
      %s403 = sphi 0, %s403
      %s405 = sphi 0, %s403
      %s406 = sphi 0, %s405
      %s420 = sphi 0, %s406
      %s426 = sphi 0, %s428
      %s429 = sphi 0, %s426
      %s430 = sphi 0, %s429
      %s446 = sphi 0, %s430
    $region4: #{vit_encoder_forward.3} parent=1 // loop_header_branch
      %27 = sbr.rel (%p25) target = $region8
    $region5: #{vit_encoder_forward.3} parent=1 // loop_body
      %s29 = ssub.s32 %s24, 1
      %s30 = ssub.s32 %s24, 2
      %s37 = sadd.s32 1, %s32
      %p38 = scmp.ge.s32.totalorder %s37, 2
      %s39 = scalar_select %p38, 0, %s37
      %s40 = sadd.s32 1, %s31
      %s41 = scalar_select %p38, %s40, %s31
      %p42 = scmp.ge.s32.totalorder %s41, 2
      %s43 = scalar_select %p42, 0, %s41
      %s44 = ssub.s32 %s31, %s43
      %p45 = scmp.eq.s32.totalorder %s44, 0
      %s47 = sadd.s32 %s46, 1
      %s48 = scalar_select %p45, %s46, %s47
      %p51 = pneg %p45
      %p52 = scmp.eq.s32.totalorder %s24, 3
      %p53 = por %p51, %p52
      %p54 = scmp.ne.s32.totalorder %s46, %s49
      %p55 = scmp.eq.s32.totalorder %s24, 0
      %p56 = por %p54, %p55
      %p57 = scmp.ne.s32.totalorder %s46, %s49
      %p58 = scmp.eq.s32.totalorder %s29, 3
      %p59 = por %p57, %p58
      %p60 = scmp.ne.s32.totalorder %s49, %s50
      %p61 = scmp.eq.s32.totalorder %s29, 0
      %p62 = por %p60, %p61
      %p63 = scmp.ne.s32.totalorder %s49, %s50
      %p64 = scmp.eq.s32.totalorder %s30, 3
      %p65 = por %p63, %p64
      %p67 = scmp.ne.s32.totalorder %s50, %s66
      %p68 = scmp.eq.s32.totalorder %s30, 0
      %p69 = por %p67, %p68
      %s70 = ssub.s32 %s32, %s39
      %p71 = scmp.eq.s32.totalorder %s70, 0
      %s73 = sadd.s32 %s72, 1
      %s74 = scalar_select %p71, %s72, %s73
      %p77 = pneg %p71
      %p78 = scmp.eq.s32.totalorder %s24, 3
      %p79 = por %p77, %p78
      %p80 = scmp.ne.s32.totalorder %s72, %s75
      %p81 = scmp.eq.s32.totalorder %s24, 0
      %p82 = por %p80, %p81
      %p83 = scmp.ne.s32.totalorder %s72, %s75
      %p84 = scmp.eq.s32.totalorder %s29, 3
      %p85 = por %p83, %p84
      %p86 = scmp.ne.s32.totalorder %s75, %s76
      %p87 = scmp.eq.s32.totalorder %s29, 0
      %p88 = por %p86, %p87
      %p89 = scmp.ne.s32.totalorder %s75, %s76
      %p90 = scmp.eq.s32.totalorder %s30, 3
      %p91 = por %p89, %p90
      %p93 = scmp.ne.s32.totalorder %s76, %s92
      %p94 = scmp.eq.s32.totalorder %s30, 0
      %p95 = por %p93, %p94
      %s96 = ssub.s32 %s32, %s39
      %p97 = scmp.eq.s32.totalorder %s96, 0
      %s99 = sadd.s32 %s98, 1
      %s100 = scalar_select %p97, %s98, %s99
      %p103 = pneg %p97
      %p104 = scmp.eq.s32.totalorder %s24, 3
      %p105 = por %p103, %p104
      %p106 = scmp.ne.s32.totalorder %s98, %s101
      %p107 = scmp.eq.s32.totalorder %s24, 0
      %p108 = por %p106, %p107
      %p109 = scmp.ne.s32.totalorder %s98, %s101
      %p110 = scmp.eq.s32.totalorder %s29, 3
      %p111 = por %p109, %p110
      %p112 = scmp.ne.s32.totalorder %s101, %s102
      %p113 = scmp.eq.s32.totalorder %s29, 0
      %p114 = por %p112, %p113
      %p115 = scmp.ne.s32.totalorder %s101, %s102
      %p116 = scmp.eq.s32.totalorder %s30, 3
      %p117 = por %p115, %p116
      %p119 = scmp.ne.s32.totalorder %s102, %s118
      %p120 = scmp.eq.s32.totalorder %s30, 0
      %p121 = por %p119, %p120
      %s122 = ssub.s32 %s32, %s39
      %p123 = scmp.eq.s32.totalorder %s122, 0
      %s125 = sadd.s32 %s124, 1
      %s126 = scalar_select %p123, %s124, %s125
      %p129 = pneg %p123
      %p130 = scmp.eq.s32.totalorder %s24, 3
      %p131 = por %p129, %p130
      %p132 = scmp.ne.s32.totalorder %s124, %s127
      %p133 = scmp.eq.s32.totalorder %s24, 0
      %p134 = por %p132, %p133
      %p135 = scmp.ne.s32.totalorder %s124, %s127
      %p136 = scmp.eq.s32.totalorder %s29, 3
      %p137 = por %p135, %p136
      %p138 = scmp.ne.s32.totalorder %s127, %s128
      %p139 = scmp.eq.s32.totalorder %s29, 0
      %p140 = por %p138, %p139
      %p141 = scmp.ne.s32.totalorder %s127, %s128
      %p142 = scmp.eq.s32.totalorder %s30, 3
      %p143 = por %p141, %p142
      %p145 = scmp.ne.s32.totalorder %s128, %s144
      %p146 = scmp.eq.s32.totalorder %s30, 0
      %p147 = por %p145, %p146
      %s148 = ssub.s32 %s32, %s39
      %p149 = scmp.eq.s32.totalorder %s148, 0
      %s151 = sadd.s32 %s150, 1
      %s152 = scalar_select %p149, %s150, %s151
      %p155 = pneg %p149
      %p156 = scmp.eq.s32.totalorder %s24, 3
      %p157 = por %p155, %p156
      %p158 = scmp.ne.s32.totalorder %s150, %s153
      %p159 = scmp.eq.s32.totalorder %s24, 0
      %p160 = por %p158, %p159
      %p161 = scmp.ne.s32.totalorder %s150, %s153
      %p162 = scmp.eq.s32.totalorder %s29, 3
      %p163 = por %p161, %p162
      %p164 = scmp.ne.s32.totalorder %s153, %s154
      %p165 = scmp.eq.s32.totalorder %s29, 0
      %p166 = por %p164, %p165
      %p167 = scmp.ne.s32.totalorder %s153, %s154
      %p168 = scmp.eq.s32.totalorder %s30, 3
      %p169 = por %p167, %p168
      %p171 = scmp.ne.s32.totalorder %s154, %s170
      %p172 = scmp.eq.s32.totalorder %s30, 0
      %p173 = por %p171, %p172
      %s174 = ssub.s32 %s32, %s39
      %p175 = scmp.eq.s32.totalorder %s174, 0
      %s177 = sadd.s32 %s176, 1
      %s178 = scalar_select %p175, %s176, %s177
      %p181 = pneg %p175
      %p182 = scmp.eq.s32.totalorder %s24, 3
      %p183 = por %p181, %p182
      %p184 = scmp.ne.s32.totalorder %s176, %s179
      %p185 = scmp.eq.s32.totalorder %s24, 0
      %p186 = por %p184, %p185
      %p187 = scmp.ne.s32.totalorder %s176, %s179
      %p188 = scmp.eq.s32.totalorder %s29, 3
      %p189 = por %p187, %p188
      %p190 = scmp.ne.s32.totalorder %s179, %s180
      %p191 = scmp.eq.s32.totalorder %s29, 0
      %p192 = por %p190, %p191
      %p193 = scmp.ne.s32.totalorder %s179, %s180
      %p194 = scmp.eq.s32.totalorder %s30, 3
      %p195 = por %p193, %p194
      %p197 = scmp.ne.s32.totalorder %s180, %s196
      %p198 = scmp.eq.s32.totalorder %s30, 0
      %p199 = por %p197, %p198
      %s200 = ssub.s32 %s32, %s39
      %p201 = scmp.eq.s32.totalorder %s200, 0
      %s203 = sadd.s32 %s202, 1
      %s204 = scalar_select %p201, %s202, %s203
      %p207 = pneg %p201
      %p208 = scmp.eq.s32.totalorder %s24, 3
      %p209 = por %p207, %p208
      %p210 = scmp.ne.s32.totalorder %s202, %s205
      %p211 = scmp.eq.s32.totalorder %s24, 0
      %p212 = por %p210, %p211
      %p213 = scmp.ne.s32.totalorder %s202, %s205
      %p214 = scmp.eq.s32.totalorder %s29, 3
      %p215 = por %p213, %p214
      %p216 = scmp.ne.s32.totalorder %s205, %s206
      %p217 = scmp.eq.s32.totalorder %s29, 0
      %p218 = por %p216, %p217
      %p219 = scmp.ne.s32.totalorder %s205, %s206
      %p220 = scmp.eq.s32.totalorder %s30, 3
      %p221 = por %p219, %p220
      %p223 = scmp.ne.s32.totalorder %s206, %s222
      %p224 = scmp.eq.s32.totalorder %s30, 0
      %p225 = por %p223, %p224
      %s226 = ssub.s32 %s32, %s39
      %p227 = scmp.eq.s32.totalorder %s226, 0
      %s229 = sadd.s32 %s228, 1
      %s230 = scalar_select %p227, %s228, %s229
      %p233 = pneg %p227
      %p234 = scmp.eq.s32.totalorder %s24, 3
      %p235 = por %p233, %p234
      %p236 = scmp.ne.s32.totalorder %s228, %s231
      %p237 = scmp.eq.s32.totalorder %s24, 0
      %p238 = por %p236, %p237
      %p239 = scmp.ne.s32.totalorder %s228, %s231
      %p240 = scmp.eq.s32.totalorder %s29, 3
      %p241 = por %p239, %p240
      %p242 = scmp.ne.s32.totalorder %s231, %s232
      %p243 = scmp.eq.s32.totalorder %s29, 0
      %p244 = por %p242, %p243
      %p245 = scmp.ne.s32.totalorder %s231, %s232
      %p246 = scmp.eq.s32.totalorder %s30, 3
      %p247 = por %p245, %p246
      %p249 = scmp.ne.s32.totalorder %s232, %s248
      %p250 = scmp.eq.s32.totalorder %s30, 0
      %p251 = por %p249, %p250
      %s252 = ssub.s32 %s32, %s39
      %p253 = scmp.eq.s32.totalorder %s252, 0
      %s255 = sadd.s32 %s254, 1
      %s256 = scalar_select %p253, %s254, %s255
      %p259 = pneg %p253
      %p260 = scmp.eq.s32.totalorder %s24, 3
      %p261 = por %p259, %p260
      %p262 = scmp.ne.s32.totalorder %s254, %s257
      %p263 = scmp.eq.s32.totalorder %s24, 0
      %p264 = por %p262, %p263
      %p265 = scmp.ne.s32.totalorder %s254, %s257
      %p266 = scmp.eq.s32.totalorder %s29, 3
      %p267 = por %p265, %p266
      %p268 = scmp.ne.s32.totalorder %s257, %s258
      %p269 = scmp.eq.s32.totalorder %s29, 0
      %p270 = por %p268, %p269
      %p271 = scmp.ne.s32.totalorder %s257, %s258
      %p272 = scmp.eq.s32.totalorder %s30, 3
      %p273 = por %p271, %p272
      %p275 = scmp.ne.s32.totalorder %s258, %s274
      %p276 = scmp.eq.s32.totalorder %s30, 0
      %p277 = por %p275, %p276
      %s278 = ssub.s32 %s32, %s39
      %p279 = scmp.eq.s32.totalorder %s278, 0
      %s281 = sadd.s32 %s280, 1
      %s282 = scalar_select %p279, %s280, %s281
      %p285 = pneg %p279
      %p286 = scmp.eq.s32.totalorder %s24, 3
      %p287 = por %p285, %p286
      %p288 = scmp.ne.s32.totalorder %s280, %s283
      %p289 = scmp.eq.s32.totalorder %s24, 0
      %p290 = por %p288, %p289
      %p291 = scmp.ne.s32.totalorder %s280, %s283
      %p292 = scmp.eq.s32.totalorder %s29, 3
      %p293 = por %p291, %p292
      %p294 = scmp.ne.s32.totalorder %s283, %s284
      %p295 = scmp.eq.s32.totalorder %s29, 0
      %p296 = por %p294, %p295
      %p297 = scmp.ne.s32.totalorder %s283, %s284
      %p298 = scmp.eq.s32.totalorder %s30, 3
      %p299 = por %p297, %p298
      %p301 = scmp.ne.s32.totalorder %s284, %s300
      %p302 = scmp.eq.s32.totalorder %s30, 0
      %p303 = por %p301, %p302
      %s304 = ssub.s32 %s32, %s39
      %p305 = scmp.eq.s32.totalorder %s304, 0
      %s307 = sadd.s32 %s306, 1
      %s308 = scalar_select %p305, %s306, %s307
      %p311 = pneg %p305
      %p312 = scmp.eq.s32.totalorder %s24, 3
      %p313 = por %p311, %p312
      %p314 = scmp.ne.s32.totalorder %s306, %s309
      %p315 = scmp.eq.s32.totalorder %s24, 0
      %p316 = por %p314, %p315
      %p317 = scmp.ne.s32.totalorder %s306, %s309
      %p318 = scmp.eq.s32.totalorder %s29, 3
      %p319 = por %p317, %p318
      %p320 = scmp.ne.s32.totalorder %s309, %s310
      %p321 = scmp.eq.s32.totalorder %s29, 0
      %p322 = por %p320, %p321
      %p323 = scmp.ne.s32.totalorder %s309, %s310
      %p324 = scmp.eq.s32.totalorder %s30, 3
      %p325 = por %p323, %p324
      %p327 = scmp.ne.s32.totalorder %s310, %s326
      %p328 = scmp.eq.s32.totalorder %s30, 0
      %p329 = por %p327, %p328
      %s330 = ssub.s32 %s32, %s39
      %p331 = scmp.eq.s32.totalorder %s330, 0
      %s333 = sadd.s32 %s332, 1
      %s334 = scalar_select %p331, %s332, %s333
      %p337 = pneg %p331
      %p338 = scmp.eq.s32.totalorder %s24, 3
      %p339 = por %p337, %p338
      %p340 = scmp.ne.s32.totalorder %s332, %s335
      %p341 = scmp.eq.s32.totalorder %s24, 0
      %p342 = por %p340, %p341
      %p343 = scmp.ne.s32.totalorder %s332, %s335
      %p344 = scmp.eq.s32.totalorder %s29, 3
      %p345 = por %p343, %p344
      %p346 = scmp.ne.s32.totalorder %s335, %s336
      %p347 = scmp.eq.s32.totalorder %s29, 0
      %p348 = por %p346, %p347
      %p349 = scmp.ne.s32.totalorder %s335, %s336
      %p350 = scmp.eq.s32.totalorder %s30, 3
      %p351 = por %p349, %p350
      %p353 = scmp.ne.s32.totalorder %s336, %s352
      %p354 = scmp.eq.s32.totalorder %s30, 0
      %p355 = por %p353, %p354
      %s356 = ssub.s32 %s32, %s39
      %p357 = scmp.eq.s32.totalorder %s356, 0
      %s359 = sadd.s32 %s358, 1
      %s360 = scalar_select %p357, %s358, %s359
      %p363 = pneg %p357
      %p364 = scmp.eq.s32.totalorder %s24, 3
      %p365 = por %p363, %p364
      %p366 = scmp.ne.s32.totalorder %s358, %s361
      %p367 = scmp.eq.s32.totalorder %s24, 0
      %p368 = por %p366, %p367
      %p369 = scmp.ne.s32.totalorder %s358, %s361
      %p370 = scmp.eq.s32.totalorder %s29, 3
      %p371 = por %p369, %p370
      %p372 = scmp.ne.s32.totalorder %s361, %s362
      %p373 = scmp.eq.s32.totalorder %s29, 0
      %p374 = por %p372, %p373
      %p375 = scmp.ne.s32.totalorder %s361, %s362
      %p376 = scmp.eq.s32.totalorder %s30, 3
      %p377 = por %p375, %p376
      %p379 = scmp.ne.s32.totalorder %s362, %s378
      %p380 = scmp.eq.s32.totalorder %s30, 0
      %p381 = por %p379, %p380
      %s383 = sadd.s32 %s382, 1
      %p386 = scmp.eq.s32.totalorder %s24, 3
      %p387 = scmp.ne.s32.totalorder %s382, %s384
      %p388 = scmp.eq.s32.totalorder %s24, 0
      %p389 = por %p387, %p388
      %p390 = scmp.ne.s32.totalorder %s382, %s384
      %p391 = scmp.eq.s32.totalorder %s29, 3
      %p392 = por %p390, %p391
      %p393 = scmp.ne.s32.totalorder %s384, %s385
      %p394 = scmp.eq.s32.totalorder %s29, 0
      %p395 = por %p393, %p394
      %p396 = scmp.ne.s32.totalorder %s384, %s385
      %p397 = scmp.eq.s32.totalorder %s30, 3
      %p398 = por %p396, %p397
      %p400 = scmp.ne.s32.totalorder %s385, %s399
      %p401 = scmp.eq.s32.totalorder %s30, 0
      %p402 = por %p400, %p401
      %s404 = sadd.s32 %s403, 1
      %p407 = scmp.eq.s32.totalorder %s24, 3
      %p408 = scmp.ne.s32.totalorder %s403, %s405
      %p409 = scmp.eq.s32.totalorder %s24, 0
      %p410 = por %p408, %p409
      %p411 = scmp.ne.s32.totalorder %s403, %s405
      %p412 = scmp.eq.s32.totalorder %s29, 3
      %p413 = por %p411, %p412
      %p414 = scmp.ne.s32.totalorder %s405, %s406
      %p415 = scmp.eq.s32.totalorder %s29, 0
      %p416 = por %p414, %p415
      %p417 = scmp.ne.s32.totalorder %s405, %s406
      %p418 = scmp.eq.s32.totalorder %s30, 3
      %p419 = por %p417, %p418
      %p421 = scmp.ne.s32.totalorder %s406, %s420
      %p422 = scmp.eq.s32.totalorder %s30, 0
      %p423 = por %p421, %p422
      %s424 = ssub.s32 %s31, %s43
      %p425 = scmp.eq.s32.totalorder %s424, 0
      %s427 = sadd.s32 %s426, 1
      %s428 = scalar_select %p425, %s426, %s427
      %p431 = pneg %p425
      %p432 = scmp.eq.s32.totalorder %s24, 3
      %p433 = por %p431, %p432
      %p434 = scmp.ne.s32.totalorder %s426, %s429
      %p435 = scmp.eq.s32.totalorder %s24, 0
      %p436 = por %p434, %p435
      %p437 = scmp.ne.s32.totalorder %s426, %s429
      %p438 = scmp.eq.s32.totalorder %s29, 3
      %p439 = por %p437, %p438
      %p440 = scmp.ne.s32.totalorder %s429, %s430
      %p441 = scmp.eq.s32.totalorder %s29, 0
      %p442 = por %p440, %p441
      %p443 = scmp.ne.s32.totalorder %s429, %s430
      %p444 = scmp.eq.s32.totalorder %s30, 3
      %p445 = por %p443, %p444
      %p447 = scmp.ne.s32.totalorder %s430, %s446
      %p448 = scmp.eq.s32.totalorder %s30, 0
      %p449 = por %p447, %p448
      %p450 = scmp.le.s32.totalorder 1, %s24
      %p451 = scmp.lt.s32.totalorder %s24, 5
      %p452 = pnand %p450, %p451
      %p453 = pneg %p452
      // Predicated region
      $region9: #{vit_encoder_forward.3} parent=5 // pred_check
        _
      $region10: #{vit_encoder_forward.3} parent=5 // pred_check_branch
        %455 = sbr.rel (%p452) target = $region12
      $region11: #{vit_encoder_forward.3} parent=5 // pred_region
        %s456 = ssub.s32 %s24, 1
        // Predicated region
        $region13: #{vit_encoder_forward.3} parent=11 // pred_check
          %p457 = pneg %p395
        $region14: #{vit_encoder_forward.3} parent=11 // pred_check_branch
          %459 = sbr.rel (%p457) target = $region16
        $region15: #{vit_encoder_forward.3} parent=11 // pred_region
          _
        $region16: #{vit_encoder_forward.3} parent=11 // pred_fallthru
          _
        // Predicated region
        $region17: #{vit_encoder_forward.3} parent=11 // pred_check
          %p460 = pneg %p416
        $region18: #{vit_encoder_forward.3} parent=11 // pred_check_branch
          %462 = sbr.rel (%p460) target = $region20
        $region19: #{vit_encoder_forward.3} parent=11 // pred_region
          _
        $region20: #{vit_encoder_forward.3} parent=11 // pred_fallthru
          _
      $region12: #{vit_encoder_forward.3} parent=5 // pred_fallthru
        _
      %p463 = scmp.lt.s32.totalorder %s24, 4
      // Predicated region
      $region21: #{vit_encoder_forward.3} parent=5 // pred_check
        %p464 = pneg %p463
      $region22: #{vit_encoder_forward.3} parent=5 // pred_check_branch
        %466 = sbr.rel (%p464) target = $region24
      $region23: #{vit_encoder_forward.3} parent=5 // pred_region
        // Predicated region
        $region25: #{vit_encoder_forward.3} parent=23 // pred_check
          %p467 = pneg %p56
        $region26: #{vit_encoder_forward.3} parent=23 // pred_check_branch
          %469 = sbr.rel (%p467) target = $region28
        $region27: #{vit_encoder_forward.3} parent=23 // pred_region
          %s470 = smul.u32 16, %s31
          %p471 = scmp.lt.s32.totalorder %s470, 31
          %s472 = scalar_select %p471, %s470, 31
          %s473 = smul.addr %s472, 8
          %s474 = scalar_lea.vmem %s0, %s473
          %s475 = smul.u32 16, %s31
        $region28: #{vit_encoder_forward.3} parent=23 // pred_fallthru
          _
        // Predicated region
        $region29: #{vit_encoder_forward.3} parent=23 // pred_check
          %p476 = pneg %p82
        $region30: #{vit_encoder_forward.3} parent=23 // pred_check_branch
          %478 = sbr.rel (%p476) target = $region32
        $region31: #{vit_encoder_forward.3} parent=23 // pred_region
          %p479 = scmp.lt.s32.totalorder %s32, 1
          %s480 = scalar_select %p479, %s32, 1
          %s481 = scalar_lea.vmem %s1, %s480
        $region32: #{vit_encoder_forward.3} parent=23 // pred_fallthru
          _
        // Predicated region
        $region33: #{vit_encoder_forward.3} parent=23 // pred_check
          %p482 = pneg %p108
        $region34: #{vit_encoder_forward.3} parent=23 // pred_check_branch
          %484 = sbr.rel (%p482) target = $region36
        $region35: #{vit_encoder_forward.3} parent=23 // pred_region
          %p485 = scmp.lt.s32.totalorder %s32, 1
          %s486 = scalar_select %p485, %s32, 1
          %s487 = scalar_lea.vmem %s2, %s486
        $region36: #{vit_encoder_forward.3} parent=23 // pred_fallthru
          _
        // Predicated region
        $region37: #{vit_encoder_forward.3} parent=23 // pred_check
          %p488 = pneg %p134
        $region38: #{vit_encoder_forward.3} parent=23 // pred_check_branch
          %490 = sbr.rel (%p488) target = $region40
        $region39: #{vit_encoder_forward.3} parent=23 // pred_region
          %p491 = scmp.lt.s32.totalorder %s32, 1
          %s492 = scalar_select %p491, %s32, 1
          %s493 = smul.addr %s492, 16
          %s494 = smul.addr %s493, 4
          %s495 = scalar_lea.vmem %s3, %s494
        $region40: #{vit_encoder_forward.3} parent=23 // pred_fallthru
          _
        // Predicated region
        $region41: #{vit_encoder_forward.3} parent=23 // pred_check
          %p496 = pneg %p160
        $region42: #{vit_encoder_forward.3} parent=23 // pred_check_branch
          %498 = sbr.rel (%p496) target = $region44
        $region43: #{vit_encoder_forward.3} parent=23 // pred_region
          %p499 = scmp.lt.s32.totalorder %s32, 1
          %s500 = scalar_select %p499, %s32, 1
          %s501 = smul.addr %s500, 2
          %s502 = scalar_lea.vmem %s4, %s501
        $region44: #{vit_encoder_forward.3} parent=23 // pred_fallthru
          _
        // Predicated region
        $region45: #{vit_encoder_forward.3} parent=23 // pred_check
          %p503 = pneg %p186
        $region46: #{vit_encoder_forward.3} parent=23 // pred_check_branch
          %505 = sbr.rel (%p503) target = $region48
        $region47: #{vit_encoder_forward.3} parent=23 // pred_region
          %p506 = scmp.lt.s32.totalorder %s32, 1
          %s507 = scalar_select %p506, %s32, 1
          %s508 = smul.addr %s507, 8
          %s509 = smul.addr %s508, 4
          %s510 = scalar_lea.vmem %s5, %s509
        $region48: #{vit_encoder_forward.3} parent=23 // pred_fallthru
          _
        // Predicated region
        $region49: #{vit_encoder_forward.3} parent=23 // pred_check
          %p511 = pneg %p212
        $region50: #{vit_encoder_forward.3} parent=23 // pred_check_branch
          %513 = sbr.rel (%p511) target = $region52
        $region51: #{vit_encoder_forward.3} parent=23 // pred_region
          %p514 = scmp.lt.s32.totalorder %s32, 1
          %s515 = scalar_select %p514, %s32, 1
          %s516 = scalar_lea.vmem %s6, %s515
        $region52: #{vit_encoder_forward.3} parent=23 // pred_fallthru
          _
        // Predicated region
        $region53: #{vit_encoder_forward.3} parent=23 // pred_check
          %p517 = pneg %p238
        $region54: #{vit_encoder_forward.3} parent=23 // pred_check_branch
          %519 = sbr.rel (%p517) target = $region56
        $region55: #{vit_encoder_forward.3} parent=23 // pred_region
          %p520 = scmp.lt.s32.totalorder %s32, 1
          %s521 = scalar_select %p520, %s32, 1
          %s522 = scalar_lea.vmem %s7, %s521
        $region56: #{vit_encoder_forward.3} parent=23 // pred_fallthru
          _
        // Predicated region
        $region57: #{vit_encoder_forward.3} parent=23 // pred_check
          %p523 = pneg %p264
        $region58: #{vit_encoder_forward.3} parent=23 // pred_check_branch
          %525 = sbr.rel (%p523) target = $region60
        $region59: #{vit_encoder_forward.3} parent=23 // pred_region
          %p526 = scmp.lt.s32.totalorder %s32, 1
          %s527 = scalar_select %p526, %s32, 1
          %s528 = scalar_lea.vmem %s8, %s527
        $region60: #{vit_encoder_forward.3} parent=23 // pred_fallthru
          _
        // Predicated region
        $region61: #{vit_encoder_forward.3} parent=23 // pred_check
          %p529 = pneg %p290
        $region62: #{vit_encoder_forward.3} parent=23 // pred_check_branch
          %531 = sbr.rel (%p529) target = $region64
        $region63: #{vit_encoder_forward.3} parent=23 // pred_region
          %p532 = scmp.lt.s32.totalorder %s32, 1
          %s533 = scalar_select %p532, %s32, 1
          %s534 = smul.addr %s533, 8
          %s535 = smul.addr %s534, 4
          %s536 = scalar_lea.vmem %s9, %s535
        $region64: #{vit_encoder_forward.3} parent=23 // pred_fallthru
          _
        // Predicated region
        $region65: #{vit_encoder_forward.3} parent=23 // pred_check
          %p537 = pneg %p316
        $region66: #{vit_encoder_forward.3} parent=23 // pred_check_branch
          %539 = sbr.rel (%p537) target = $region68
        $region67: #{vit_encoder_forward.3} parent=23 // pred_region
          %p540 = scmp.lt.s32.totalorder %s32, 1
          %s541 = scalar_select %p540, %s32, 1
          %s542 = scalar_lea.vmem %s10, %s541
        $region68: #{vit_encoder_forward.3} parent=23 // pred_fallthru
          _
        // Predicated region
        $region69: #{vit_encoder_forward.3} parent=23 // pred_check
          %p543 = pneg %p342
        $region70: #{vit_encoder_forward.3} parent=23 // pred_check_branch
          %545 = sbr.rel (%p543) target = $region72
        $region71: #{vit_encoder_forward.3} parent=23 // pred_region
          %p546 = scmp.lt.s32.totalorder %s32, 1
          %s547 = scalar_select %p546, %s32, 1
          %s548 = smul.addr %s547, 16
          %s549 = smul.addr %s548, 4
          %s550 = scalar_lea.vmem %s11, %s549
        $region72: #{vit_encoder_forward.3} parent=23 // pred_fallthru
          _
        // Predicated region
        $region73: #{vit_encoder_forward.3} parent=23 // pred_check
          %p551 = pneg %p368
        $region74: #{vit_encoder_forward.3} parent=23 // pred_check_branch
          %553 = sbr.rel (%p551) target = $region76
        $region75: #{vit_encoder_forward.3} parent=23 // pred_region
          %p554 = scmp.lt.s32.totalorder %s32, 1
          %s555 = scalar_select %p554, %s32, 1
          %s556 = scalar_lea.vmem %s12, %s555
        $region76: #{vit_encoder_forward.3} parent=23 // pred_fallthru
          _
      $region24: #{vit_encoder_forward.3} parent=5 // pred_fallthru
        _
      %p557 = scmp.le.s32.totalorder 1, %s24
      %p558 = scmp.lt.s32.totalorder %s24, 5
      %p559 = pnand %p557, %p558
      %p560 = pneg %p559
      // Predicated region
      $region77: #{vit_encoder_forward.3} parent=5 // pred_check
        _
      $region78: #{vit_encoder_forward.3} parent=5 // pred_check_branch
        %562 = sbr.rel (%p559) target = $region80
      $region79: #{vit_encoder_forward.3} parent=5 // pred_region
        %s563 = ssub.s32 %s24, 1
        %s564 = smul.u32 16, %s33
        %p565 = scmp.lt.s32.totalorder %s564, 31
        %s566 = scalar_select %p565, %s564, 31
        %s567 = smul.addr %s566, 8
        %s568 = scalar_lea.vmem %s0, %s567
        %p569 = pneg %p62
        %p570 = pneg %p59
        %p571 = scmp.lt.s32.totalorder %s34, 1
        %s572 = scalar_select %p571, %s34, 1
        %s573 = scalar_lea.vmem %s1, %s572
        %p574 = pneg %p88
        %p575 = pneg %p85
        %p576 = scmp.lt.s32.totalorder %s34, 1
        %s577 = scalar_select %p576, %s34, 1
        %s578 = scalar_lea.vmem %s2, %s577
        %p579 = pneg %p114
        %p580 = pneg %p111
        %p581 = scmp.lt.s32.totalorder %s34, 1
        %s582 = scalar_select %p581, %s34, 1
        %s583 = smul.addr %s582, 16
        %s584 = smul.addr %s583, 4
        %s585 = scalar_lea.vmem %s3, %s584
        %p586 = pneg %p140
        %p587 = pneg %p137
        %p588 = scmp.lt.s32.totalorder %s34, 1
        %s589 = scalar_select %p588, %s34, 1
        %s590 = smul.addr %s589, 2
        %s591 = scalar_lea.vmem %s4, %s590
        %p592 = pneg %p166
        %p593 = pneg %p163
        %p594 = scmp.lt.s32.totalorder %s34, 1
        %s595 = scalar_select %p594, %s34, 1
        %s596 = smul.addr %s595, 8
        %s597 = smul.addr %s596, 4
        %s598 = scalar_lea.vmem %s5, %s597
        %p599 = pneg %p192
        %p600 = pneg %p189
        %p601 = scmp.lt.s32.totalorder %s34, 1
        %s602 = scalar_select %p601, %s34, 1
        %s603 = scalar_lea.vmem %s6, %s602
        %p604 = pneg %p218
        %p605 = pneg %p215
        %p606 = scmp.lt.s32.totalorder %s34, 1
        %s607 = scalar_select %p606, %s34, 1
        %s608 = scalar_lea.vmem %s7, %s607
        %p609 = pneg %p244
        %p610 = pneg %p241
        %p611 = scmp.lt.s32.totalorder %s34, 1
        %s612 = scalar_select %p611, %s34, 1
        %s613 = scalar_lea.vmem %s8, %s612
        %p614 = pneg %p270
        %p615 = pneg %p267
        %p616 = scmp.lt.s32.totalorder %s34, 1
        %s617 = scalar_select %p616, %s34, 1
        %s618 = smul.addr %s617, 8
        %s619 = smul.addr %s618, 4
        %s620 = scalar_lea.vmem %s9, %s619
        %p621 = pneg %p296
        %p622 = pneg %p293
        %p623 = scmp.lt.s32.totalorder %s34, 1
        %s624 = scalar_select %p623, %s34, 1
        %s625 = scalar_lea.vmem %s10, %s624
        %p626 = pneg %p322
        %p627 = pneg %p319
        %p628 = scmp.lt.s32.totalorder %s34, 1
        %s629 = scalar_select %p628, %s34, 1
        %s630 = smul.addr %s629, 16
        %s631 = smul.addr %s630, 4
        %s632 = scalar_lea.vmem %s11, %s631
        %p633 = pneg %p348
        %p634 = pneg %p345
        %p635 = scmp.lt.s32.totalorder %s34, 1
        %s636 = scalar_select %p635, %s34, 1
        %s637 = scalar_lea.vmem %s12, %s636
        %p638 = pneg %p374
        %p639 = pneg %p371
        %p640 = pneg %p395
        %p641 = pneg %p392
        %p642 = pneg %p416
        %p643 = pneg %p413
        %p644 = pneg %p442
        %p645 = pneg %p439
        %s646 = sand.u32 %s429, 1
        %s647 = scalar_lea.sflag [#allocation4], %s646
        %s648 = sand.u32 %s429, 1
        %s649 = smul.addr %s648, 16
        %s650 = scalar_lea.vmem [#allocation3], %s649
        %s651 = smul.u32 16, %s33
        %p652 = scmp.lt.s32.totalorder %s651, 31
        %s653 = scalar_select %p652, %s651, 31
        %s654 = smul.addr %s653, 8
        %s655 = scalar_lea.vmem %s0, %s654
        %s656 = smul.u32 16, %s33
        %p657 = scmp.lt.s32.totalorder %s34, 1
        %s658 = scalar_select %p657, %s34, 1
        %s659 = scalar_lea.vmem %s1, %s658
        %p660 = scmp.lt.s32.totalorder %s34, 1
        %s661 = scalar_select %p660, %s34, 1
        %s662 = scalar_lea.vmem %s2, %s661
        %p663 = scmp.lt.s32.totalorder %s34, 1
        %s664 = scalar_select %p663, %s34, 1
        %s665 = smul.addr %s664, 16
        %s666 = smul.addr %s665, 4
        %s667 = scalar_lea.vmem %s3, %s666
        %p668 = scmp.lt.s32.totalorder %s34, 1
        %s669 = scalar_select %p668, %s34, 1
        %s670 = smul.addr %s669, 2
        %s671 = scalar_lea.vmem %s4, %s670
        %p672 = scmp.lt.s32.totalorder %s34, 1
        %s673 = scalar_select %p672, %s34, 1
        %s674 = smul.addr %s673, 8
        %s675 = smul.addr %s674, 4
        %s676 = scalar_lea.vmem %s5, %s675
        %p677 = scmp.lt.s32.totalorder %s34, 1
        %s678 = scalar_select %p677, %s34, 1
        %s679 = scalar_lea.vmem %s6, %s678
        %p680 = scmp.lt.s32.totalorder %s34, 1
        %s681 = scalar_select %p680, %s34, 1
        %s682 = scalar_lea.vmem %s7, %s681
        %p683 = scmp.lt.s32.totalorder %s34, 1
        %s684 = scalar_select %p683, %s34, 1
        %s685 = scalar_lea.vmem %s8, %s684
        %p686 = scmp.lt.s32.totalorder %s34, 1
        %s687 = scalar_select %p686, %s34, 1
        %s688 = smul.addr %s687, 8
        %s689 = smul.addr %s688, 4
        %s690 = scalar_lea.vmem %s9, %s689
        %p691 = scmp.lt.s32.totalorder %s34, 1
        %s692 = scalar_select %p691, %s34, 1
        %s693 = scalar_lea.vmem %s10, %s692
        %p694 = scmp.lt.s32.totalorder %s34, 1
        %s695 = scalar_select %p694, %s34, 1
        %s696 = smul.addr %s695, 16
        %s697 = smul.addr %s696, 4
        %s698 = scalar_lea.vmem %s11, %s697
        %p699 = scmp.lt.s32.totalorder %s34, 1
        %s700 = scalar_select %p699, %s34, 1
        %s701 = scalar_lea.vmem %s12, %s700
        %s702 = smul.u32 2, %s33
        %p704 = scmp.eq.s32.totalorder %s34, 0
        // Predicated region
        $region81: #{vit_encoder_forward.3} parent=79 // pred_check
          %p705 = pneg %p704
        $region82: #{vit_encoder_forward.3} parent=79 // pred_check_branch
          %707 = sbr.rel (%p705) target = $region84
        $region83: #{vit_encoder_forward.3} parent=79 // pred_region
          %v708 = vld [vmem:[%s655] sm:$0xff]
          %v709 = vld [vmem:[%s655 + $0x8] sm:$0xff]
          %v710 = vld [vmem:[%s655 + $0x10] sm:$0xff]
          %v711 = vld [vmem:[%s655 + $0x18] sm:$0xff]
          %v712 = vld [vmem:[%s655 + $0x20] sm:$0xff]
          %v713 = vld [vmem:[%s655 + $0x28] sm:$0xff]
          %v714 = vld [vmem:[%s655 + $0x30] sm:$0xff]
          %v715 = vld [vmem:[%s655 + $0x38] sm:$0xff]
          %v716 = vld [vmem:[%s655 + $0x40] sm:$0xff]
          %v717 = vld [vmem:[%s655 + $0x48] sm:$0xff]
          %v718 = vld [vmem:[%s655 + $0x50] sm:$0xff]
          %v719 = vld [vmem:[%s655 + $0x58] sm:$0xff]
          %v720 = vld [vmem:[%s655 + $0x60] sm:$0xff]
          %v721 = vld [vmem:[%s655 + $0x68] sm:$0xff]
          %v722 = vld [vmem:[%s655 + $0x70] sm:$0xff]
          %v723 = vld [vmem:[%s655 + $0x78] sm:$0xff]
          %vm724 = vcmask 523264
          %725 = vst.msk [vmem:[#allocation2] sm:$0xff] %vm724, %v708
          %726 = vst.msk [vmem:[#allocation2 + $0x8] sm:$0xff] %vm724, %v709
          %727 = vst.msk [vmem:[#allocation2 + $0x10] sm:$0xff] %vm724, %v710
          %728 = vst.msk [vmem:[#allocation2 + $0x18] sm:$0xff] %vm724, %v711
          %729 = vst.msk [vmem:[#allocation2 + $0x20] sm:$0xff] %vm724, %v712
          %730 = vst.msk [vmem:[#allocation2 + $0x28] sm:$0xff] %vm724, %v713
          %731 = vst.msk [vmem:[#allocation2 + $0x30] sm:$0xff] %vm724, %v714
          %732 = vst.msk [vmem:[#allocation2 + $0x38] sm:$0xff] %vm724, %v715
          %733 = vst.msk [vmem:[#allocation2 + $0x40] sm:$0xff] %vm724, %v716
          %734 = vst.msk [vmem:[#allocation2 + $0x48] sm:$0xff] %vm724, %v717
          %735 = vst.msk [vmem:[#allocation2 + $0x50] sm:$0xff] %vm724, %v718
          %736 = vst.msk [vmem:[#allocation2 + $0x58] sm:$0xff] %vm724, %v719
          %737 = vst.msk [vmem:[#allocation2 + $0x60] sm:$0xff] %vm724, %v720
          %738 = vst.msk [vmem:[#allocation2 + $0x68] sm:$0xff] %vm724, %v721
          %739 = vst.msk [vmem:[#allocation2 + $0x70] sm:$0xff] %vm724, %v722
          %740 = vst.msk [vmem:[#allocation2 + $0x78] sm:$0xff] %vm724, %v723
        $region84: #{vit_encoder_forward.3} parent=79 // pred_fallthru
          _
        %v741 = vld [vmem:[#allocation2] sm:$0xff]
        %v742 = vld [vmem:[#allocation2 + $0x8] sm:$0xff]
        %v743 = vld [vmem:[#allocation2 + $0x10] sm:$0xff]
        %v744 = vld [vmem:[#allocation2 + $0x18] sm:$0xff]
        %v745 = vld [vmem:[#allocation2 + $0x20] sm:$0xff]
        %v746 = vld [vmem:[#allocation2 + $0x28] sm:$0xff]
        %v747 = vld [vmem:[#allocation2 + $0x30] sm:$0xff]
        %v748 = vld [vmem:[#allocation2 + $0x38] sm:$0xff]
        %v749 = vld [vmem:[#allocation2 + $0x40] sm:$0xff]
        %v750 = vld [vmem:[#allocation2 + $0x48] sm:$0xff]
        %v751 = vld [vmem:[#allocation2 + $0x50] sm:$0xff]
        %v752 = vld [vmem:[#allocation2 + $0x58] sm:$0xff]
        %v753 = vld [vmem:[#allocation2 + $0x60] sm:$0xff]
        %v754 = vld [vmem:[#allocation2 + $0x68] sm:$0xff]
        %v755 = vld [vmem:[#allocation2 + $0x70] sm:$0xff]
        %v756 = vld [vmem:[#allocation2 + $0x78] sm:$0xff]
        %v757 = vlaneseq
        %v758 = vshrl.u32 %v757, 7
        %v759 = vadd.s32 %v758, 8
        %v760 = vadd.s32 %v758, 16
        %v761 = vadd.s32 %v758, 24
        %v762 = vadd.s32 %v758, 32
        %v763 = vadd.s32 %v758, 40
        %v764 = vadd.s32 %v758, 48
        %v765 = vadd.s32 %v758, 56
        %v766 = vadd.s32 %v758, 64
        %v767 = vadd.s32 %v758, 72
        %v768 = vadd.s32 %v758, 80
        %v769 = vadd.s32 %v758, 88
        %v770 = vadd.s32 %v758, 96
        %v771 = vadd.s32 %v758, 104
        %v772 = vadd.s32 %v758, 112
        %v773 = vadd.s32 %v758, 120
        %v774 = vlaneseq
        %v775 = vand.u32 %v774, 127
        %v776 = vand.u32 %v758, 15
        %v777 = vand.u32 %v759, 15
        %v778 = vand.u32 %v760, 15
        %v779 = vand.u32 %v761, 15
        %v780 = vand.u32 %v762, 15
        %v781 = vand.u32 %v763, 15
        %v782 = vand.u32 %v764, 15
        %v783 = vand.u32 %v765, 15
        %v784 = vand.u32 %v766, 15
        %v785 = vand.u32 %v767, 15
        %v786 = vand.u32 %v768, 15
        %v787 = vand.u32 %v769, 15
        %v788 = vand.u32 %v770, 15
        %v789 = vand.u32 %v771, 15
        %v790 = vand.u32 %v772, 15
        %v791 = vand.u32 %v773, 15
        %v792 = vand.u32 %v775, 15
        %vm793 = vcmp.eq.s32.totalorder %v776, %v792
        %vm794 = vcmp.eq.s32.totalorder %v777, %v792
        %vm795 = vcmp.eq.s32.totalorder %v778, %v792
        %vm796 = vcmp.eq.s32.totalorder %v779, %v792
        %vm797 = vcmp.eq.s32.totalorder %v780, %v792
        %vm798 = vcmp.eq.s32.totalorder %v781, %v792
        %vm799 = vcmp.eq.s32.totalorder %v782, %v792
        %vm800 = vcmp.eq.s32.totalorder %v783, %v792
        %vm801 = vcmp.eq.s32.totalorder %v784, %v792
        %vm802 = vcmp.eq.s32.totalorder %v785, %v792
        %vm803 = vcmp.eq.s32.totalorder %v786, %v792
        %vm804 = vcmp.eq.s32.totalorder %v787, %v792
        %vm805 = vcmp.eq.s32.totalorder %v788, %v792
        %vm806 = vcmp.eq.s32.totalorder %v789, %v792
        %vm807 = vcmp.eq.s32.totalorder %v790, %v792
        %vm808 = vcmp.eq.s32.totalorder %v791, %v792
        %vm809 = vcmp.lt.s32.totalorder %v775, 80
        %vm810 = vmand %vm793, %vm809
        %vm811 = vmand %vm794, %vm809
        %vm812 = vmand %vm795, %vm809
        %vm813 = vmand %vm796, %vm809
        %vm814 = vmand %vm797, %vm809
        %vm815 = vmand %vm798, %vm809
        %vm816 = vmand %vm799, %vm809
        %vm817 = vmand %vm800, %vm809
        %vm818 = vmand %vm801, %vm809
        %vm819 = vmand %vm802, %vm809
        %vm820 = vmand %vm803, %vm809
        %vm821 = vmand %vm804, %vm809
        %vm822 = vmand %vm805, %vm809
        %vm823 = vmand %vm806, %vm809
        %vm824 = vmand %vm807, %vm809
        %vm825 = vmand %vm808, %vm809
        %v826 = vsel %vm810, 0.0, -1e+30
        %v827 = vsel %vm811, 0.0, -1e+30
        %v828 = vsel %vm812, 0.0, -1e+30
        %v829 = vsel %vm813, 0.0, -1e+30
        %v830 = vsel %vm814, 0.0, -1e+30
        %v831 = vsel %vm815, 0.0, -1e+30
        %v832 = vsel %vm816, 0.0, -1e+30
        %v833 = vsel %vm817, 0.0, -1e+30
        %v834 = vsel %vm818, 0.0, -1e+30
        %v835 = vsel %vm819, 0.0, -1e+30
        %v836 = vsel %vm820, 0.0, -1e+30
        %v837 = vsel %vm821, 0.0, -1e+30
        %v838 = vsel %vm822, 0.0, -1e+30
        %v839 = vsel %vm823, 0.0, -1e+30
        %v840 = vsel %vm824, 0.0, -1e+30
        %v841 = vsel %vm825, 0.0, -1e+30
        %v842 = vld [vmem:[%s659] sm:$0x1]
        %v843 = vld [vmem:[%s662] sm:$0x1]
        %vm844 = vcmask 523264
        %v845 = vsel %vm844, %v741, 0.0
        %846 = vadd.xlane.f32.xlu0 %v845
        %v847 = vpop.xlane.xlu0 %846
        %v848 = vsel %vm844, %v742, 0.0
        %849 = vadd.xlane.f32.xlu0 %v848
        %v850 = vpop.xlane.xlu0 %849
        %v851 = vsel %vm844, %v743, 0.0
        %852 = vadd.xlane.f32.xlu0 %v851
        %v853 = vpop.xlane.xlu0 %852
        %v854 = vsel %vm844, %v744, 0.0
        %855 = vadd.xlane.f32.xlu0 %v854
        %v856 = vpop.xlane.xlu0 %855
        %v857 = vsel %vm844, %v745, 0.0
        %858 = vadd.xlane.f32.xlu0 %v857
        %v859 = vpop.xlane.xlu0 %858
        %v860 = vsel %vm844, %v746, 0.0
        %861 = vadd.xlane.f32.xlu0 %v860
        %v862 = vpop.xlane.xlu0 %861
        %v863 = vsel %vm844, %v747, 0.0
        %864 = vadd.xlane.f32.xlu0 %v863
        %v865 = vpop.xlane.xlu0 %864
        %v866 = vsel %vm844, %v748, 0.0
        %867 = vadd.xlane.f32.xlu0 %v866
        %v868 = vpop.xlane.xlu0 %867
        %v869 = vsel %vm844, %v749, 0.0
        %870 = vadd.xlane.f32.xlu0 %v869
        %v871 = vpop.xlane.xlu0 %870
        %v872 = vsel %vm844, %v750, 0.0
        %873 = vadd.xlane.f32.xlu0 %v872
        %v874 = vpop.xlane.xlu0 %873
        %v875 = vsel %vm844, %v751, 0.0
        %876 = vadd.xlane.f32.xlu0 %v875
        %v877 = vpop.xlane.xlu0 %876
        %v878 = vsel %vm844, %v752, 0.0
        %879 = vadd.xlane.f32.xlu0 %v878
        %v880 = vpop.xlane.xlu0 %879
        %v881 = vsel %vm844, %v753, 0.0
        %882 = vadd.xlane.f32.xlu0 %v881
        %v883 = vpop.xlane.xlu0 %882
        %v884 = vsel %vm844, %v754, 0.0
        %885 = vadd.xlane.f32.xlu0 %v884
        %v886 = vpop.xlane.xlu0 %885
        %v887 = vsel %vm844, %v755, 0.0
        %888 = vadd.xlane.f32.xlu0 %v887
        %v889 = vpop.xlane.xlu0 %888
        %v890 = vsel %vm844, %v756, 0.0
        %891 = vadd.xlane.f32.xlu0 %v890
        %v892 = vpop.xlane.xlu0 %891
        %v893 = vrcp.pop 64.0
        %v894 = vmul.f32 %v847, %v893
        %v895 = vmul.f32 %v850, %v893
        %v896 = vmul.f32 %v853, %v893
        %v897 = vmul.f32 %v856, %v893
        %v898 = vmul.f32 %v859, %v893
        %v899 = vmul.f32 %v862, %v893
        %v900 = vmul.f32 %v865, %v893
        %v901 = vmul.f32 %v868, %v893
        %v902 = vmul.f32 %v871, %v893
        %v903 = vmul.f32 %v874, %v893
        %v904 = vmul.f32 %v877, %v893
        %v905 = vmul.f32 %v880, %v893
        %v906 = vmul.f32 %v883, %v893
        %v907 = vmul.f32 %v886, %v893
        %v908 = vmul.f32 %v889, %v893
        %v909 = vmul.f32 %v892, %v893
        %v910 = vsub.f32 %v741, %v894
        %v911 = vsub.f32 %v742, %v895
        %v912 = vsub.f32 %v743, %v896
        %v913 = vsub.f32 %v744, %v897
        %v914 = vsub.f32 %v745, %v898
        %v915 = vsub.f32 %v746, %v899
        %v916 = vsub.f32 %v747, %v900
        %v917 = vsub.f32 %v748, %v901
        %v918 = vsub.f32 %v749, %v902
        %v919 = vsub.f32 %v750, %v903
        %v920 = vsub.f32 %v751, %v904
        %v921 = vsub.f32 %v752, %v905
        %v922 = vsub.f32 %v753, %v906
        %v923 = vsub.f32 %v754, %v907
        %v924 = vsub.f32 %v755, %v908
        %v925 = vsub.f32 %v756, %v909
        %v926 = vmul.f32 %v910, %v910
        %v927 = vmul.f32 %v911, %v911
        %v928 = vmul.f32 %v912, %v912
        %v929 = vmul.f32 %v913, %v913
        %v930 = vmul.f32 %v914, %v914
        %v931 = vmul.f32 %v915, %v915
        %v932 = vmul.f32 %v916, %v916
        %v933 = vmul.f32 %v917, %v917
        %v934 = vmul.f32 %v918, %v918
        %v935 = vmul.f32 %v919, %v919
        %v936 = vmul.f32 %v920, %v920
        %v937 = vmul.f32 %v921, %v921
        %v938 = vmul.f32 %v922, %v922
        %v939 = vmul.f32 %v923, %v923
        %v940 = vmul.f32 %v924, %v924
        %v941 = vmul.f32 %v925, %v925
        %v942 = vsel %vm844, %v926, 0.0
        %943 = vadd.xlane.f32.xlu0 %v942
        %v944 = vpop.xlane.xlu0 %943
        %v945 = vsel %vm844, %v927, 0.0
        %946 = vadd.xlane.f32.xlu0 %v945
        %v947 = vpop.xlane.xlu0 %946
        %v948 = vsel %vm844, %v928, 0.0
        %949 = vadd.xlane.f32.xlu0 %v948
        %v950 = vpop.xlane.xlu0 %949
        %v951 = vsel %vm844, %v929, 0.0
        %952 = vadd.xlane.f32.xlu0 %v951
        %v953 = vpop.xlane.xlu0 %952
        %v954 = vsel %vm844, %v930, 0.0
        %955 = vadd.xlane.f32.xlu0 %v954
        %v956 = vpop.xlane.xlu0 %955
        %v957 = vsel %vm844, %v931, 0.0
        %958 = vadd.xlane.f32.xlu0 %v957
        %v959 = vpop.xlane.xlu0 %958
        %v960 = vsel %vm844, %v932, 0.0
        %961 = vadd.xlane.f32.xlu0 %v960
        %v962 = vpop.xlane.xlu0 %961
        %v963 = vsel %vm844, %v933, 0.0
        %964 = vadd.xlane.f32.xlu0 %v963
        %v965 = vpop.xlane.xlu0 %964
        %v966 = vsel %vm844, %v934, 0.0
        %967 = vadd.xlane.f32.xlu0 %v966
        %v968 = vpop.xlane.xlu0 %967
        %v969 = vsel %vm844, %v935, 0.0
        %970 = vadd.xlane.f32.xlu0 %v969
        %v971 = vpop.xlane.xlu0 %970
        %v972 = vsel %vm844, %v936, 0.0
        %973 = vadd.xlane.f32.xlu0 %v972
        %v974 = vpop.xlane.xlu0 %973
        %v975 = vsel %vm844, %v937, 0.0
        %976 = vadd.xlane.f32.xlu0 %v975
        %v977 = vpop.xlane.xlu0 %976
        %v978 = vsel %vm844, %v938, 0.0
        %979 = vadd.xlane.f32.xlu0 %v978
        %v980 = vpop.xlane.xlu0 %979
        %v981 = vsel %vm844, %v939, 0.0
        %982 = vadd.xlane.f32.xlu0 %v981
        %v983 = vpop.xlane.xlu0 %982
        %v984 = vsel %vm844, %v940, 0.0
        %985 = vadd.xlane.f32.xlu0 %v984
        %v986 = vpop.xlane.xlu0 %985
        %v987 = vsel %vm844, %v941, 0.0
        %988 = vadd.xlane.f32.xlu0 %v987
        %v989 = vpop.xlane.xlu0 %988
        %v990 = vmul.f32 %v944, %v893
        %v991 = vmul.f32 %v947, %v893
        %v992 = vmul.f32 %v950, %v893
        %v993 = vmul.f32 %v953, %v893
        %v994 = vmul.f32 %v956, %v893
        %v995 = vmul.f32 %v959, %v893
        %v996 = vmul.f32 %v962, %v893
        %v997 = vmul.f32 %v965, %v893
        %v998 = vmul.f32 %v968, %v893
        %v999 = vmul.f32 %v971, %v893
        %v1000 = vmul.f32 %v974, %v893
        %v1001 = vmul.f32 %v977, %v893
        %v1002 = vmul.f32 %v980, %v893
        %v1003 = vmul.f32 %v983, %v893
        %v1004 = vmul.f32 %v986, %v893
        %v1005 = vmul.f32 %v989, %v893
        %v1006 = vadd.f32 %v990, 1e-12
        %v1007 = vadd.f32 %v991, 1e-12
        %v1008 = vadd.f32 %v992, 1e-12
        %v1009 = vadd.f32 %v993, 1e-12
        %v1010 = vadd.f32 %v994, 1e-12
        %v1011 = vadd.f32 %v995, 1e-12
        %v1012 = vadd.f32 %v996, 1e-12
        %v1013 = vadd.f32 %v997, 1e-12
        %v1014 = vadd.f32 %v998, 1e-12
        %v1015 = vadd.f32 %v999, 1e-12
        %v1016 = vadd.f32 %v1000, 1e-12
        %v1017 = vadd.f32 %v1001, 1e-12
        %v1018 = vadd.f32 %v1002, 1e-12
        %v1019 = vadd.f32 %v1003, 1e-12
        %v1020 = vadd.f32 %v1004, 1e-12
        %v1021 = vadd.f32 %v1005, 1e-12
        %v1022 = vrsqrt.pop %v1006
        %v1023 = vrsqrt.pop %v1007
        %v1024 = vrsqrt.pop %v1008
        %v1025 = vrsqrt.pop %v1009
        %v1026 = vrsqrt.pop %v1010
        %v1027 = vrsqrt.pop %v1011
        %v1028 = vrsqrt.pop %v1012
        %v1029 = vrsqrt.pop %v1013
        %v1030 = vrsqrt.pop %v1014
        %v1031 = vrsqrt.pop %v1015
        %v1032 = vrsqrt.pop %v1016
        %v1033 = vrsqrt.pop %v1017
        %v1034 = vrsqrt.pop %v1018
        %v1035 = vrsqrt.pop %v1019
        %v1036 = vrsqrt.pop %v1020
        %v1037 = vrsqrt.pop %v1021
        %v1038 = vmul.f32 %v910, %v1022
        %v1039 = vmul.f32 %v911, %v1023
        %v1040 = vmul.f32 %v912, %v1024
        %v1041 = vmul.f32 %v913, %v1025
        %v1042 = vmul.f32 %v914, %v1026
        %v1043 = vmul.f32 %v915, %v1027
        %v1044 = vmul.f32 %v916, %v1028
        %v1045 = vmul.f32 %v917, %v1029
        %v1046 = vmul.f32 %v918, %v1030
        %v1047 = vmul.f32 %v919, %v1031
        %v1048 = vmul.f32 %v920, %v1032
        %v1049 = vmul.f32 %v921, %v1033
        %v1050 = vmul.f32 %v922, %v1034
        %v1051 = vmul.f32 %v923, %v1035
        %v1052 = vmul.f32 %v924, %v1036
        %v1053 = vmul.f32 %v925, %v1037
        %v1055 = vlaneseq
        %v1056 = vshrl.u32 %v1055, 7
        %v1057 = vsub.s32 0, %v1056
        %v1058 = vrot.slane %v842, %v1057
        %v1060 = vmul.f32 %v1038, %v1058
        %v1061 = vmul.f32 %v1039, %v1058
        %v1062 = vmul.f32 %v1040, %v1058
        %v1063 = vmul.f32 %v1041, %v1058
        %v1064 = vmul.f32 %v1042, %v1058
        %v1065 = vmul.f32 %v1043, %v1058
        %v1066 = vmul.f32 %v1044, %v1058
        %v1067 = vmul.f32 %v1045, %v1058
        %v1068 = vmul.f32 %v1046, %v1058
        %v1069 = vmul.f32 %v1047, %v1058
        %v1070 = vmul.f32 %v1048, %v1058
        %v1071 = vmul.f32 %v1049, %v1058
        %v1072 = vmul.f32 %v1050, %v1058
        %v1073 = vmul.f32 %v1051, %v1058
        %v1074 = vmul.f32 %v1052, %v1058
        %v1075 = vmul.f32 %v1053, %v1058
        %v1077 = vlaneseq
        %v1078 = vshrl.u32 %v1077, 7
        %v1079 = vsub.s32 0, %v1078
        %v1080 = vrot.slane %v843, %v1079
        %v1082 = vadd.f32 %v1060, %v1080
        %v1083 = vadd.f32 %v1061, %v1080
        %v1084 = vadd.f32 %v1062, %v1080
        %v1085 = vadd.f32 %v1063, %v1080
        %v1086 = vadd.f32 %v1064, %v1080
        %v1087 = vadd.f32 %v1065, %v1080
        %v1088 = vadd.f32 %v1066, %v1080
        %v1089 = vadd.f32 %v1067, %v1080
        %v1090 = vadd.f32 %v1068, %v1080
        %v1091 = vadd.f32 %v1069, %v1080
        %v1092 = vadd.f32 %v1070, %v1080
        %v1093 = vadd.f32 %v1071, %v1080
        %v1094 = vadd.f32 %v1072, %v1080
        %v1095 = vadd.f32 %v1073, %v1080
        %v1096 = vadd.f32 %v1074, %v1080
        %v1097 = vadd.f32 %v1075, %v1080
        %v1098 = vpack.c.bf16 %v1083, %v1082
        %v1099 = vpack.c.bf16 %v1085, %v1084
        %v1100 = vpack.c.bf16 %v1087, %v1086
        %v1101 = vpack.c.bf16 %v1089, %v1088
        %v1102 = vpack.c.bf16 %v1091, %v1090
        %v1103 = vpack.c.bf16 %v1093, %v1092
        %v1104 = vpack.c.bf16 %v1095, %v1094
        %v1105 = vpack.c.bf16 %v1097, %v1096
        %v1106 = vld [vmem:[%s667] sm:$0xff]
        %v1107 = vld [vmem:[%s667 + $0x8] sm:$0xff]
        %v1108 = vld [vmem:[%s667 + $0x10] sm:$0xff]
        %v1109 = vld [vmem:[%s667 + $0x18] sm:$0xff]
        %v1110 = vld [vmem:[%s667 + $0x20] sm:$0xff]
        %v1111 = vld [vmem:[%s667 + $0x28] sm:$0xff]
        %v1112 = vld [vmem:[%s667 + $0x30] sm:$0xff]
        %v1113 = vld [vmem:[%s667 + $0x38] sm:$0xff]
        %v1114 = vld [vmem:[%s671] sm:$0x3]
        %v1116 = vlaneseq
        %v1117 = vshrl.u32 %v1116, 7
        %v1118 = vsub.s32 0, %v1117
        %v1119 = vrot.slane %v1114, %v1118
        %v1120 = vlaneseq
        %v1121 = vshrl.u32 %v1120, 7
        %v1122 = vsub.s32 1, %v1121
        %v1123 = vrot.slane %v1114, %v1122
        %v1134 = vunpack.c.l.b16 %v1106
        %v1135 = vunpack.c.h.b16 %v1106
        %v1136 = vunpack.c.l.b16 %v1107
        %v1137 = vunpack.c.h.b16 %v1107
        %v1138 = vunpack.c.l.b16 %v1108
        %v1139 = vunpack.c.h.b16 %v1108
        %v1140 = vunpack.c.l.b16 %v1109
        %v1141 = vunpack.c.h.b16 %v1109
        %v1142 = vunpack.c.l.b16 %v1110
        %v1143 = vunpack.c.h.b16 %v1110
        %v1144 = vunpack.c.l.b16 %v1111
        %v1145 = vunpack.c.h.b16 %v1111
        %v1146 = vunpack.c.l.b16 %v1112
        %v1147 = vunpack.c.h.b16 %v1112
        %v1148 = vunpack.c.l.b16 %v1113
        %v1149 = vunpack.c.h.b16 %v1113
        %v1150 = vpack.c.b16 %v1136, %v1134
        %v1151 = vpack.c.b16 %v1137, %v1135
        %v1152 = vpack.c.b16 %v1140, %v1138
        %v1153 = vpack.c.b16 %v1141, %v1139
        %v1154 = vpack.c.b16 %v1144, %v1142
        %v1155 = vpack.c.b16 %v1145, %v1143
        %v1156 = vpack.c.b16 %v1148, %v1146
        %v1157 = vpack.c.b16 %v1149, %v1147
        %v1167 = vsel %vm844, %v1098, 0
        %v1170 = vsel %vm844, %v1099, 0
        %v1173 = vsel %vm844, %v1100, 0
        %v1176 = vsel %vm844, %v1101, 0
        %v1179 = vsel %vm844, %v1102, 0
        %v1182 = vsel %vm844, %v1103, 0
        %v1185 = vsel %vm844, %v1104, 0
        %v1188 = vsel %vm844, %v1105, 0
        %1190 = vmatprep.subr.bf16.mxu0 0
        %1191 = vmatpush1.bf16.msra.mxu0 0
        %1192 = vmatprep.subr.bf16.mxu0 0
        %1193 = vmatpush1.bf16.msra.mxu0 0
        %1194 = vmatprep.subr.bf16.mxu0 0
        %1195 = vmatpush1.bf16.msra.mxu0 0
        %1196 = vmatprep.subr.bf16.mxu0 0
        %1197 = vmatpush1.bf16.msra.mxu0 0
        %1198 = vmatprep.subr.bf16.mxu0 %v1157
        %1199 = vmatpush1.bf16.msra.mxu0 %v1156
        %1200 = vmatprep.subr.bf16.mxu0 %v1155
        %1201 = vmatpush1.bf16.msra.mxu0 %v1154
        %1202 = vmatprep.subr.bf16.mxu0 %v1153
        %1203 = vmatpush1.bf16.msra.mxu0 %v1152
        %1204 = vmatprep.subr.bf16.mxu0 %v1151
        %1205 = vmatpush1.bf16.msra.mxu0 %v1150
        %1206 = vmatprep.subr.bf16.mxu0 0
        %1207 = vmatpush2.bf16.msra.mxu0 0
        %1208 = vmatprep.subr.bf16.mxu0 0
        %1209 = vmatpush2.bf16.msra.mxu0 0
        %1210 = vmatprep.subr.bf16.mxu0 0
        %1211 = vmatpush2.bf16.msra.mxu0 0
        %1212 = vmatprep.subr.bf16.mxu0 0
        %1213 = vmatpush2.bf16.msra.mxu0 0
        %1214 = vmatprep.subr.bf16.mxu0 0
        %1215 = vmatpush2.bf16.msra.mxu0 0
        %1216 = vmatprep.subr.bf16.mxu0 0
        %1217 = vmatpush2.bf16.msra.mxu0 0
        %1218 = vmatprep.subr.bf16.mxu0 0
        %1219 = vmatpush2.bf16.msra.mxu0 0
        %1220 = vmatprep.subr.bf16.mxu0 0
        %1221 = vmatpush2.bf16.msra.mxu0 0
        %1222 = vmatprep.mubr.bf16.mxu0 0
        %1223 = vmatmul.mubr.bf16.gmra.mxu0 %v1167
        %v1224 = vpop.f32.mrf.mxu0
        %v1225 = vadd.f32 %v1119, %v1224
        %v1226 = vpop.f32.mrf.mxu0
        %v1227 = vadd.f32 %v1123, %v1226
        %v1228 = vpop.f32.mrf.mxu0
        %v1229 = vadd.f32 %v1119, %v1228
        %v1230 = vpop.f32.mrf.mxu0
        %v1231 = vadd.f32 %v1123, %v1230
        %1232 = vmatprep.mubr.bf16.mxu0 0
        %1233 = vmatmul.mubr.bf16.gmra.mxu0 %v1170
        %v1234 = vpop.f32.mrf.mxu0
        %v1235 = vadd.f32 %v1119, %v1234
        %v1236 = vpop.f32.mrf.mxu0
        %v1237 = vadd.f32 %v1123, %v1236
        %v1238 = vpop.f32.mrf.mxu0
        %v1239 = vadd.f32 %v1119, %v1238
        %v1240 = vpop.f32.mrf.mxu0
        %v1241 = vadd.f32 %v1123, %v1240
        %1242 = vmatprep.mubr.bf16.mxu0 0
        %1243 = vmatmul.mubr.bf16.gmra.mxu0 %v1173
        %v1244 = vpop.f32.mrf.mxu0
        %v1245 = vadd.f32 %v1119, %v1244
        %v1246 = vpop.f32.mrf.mxu0
        %v1247 = vadd.f32 %v1123, %v1246
        %v1248 = vpop.f32.mrf.mxu0
        %v1249 = vadd.f32 %v1119, %v1248
        %v1250 = vpop.f32.mrf.mxu0
        %v1251 = vadd.f32 %v1123, %v1250
        %1252 = vmatprep.mubr.bf16.mxu0 0
        %1253 = vmatmul.mubr.bf16.gmra.mxu0 %v1176
        %v1254 = vpop.f32.mrf.mxu0
        %v1255 = vadd.f32 %v1119, %v1254
        %v1256 = vpop.f32.mrf.mxu0
        %v1257 = vadd.f32 %v1123, %v1256
        %v1258 = vpop.f32.mrf.mxu0
        %v1259 = vadd.f32 %v1119, %v1258
        %v1260 = vpop.f32.mrf.mxu0
        %v1261 = vadd.f32 %v1123, %v1260
        %1262 = vmatprep.mubr.bf16.mxu0 0
        %1263 = vmatmul.mubr.bf16.gmra.mxu0 %v1179
        %v1264 = vpop.f32.mrf.mxu0
        %v1265 = vadd.f32 %v1119, %v1264
        %v1266 = vpop.f32.mrf.mxu0
        %v1267 = vadd.f32 %v1123, %v1266
        %v1268 = vpop.f32.mrf.mxu0
        %v1269 = vadd.f32 %v1119, %v1268
        %v1270 = vpop.f32.mrf.mxu0
        %v1271 = vadd.f32 %v1123, %v1270
        %1272 = vmatprep.mubr.bf16.mxu0 0
        %1273 = vmatmul.mubr.bf16.gmra.mxu0 %v1182
        %v1274 = vpop.f32.mrf.mxu0
        %v1275 = vadd.f32 %v1119, %v1274
        %v1276 = vpop.f32.mrf.mxu0
        %v1277 = vadd.f32 %v1123, %v1276
        %v1278 = vpop.f32.mrf.mxu0
        %v1279 = vadd.f32 %v1119, %v1278
        %v1280 = vpop.f32.mrf.mxu0
        %v1281 = vadd.f32 %v1123, %v1280
        %1282 = vmatprep.mubr.bf16.mxu0 0
        %1283 = vmatmul.mubr.bf16.gmra.mxu0 %v1185
        %v1284 = vpop.f32.mrf.mxu0
        %v1285 = vadd.f32 %v1119, %v1284
        %v1286 = vpop.f32.mrf.mxu0
        %v1287 = vadd.f32 %v1123, %v1286
        %v1288 = vpop.f32.mrf.mxu0
        %v1289 = vadd.f32 %v1119, %v1288
        %v1290 = vpop.f32.mrf.mxu0
        %v1291 = vadd.f32 %v1123, %v1290
        %1292 = vmatprep.mubr.bf16.mxu0 0
        %1293 = vmatmul.mubr.bf16.gmra.mxu0 %v1188
        %v1294 = vpop.f32.mrf.mxu0
        %v1295 = vadd.f32 %v1119, %v1294
        %v1296 = vpop.f32.mrf.mxu0
        %v1297 = vadd.f32 %v1123, %v1296
        %v1298 = vpop.f32.mrf.mxu0
        %v1299 = vadd.f32 %v1119, %v1298
        %v1300 = vpop.f32.mrf.mxu0
        %v1301 = vadd.f32 %v1123, %v1300
        %1302 = vdwg.mxu0
        %v1303 = vld [vmem:[%s676] sm:$0xf]
        %v1304 = vld [vmem:[%s676 + $0x4] sm:$0xf]
        %v1305 = vld [vmem:[%s676 + $0x8] sm:$0xf]
        %v1306 = vld [vmem:[%s676 + $0xc] sm:$0xf]
        %v1307 = vld [vmem:[%s676 + $0x10] sm:$0xf]
        %v1308 = vld [vmem:[%s676 + $0x14] sm:$0xf]
        %v1309 = vld [vmem:[%s676 + $0x18] sm:$0xf]
        %v1310 = vld [vmem:[%s676 + $0x1c] sm:$0xf]
        %v1311 = vpack.c.bf16 %v1229, %v1225
        %v1312 = vpack.c.bf16 %v1239, %v1235
        %v1313 = vpack.c.bf16 %v1249, %v1245
        %v1314 = vpack.c.bf16 %v1259, %v1255
        %v1315 = vpack.c.bf16 %v1269, %v1265
        %v1316 = vpack.c.bf16 %v1279, %v1275
        %v1317 = vpack.c.bf16 %v1289, %v1285
        %v1318 = vpack.c.bf16 %v1299, %v1295
        %v1319 = vpack.c.bf16 %v1231, %v1227
        %v1320 = vpack.c.bf16 %v1241, %v1237
        %v1321 = vpack.c.bf16 %v1251, %v1247
        %v1322 = vpack.c.bf16 %v1261, %v1257
        %v1323 = vpack.c.bf16 %v1271, %v1267
        %v1324 = vpack.c.bf16 %v1281, %v1277
        %v1325 = vpack.c.bf16 %v1291, %v1287
        %v1326 = vpack.c.bf16 %v1301, %v1297
        %1335 = vrot.lane.b32.xlu0 %v1311, 64
        %v1336 = vpop.permute.xlu0 %1335
        %1337 = vrot.lane.b32.xlu0 %v1312, 64
        %v1338 = vpop.permute.xlu0 %1337
        %1339 = vrot.lane.b32.xlu0 %v1313, 64
        %v1340 = vpop.permute.xlu0 %1339
        %1341 = vrot.lane.b32.xlu0 %v1314, 64
        %v1342 = vpop.permute.xlu0 %1341
        %1343 = vrot.lane.b32.xlu0 %v1315, 64
        %v1344 = vpop.permute.xlu0 %1343
        %1345 = vrot.lane.b32.xlu0 %v1316, 64
        %v1346 = vpop.permute.xlu0 %1345
        %1347 = vrot.lane.b32.xlu0 %v1317, 64
        %v1348 = vpop.permute.xlu0 %1347
        %1349 = vrot.lane.b32.xlu0 %v1318, 64
        %v1350 = vpop.permute.xlu0 %1349
        %vm1351 = vcmask 130048
        %v1353 = vsel %vm1351, %v1311, 0
        %v1356 = vsel %vm1351, %v1312, 0
        %v1359 = vsel %vm1351, %v1313, 0
        %v1362 = vsel %vm1351, %v1314, 0
        %v1365 = vsel %vm1351, %v1315, 0
        %v1368 = vsel %vm1351, %v1316, 0
        %v1371 = vsel %vm1351, %v1317, 0
        %v1374 = vsel %vm1351, %v1318, 0
        %v1377 = vsel %vm1351, %v1336, 0
        %v1380 = vsel %vm1351, %v1338, 0
        %v1383 = vsel %vm1351, %v1340, 0
        %v1386 = vsel %vm1351, %v1342, 0
        %v1389 = vsel %vm1351, %v1344, 0
        %v1392 = vsel %vm1351, %v1346, 0
        %v1395 = vsel %vm1351, %v1348, 0
        %v1398 = vsel %vm1351, %v1350, 0
        %1400 = vmatprep.subr.bf16.mxu0 0
        %1401 = vmatpush1.bf16.xpose.msra.mxu0 %v1398
        %1402 = vmatprep.subr.bf16.mxu0 0
        %1403 = vmatpush1.bf16.xpose.msra.mxu0 %v1395
        %1404 = vmatprep.subr.bf16.mxu0 0
        %1405 = vmatpush1.bf16.xpose.msra.mxu0 %v1392
        %1406 = vmatprep.subr.bf16.mxu0 0
        %1407 = vmatpush1.bf16.xpose.msra.mxu0 %v1389
        %1408 = vmatprep.subr.bf16.mxu0 0
        %1409 = vmatpush1.bf16.xpose.msra.mxu0 %v1386
        %1410 = vmatprep.subr.bf16.mxu0 0
        %1411 = vmatpush1.bf16.xpose.msra.mxu0 %v1383
        %1412 = vmatprep.subr.bf16.mxu0 0
        %1413 = vmatpush1.bf16.xpose.msra.mxu0 %v1380
        %1414 = vmatprep.subr.bf16.mxu0 0
        %1415 = vmatpush1.bf16.xpose.msra.mxu0 %v1377
        %1416 = vmatprep.subr.bf16.mxu0 0
        %1417 = vmatpush2.bf16.xpose.msra.mxu0 0
        %1418 = vmatprep.subr.bf16.mxu0 0
        %1419 = vmatpush2.bf16.xpose.msra.mxu0 0
        %1420 = vmatprep.subr.bf16.mxu0 0
        %1421 = vmatpush2.bf16.xpose.msra.mxu0 0
        %1422 = vmatprep.subr.bf16.mxu0 0
        %1423 = vmatpush2.bf16.xpose.msra.mxu0 0
        %1424 = vmatprep.subr.bf16.mxu0 0
        %1425 = vmatpush2.bf16.xpose.msra.mxu0 0
        %1426 = vmatprep.subr.bf16.mxu0 0
        %1427 = vmatpush2.bf16.xpose.msra.mxu0 0
        %1428 = vmatprep.subr.bf16.mxu0 0
        %1429 = vmatpush2.bf16.xpose.msra.mxu0 0
        %1430 = vmatprep.subr.bf16.mxu0 0
        %1431 = vmatpush2.bf16.xpose.msra.mxu0 0
        %1432 = vmatprep.mubr.bf16.mxu0 0
        %1433 = vmatmul.mubr.bf16.gmra.mxu0 %v1353
        %v1434 = vpop.f32.mrf.mxu0
        %v1435 = vadd.f32 %v826, %v1434
        %v1436 = vpop.f32.mrf.mxu0
        %v1437 = vpop.f32.mrf.mxu0
        %v1438 = vadd.f32 %v827, %v1437
        %v1439 = vpop.f32.mrf.mxu0
        %1440 = vmatprep.mubr.bf16.mxu0 0
        %1441 = vmatmul.mubr.bf16.gmra.mxu0 %v1356
        %v1442 = vpop.f32.mrf.mxu0
        %v1443 = vadd.f32 %v828, %v1442
        %v1444 = vpop.f32.mrf.mxu0
        %v1445 = vpop.f32.mrf.mxu0
        %v1446 = vadd.f32 %v829, %v1445
        %v1447 = vpop.f32.mrf.mxu0
        %1448 = vmatprep.mubr.bf16.mxu0 0
        %1449 = vmatmul.mubr.bf16.gmra.mxu0 %v1359
        %v1450 = vpop.f32.mrf.mxu0
        %v1451 = vadd.f32 %v830, %v1450
        %v1452 = vpop.f32.mrf.mxu0
        %v1453 = vpop.f32.mrf.mxu0
        %v1454 = vadd.f32 %v831, %v1453
        %v1455 = vpop.f32.mrf.mxu0
        %1456 = vmatprep.mubr.bf16.mxu0 0
        %1457 = vmatmul.mubr.bf16.gmra.mxu0 %v1362
        %v1458 = vpop.f32.mrf.mxu0
        %v1459 = vadd.f32 %v832, %v1458
        %v1460 = vpop.f32.mrf.mxu0
        %v1461 = vpop.f32.mrf.mxu0
        %v1462 = vadd.f32 %v833, %v1461
        %v1463 = vpop.f32.mrf.mxu0
        %1464 = vmatprep.mubr.bf16.mxu0 0
        %1465 = vmatmul.mubr.bf16.gmra.mxu0 %v1365
        %v1466 = vpop.f32.mrf.mxu0
        %v1467 = vadd.f32 %v834, %v1466
        %v1468 = vpop.f32.mrf.mxu0
        %v1469 = vpop.f32.mrf.mxu0
        %v1470 = vadd.f32 %v835, %v1469
        %v1471 = vpop.f32.mrf.mxu0
        %1472 = vmatprep.mubr.bf16.mxu0 0
        %1473 = vmatmul.mubr.bf16.gmra.mxu0 %v1368
        %v1474 = vpop.f32.mrf.mxu0
        %v1475 = vadd.f32 %v836, %v1474
        %v1476 = vpop.f32.mrf.mxu0
        %v1477 = vpop.f32.mrf.mxu0
        %v1478 = vadd.f32 %v837, %v1477
        %v1479 = vpop.f32.mrf.mxu0
        %1480 = vmatprep.mubr.bf16.mxu0 0
        %1481 = vmatmul.mubr.bf16.gmra.mxu0 %v1371
        %v1482 = vpop.f32.mrf.mxu0
        %v1483 = vadd.f32 %v838, %v1482
        %v1484 = vpop.f32.mrf.mxu0
        %v1485 = vpop.f32.mrf.mxu0
        %v1486 = vadd.f32 %v839, %v1485
        %v1487 = vpop.f32.mrf.mxu0
        %1488 = vmatprep.mubr.bf16.mxu0 0
        %1489 = vmatmul.mubr.bf16.gmra.mxu0 %v1374
        %v1490 = vpop.f32.mrf.mxu0
        %v1491 = vadd.f32 %v840, %v1490
        %v1492 = vpop.f32.mrf.mxu0
        %v1493 = vpop.f32.mrf.mxu0
        %v1494 = vadd.f32 %v841, %v1493
        %v1495 = vpop.f32.mrf.mxu0
        %1496 = vdwg.mxu0
        %1497 = vmax.xlane.f32.xlu0 %v1435
        %v1498 = vpop.xlane.xlu0 %1497
        %1499 = vmax.xlane.f32.xlu0 %v1438
        %v1500 = vpop.xlane.xlu0 %1499
        %1501 = vmax.xlane.f32.xlu0 %v1443
        %v1502 = vpop.xlane.xlu0 %1501
        %1503 = vmax.xlane.f32.xlu0 %v1446
        %v1504 = vpop.xlane.xlu0 %1503
        %1505 = vmax.xlane.f32.xlu0 %v1451
        %v1506 = vpop.xlane.xlu0 %1505
        %1507 = vmax.xlane.f32.xlu0 %v1454
        %v1508 = vpop.xlane.xlu0 %1507
        %1509 = vmax.xlane.f32.xlu0 %v1459
        %v1510 = vpop.xlane.xlu0 %1509
        %1511 = vmax.xlane.f32.xlu0 %v1462
        %v1512 = vpop.xlane.xlu0 %1511
        %1513 = vmax.xlane.f32.xlu0 %v1467
        %v1514 = vpop.xlane.xlu0 %1513
        %1515 = vmax.xlane.f32.xlu0 %v1470
        %v1516 = vpop.xlane.xlu0 %1515
        %1517 = vmax.xlane.f32.xlu0 %v1475
        %v1518 = vpop.xlane.xlu0 %1517
        %1519 = vmax.xlane.f32.xlu0 %v1478
        %v1520 = vpop.xlane.xlu0 %1519
        %1521 = vmax.xlane.f32.xlu0 %v1483
        %v1522 = vpop.xlane.xlu0 %1521
        %1523 = vmax.xlane.f32.xlu0 %v1486
        %v1524 = vpop.xlane.xlu0 %1523
        %1525 = vmax.xlane.f32.xlu0 %v1491
        %v1526 = vpop.xlane.xlu0 %1525
        %1527 = vmax.xlane.f32.xlu0 %v1494
        %v1528 = vpop.xlane.xlu0 %1527
        %v1529 = vsub.f32 %v1435, %v1498
        %v1530 = vsub.f32 %v1438, %v1500
        %v1531 = vsub.f32 %v1443, %v1502
        %v1532 = vsub.f32 %v1446, %v1504
        %v1533 = vsub.f32 %v1451, %v1506
        %v1534 = vsub.f32 %v1454, %v1508
        %v1535 = vsub.f32 %v1459, %v1510
        %v1536 = vsub.f32 %v1462, %v1512
        %v1537 = vsub.f32 %v1467, %v1514
        %v1538 = vsub.f32 %v1470, %v1516
        %v1539 = vsub.f32 %v1475, %v1518
        %v1540 = vsub.f32 %v1478, %v1520
        %v1541 = vsub.f32 %v1483, %v1522
        %v1542 = vsub.f32 %v1486, %v1524
        %v1543 = vsub.f32 %v1491, %v1526
        %v1544 = vsub.f32 %v1494, %v1528
        %v1545 = vmul.f32 %v1529, 1.442695
        %v1546 = vpow.pop %v1545
        %v1547 = vmul.f32 %v1530, 1.442695
        %v1548 = vpow.pop %v1547
        %v1549 = vmul.f32 %v1531, 1.442695
        %v1550 = vpow.pop %v1549
        %v1551 = vmul.f32 %v1532, 1.442695
        %v1552 = vpow.pop %v1551
        %v1553 = vmul.f32 %v1533, 1.442695
        %v1554 = vpow.pop %v1553
        %v1555 = vmul.f32 %v1534, 1.442695
        %v1556 = vpow.pop %v1555
        %v1557 = vmul.f32 %v1535, 1.442695
        %v1558 = vpow.pop %v1557
        %v1559 = vmul.f32 %v1536, 1.442695
        %v1560 = vpow.pop %v1559
        %v1561 = vmul.f32 %v1537, 1.442695
        %v1562 = vpow.pop %v1561
        %v1563 = vmul.f32 %v1538, 1.442695
        %v1564 = vpow.pop %v1563
        %v1565 = vmul.f32 %v1539, 1.442695
        %v1566 = vpow.pop %v1565
        %v1567 = vmul.f32 %v1540, 1.442695
        %v1568 = vpow.pop %v1567
        %v1569 = vmul.f32 %v1541, 1.442695
        %v1570 = vpow.pop %v1569
        %v1571 = vmul.f32 %v1542, 1.442695
        %v1572 = vpow.pop %v1571
        %v1573 = vmul.f32 %v1543, 1.442695
        %v1574 = vpow.pop %v1573
        %v1575 = vmul.f32 %v1544, 1.442695
        %v1576 = vpow.pop %v1575
        %1577 = vadd.xlane.f32.xlu0 %v1546
        %v1578 = vpop.xlane.xlu0 %1577
        %1579 = vadd.xlane.f32.xlu0 %v1548
        %v1580 = vpop.xlane.xlu0 %1579
        %1581 = vadd.xlane.f32.xlu0 %v1550
        %v1582 = vpop.xlane.xlu0 %1581
        %1583 = vadd.xlane.f32.xlu0 %v1552
        %v1584 = vpop.xlane.xlu0 %1583
        %1585 = vadd.xlane.f32.xlu0 %v1554
        %v1586 = vpop.xlane.xlu0 %1585
        %1587 = vadd.xlane.f32.xlu0 %v1556
        %v1588 = vpop.xlane.xlu0 %1587
        %1589 = vadd.xlane.f32.xlu0 %v1558
        %v1590 = vpop.xlane.xlu0 %1589
        %1591 = vadd.xlane.f32.xlu0 %v1560
        %v1592 = vpop.xlane.xlu0 %1591
        %1593 = vadd.xlane.f32.xlu0 %v1562
        %v1594 = vpop.xlane.xlu0 %1593
        %1595 = vadd.xlane.f32.xlu0 %v1564
        %v1596 = vpop.xlane.xlu0 %1595
        %1597 = vadd.xlane.f32.xlu0 %v1566
        %v1598 = vpop.xlane.xlu0 %1597
        %1599 = vadd.xlane.f32.xlu0 %v1568
        %v1600 = vpop.xlane.xlu0 %1599
        %1601 = vadd.xlane.f32.xlu0 %v1570
        %v1602 = vpop.xlane.xlu0 %1601
        %1603 = vadd.xlane.f32.xlu0 %v1572
        %v1604 = vpop.xlane.xlu0 %1603
        %1605 = vadd.xlane.f32.xlu0 %v1574
        %v1606 = vpop.xlane.xlu0 %1605
        %1607 = vadd.xlane.f32.xlu0 %v1576
        %v1608 = vpop.xlane.xlu0 %1607
        %v1609 = vrcp.pop %v1578
        %v1610 = vmul.f32 %v1546, %v1609
        %v1611 = vrcp.pop %v1580
        %v1612 = vmul.f32 %v1548, %v1611
        %v1613 = vrcp.pop %v1582
        %v1614 = vmul.f32 %v1550, %v1613
        %v1615 = vrcp.pop %v1584
        %v1616 = vmul.f32 %v1552, %v1615
        %v1617 = vrcp.pop %v1586
        %v1618 = vmul.f32 %v1554, %v1617
        %v1619 = vrcp.pop %v1588
        %v1620 = vmul.f32 %v1556, %v1619
        %v1621 = vrcp.pop %v1590
        %v1622 = vmul.f32 %v1558, %v1621
        %v1623 = vrcp.pop %v1592
        %v1624 = vmul.f32 %v1560, %v1623
        %v1625 = vrcp.pop %v1594
        %v1626 = vmul.f32 %v1562, %v1625
        %v1627 = vrcp.pop %v1596
        %v1628 = vmul.f32 %v1564, %v1627
        %v1629 = vrcp.pop %v1598
        %v1630 = vmul.f32 %v1566, %v1629
        %v1631 = vrcp.pop %v1600
        %v1632 = vmul.f32 %v1568, %v1631
        %v1633 = vrcp.pop %v1602
        %v1634 = vmul.f32 %v1570, %v1633
        %v1635 = vrcp.pop %v1604
        %v1636 = vmul.f32 %v1572, %v1635
        %v1637 = vrcp.pop %v1606
        %v1638 = vmul.f32 %v1574, %v1637
        %v1639 = vrcp.pop %v1608
        %v1640 = vmul.f32 %v1576, %v1639
        %v1641 = vpack.c.bf16 %v1612, %v1610
        %v1642 = vpack.c.bf16 %v1616, %v1614
        %v1643 = vpack.c.bf16 %v1620, %v1618
        %v1644 = vpack.c.bf16 %v1624, %v1622
        %v1645 = vpack.c.bf16 %v1628, %v1626
        %v1646 = vpack.c.bf16 %v1632, %v1630
        %v1647 = vpack.c.bf16 %v1636, %v1634
        %v1648 = vpack.c.bf16 %v1640, %v1638
        %1649 = vmatprep.subr.bf16.mxu0 0
        %1650 = vmatpush1.bf16.msra.mxu0 %v1326
        %1651 = vmatprep.subr.bf16.mxu0 0
        %1652 = vmatpush1.bf16.msra.mxu0 %v1325
        %1653 = vmatprep.subr.bf16.mxu0 0
        %1654 = vmatpush1.bf16.msra.mxu0 %v1324
        %1655 = vmatprep.subr.bf16.mxu0 0
        %1656 = vmatpush1.bf16.msra.mxu0 %v1323
        %1657 = vmatprep.subr.bf16.mxu0 0
        %1658 = vmatpush1.bf16.msra.mxu0 %v1322
        %1659 = vmatprep.subr.bf16.mxu0 0
        %1660 = vmatpush1.bf16.msra.mxu0 %v1321
        %1661 = vmatprep.subr.bf16.mxu0 0
        %1662 = vmatpush1.bf16.msra.mxu0 %v1320
        %1663 = vmatprep.subr.bf16.mxu0 0
        %1664 = vmatpush1.bf16.msra.mxu0 %v1319
        %1665 = vmatprep.subr.bf16.mxu0 0
        %1666 = vmatpush2.bf16.msra.mxu0 0
        %1667 = vmatprep.subr.bf16.mxu0 0
        %1668 = vmatpush2.bf16.msra.mxu0 0
        %1669 = vmatprep.subr.bf16.mxu0 0
        %1670 = vmatpush2.bf16.msra.mxu0 0
        %1671 = vmatprep.subr.bf16.mxu0 0
        %1672 = vmatpush2.bf16.msra.mxu0 0
        %1673 = vmatprep.subr.bf16.mxu0 0
        %1674 = vmatpush2.bf16.msra.mxu0 0
        %1675 = vmatprep.subr.bf16.mxu0 0
        %1676 = vmatpush2.bf16.msra.mxu0 0
        %1677 = vmatprep.subr.bf16.mxu0 0
        %1678 = vmatpush2.bf16.msra.mxu0 0
        %1679 = vmatprep.subr.bf16.mxu0 0
        %1680 = vmatpush2.bf16.msra.mxu0 0
        %1681 = vmatprep.mubr.bf16.mxu0 0
        %1682 = vmatmul.mubr.bf16.gmra.mxu0 %v1641
        %v1683 = vpop.f32.mrf.mxu0
        %v1684 = vadd.f32 0.0, %v1683
        %v1685 = vpop.f32.mrf.mxu0
        %v1686 = vpop.f32.mrf.mxu0
        %v1687 = vadd.f32 0.0, %v1686
        %v1688 = vpop.f32.mrf.mxu0
        %1689 = vmatprep.mubr.bf16.mxu0 0
        %1690 = vmatmul.mubr.bf16.gmra.mxu0 %v1642
        %v1691 = vpop.f32.mrf.mxu0
        %v1692 = vadd.f32 0.0, %v1691
        %v1693 = vpop.f32.mrf.mxu0
        %v1694 = vpop.f32.mrf.mxu0
        %v1695 = vadd.f32 0.0, %v1694
        %v1696 = vpop.f32.mrf.mxu0
        %1697 = vmatprep.mubr.bf16.mxu0 0
        %1698 = vmatmul.mubr.bf16.gmra.mxu0 %v1643
        %v1699 = vpop.f32.mrf.mxu0
        %v1700 = vadd.f32 0.0, %v1699
        %v1701 = vpop.f32.mrf.mxu0
        %v1702 = vpop.f32.mrf.mxu0
        %v1703 = vadd.f32 0.0, %v1702
        %v1704 = vpop.f32.mrf.mxu0
        %1705 = vmatprep.mubr.bf16.mxu0 0
        %1706 = vmatmul.mubr.bf16.gmra.mxu0 %v1644
        %v1707 = vpop.f32.mrf.mxu0
        %v1708 = vadd.f32 0.0, %v1707
        %v1709 = vpop.f32.mrf.mxu0
        %v1710 = vpop.f32.mrf.mxu0
        %v1711 = vadd.f32 0.0, %v1710
        %v1712 = vpop.f32.mrf.mxu0
        %1713 = vmatprep.mubr.bf16.mxu0 0
        %1714 = vmatmul.mubr.bf16.gmra.mxu0 %v1645
        %v1715 = vpop.f32.mrf.mxu0
        %v1716 = vadd.f32 0.0, %v1715
        %v1717 = vpop.f32.mrf.mxu0
        %v1718 = vpop.f32.mrf.mxu0
        %v1719 = vadd.f32 0.0, %v1718
        %v1720 = vpop.f32.mrf.mxu0
        %1721 = vmatprep.mubr.bf16.mxu0 0
        %1722 = vmatmul.mubr.bf16.gmra.mxu0 %v1646
        %v1723 = vpop.f32.mrf.mxu0
        %v1724 = vadd.f32 0.0, %v1723
        %v1725 = vpop.f32.mrf.mxu0
        %v1726 = vpop.f32.mrf.mxu0
        %v1727 = vadd.f32 0.0, %v1726
        %v1728 = vpop.f32.mrf.mxu0
        %1729 = vmatprep.mubr.bf16.mxu0 0
        %1730 = vmatmul.mubr.bf16.gmra.mxu0 %v1647
        %v1731 = vpop.f32.mrf.mxu0
        %v1732 = vadd.f32 0.0, %v1731
        %v1733 = vpop.f32.mrf.mxu0
        %v1734 = vpop.f32.mrf.mxu0
        %v1735 = vadd.f32 0.0, %v1734
        %v1736 = vpop.f32.mrf.mxu0
        %1737 = vmatprep.mubr.bf16.mxu0 0
        %1738 = vmatmul.mubr.bf16.gmra.mxu0 %v1648
        %v1739 = vpop.f32.mrf.mxu0
        %v1740 = vadd.f32 0.0, %v1739
        %v1741 = vpop.f32.mrf.mxu0
        %v1742 = vpop.f32.mrf.mxu0
        %v1743 = vadd.f32 0.0, %v1742
        %v1744 = vpop.f32.mrf.mxu0
        %1745 = vdwg.mxu0
        %v1746 = vpack.c.bf16 %v1687, %v1684
        %v1747 = vpack.c.bf16 %v1695, %v1692
        %v1748 = vpack.c.bf16 %v1703, %v1700
        %v1749 = vpack.c.bf16 %v1711, %v1708
        %v1750 = vpack.c.bf16 %v1719, %v1716
        %v1751 = vpack.c.bf16 %v1727, %v1724
        %v1752 = vpack.c.bf16 %v1735, %v1732
        %v1753 = vpack.c.bf16 %v1743, %v1740
        %1754 = vrot.lane.b32.xlu0 %v1311, 112
        %v1755 = vpop.permute.xlu0 %1754
        %1756 = vrot.lane.b32.xlu0 %v1312, 112
        %v1757 = vpop.permute.xlu0 %1756
        %1758 = vrot.lane.b32.xlu0 %v1313, 112
        %v1759 = vpop.permute.xlu0 %1758
        %1760 = vrot.lane.b32.xlu0 %v1314, 112
        %v1761 = vpop.permute.xlu0 %1760
        %1762 = vrot.lane.b32.xlu0 %v1315, 112
        %v1763 = vpop.permute.xlu0 %1762
        %1764 = vrot.lane.b32.xlu0 %v1316, 112
        %v1765 = vpop.permute.xlu0 %1764
        %1766 = vrot.lane.b32.xlu0 %v1317, 112
        %v1767 = vpop.permute.xlu0 %1766
        %1768 = vrot.lane.b32.xlu0 %v1318, 112
        %v1769 = vpop.permute.xlu0 %1768
        %1770 = vrot.lane.b32.xlu0 %v1311, 48
        %v1771 = vpop.permute.xlu0 %1770
        %1772 = vrot.lane.b32.xlu0 %v1312, 48
        %v1773 = vpop.permute.xlu0 %1772
        %1774 = vrot.lane.b32.xlu0 %v1313, 48
        %v1775 = vpop.permute.xlu0 %1774
        %1776 = vrot.lane.b32.xlu0 %v1314, 48
        %v1777 = vpop.permute.xlu0 %1776
        %1778 = vrot.lane.b32.xlu0 %v1315, 48
        %v1779 = vpop.permute.xlu0 %1778
        %1780 = vrot.lane.b32.xlu0 %v1316, 48
        %v1781 = vpop.permute.xlu0 %1780
        %1782 = vrot.lane.b32.xlu0 %v1317, 48
        %v1783 = vpop.permute.xlu0 %1782
        %1784 = vrot.lane.b32.xlu0 %v1318, 48
        %v1785 = vpop.permute.xlu0 %1784
        %v1787 = vsel %vm1351, %v1755, 0
        %v1790 = vsel %vm1351, %v1757, 0
        %v1793 = vsel %vm1351, %v1759, 0
        %v1796 = vsel %vm1351, %v1761, 0
        %v1799 = vsel %vm1351, %v1763, 0
        %v1802 = vsel %vm1351, %v1765, 0
        %v1805 = vsel %vm1351, %v1767, 0
        %v1808 = vsel %vm1351, %v1769, 0
        %v1811 = vsel %vm1351, %v1771, 0
        %v1814 = vsel %vm1351, %v1773, 0
        %v1817 = vsel %vm1351, %v1775, 0
        %v1820 = vsel %vm1351, %v1777, 0
        %v1823 = vsel %vm1351, %v1779, 0
        %v1826 = vsel %vm1351, %v1781, 0
        %v1829 = vsel %vm1351, %v1783, 0
        %v1832 = vsel %vm1351, %v1785, 0
        %1834 = vmatprep.subr.bf16.mxu0 0
        %1835 = vmatpush1.bf16.xpose.msra.mxu0 %v1832
        %1836 = vmatprep.subr.bf16.mxu0 0
        %1837 = vmatpush1.bf16.xpose.msra.mxu0 %v1829
        %1838 = vmatprep.subr.bf16.mxu0 0
        %1839 = vmatpush1.bf16.xpose.msra.mxu0 %v1826
        %1840 = vmatprep.subr.bf16.mxu0 0
        %1841 = vmatpush1.bf16.xpose.msra.mxu0 %v1823
        %1842 = vmatprep.subr.bf16.mxu0 0
        %1843 = vmatpush1.bf16.xpose.msra.mxu0 %v1820
        %1844 = vmatprep.subr.bf16.mxu0 0
        %1845 = vmatpush1.bf16.xpose.msra.mxu0 %v1817
        %1846 = vmatprep.subr.bf16.mxu0 0
        %1847 = vmatpush1.bf16.xpose.msra.mxu0 %v1814
        %1848 = vmatprep.subr.bf16.mxu0 0
        %1849 = vmatpush1.bf16.xpose.msra.mxu0 %v1811
        %1850 = vmatprep.subr.bf16.mxu0 0
        %1851 = vmatpush2.bf16.xpose.msra.mxu0 0
        %1852 = vmatprep.subr.bf16.mxu0 0
        %1853 = vmatpush2.bf16.xpose.msra.mxu0 0
        %1854 = vmatprep.subr.bf16.mxu0 0
        %1855 = vmatpush2.bf16.xpose.msra.mxu0 0
        %1856 = vmatprep.subr.bf16.mxu0 0
        %1857 = vmatpush2.bf16.xpose.msra.mxu0 0
        %1858 = vmatprep.subr.bf16.mxu0 0
        %1859 = vmatpush2.bf16.xpose.msra.mxu0 0
        %1860 = vmatprep.subr.bf16.mxu0 0
        %1861 = vmatpush2.bf16.xpose.msra.mxu0 0
        %1862 = vmatprep.subr.bf16.mxu0 0
        %1863 = vmatpush2.bf16.xpose.msra.mxu0 0
        %1864 = vmatprep.subr.bf16.mxu0 0
        %1865 = vmatpush2.bf16.xpose.msra.mxu0 0
        %1866 = vmatprep.mubr.bf16.mxu0 0
        %1867 = vmatmul.mubr.bf16.gmra.mxu0 %v1787
        %v1868 = vpop.f32.mrf.mxu0
        %v1869 = vadd.f32 %v826, %v1868
        %v1870 = vpop.f32.mrf.mxu0
        %v1871 = vpop.f32.mrf.mxu0
        %v1872 = vadd.f32 %v827, %v1871
        %v1873 = vpop.f32.mrf.mxu0
        %1874 = vmatprep.mubr.bf16.mxu0 0
        %1875 = vmatmul.mubr.bf16.gmra.mxu0 %v1790
        %v1876 = vpop.f32.mrf.mxu0
        %v1877 = vadd.f32 %v828, %v1876
        %v1878 = vpop.f32.mrf.mxu0
        %v1879 = vpop.f32.mrf.mxu0
        %v1880 = vadd.f32 %v829, %v1879
        %v1881 = vpop.f32.mrf.mxu0
        %1882 = vmatprep.mubr.bf16.mxu0 0
        %1883 = vmatmul.mubr.bf16.gmra.mxu0 %v1793
        %v1884 = vpop.f32.mrf.mxu0
        %v1885 = vadd.f32 %v830, %v1884
        %v1886 = vpop.f32.mrf.mxu0
        %v1887 = vpop.f32.mrf.mxu0
        %v1888 = vadd.f32 %v831, %v1887
        %v1889 = vpop.f32.mrf.mxu0
        %1890 = vmatprep.mubr.bf16.mxu0 0
        %1891 = vmatmul.mubr.bf16.gmra.mxu0 %v1796
        %v1892 = vpop.f32.mrf.mxu0
        %v1893 = vadd.f32 %v832, %v1892
        %v1894 = vpop.f32.mrf.mxu0
        %v1895 = vpop.f32.mrf.mxu0
        %v1896 = vadd.f32 %v833, %v1895
        %v1897 = vpop.f32.mrf.mxu0
        %1898 = vmatprep.mubr.bf16.mxu0 0
        %1899 = vmatmul.mubr.bf16.gmra.mxu0 %v1799
        %v1900 = vpop.f32.mrf.mxu0
        %v1901 = vadd.f32 %v834, %v1900
        %v1902 = vpop.f32.mrf.mxu0
        %v1903 = vpop.f32.mrf.mxu0
        %v1904 = vadd.f32 %v835, %v1903
        %v1905 = vpop.f32.mrf.mxu0
        %1906 = vmatprep.mubr.bf16.mxu0 0
        %1907 = vmatmul.mubr.bf16.gmra.mxu0 %v1802
        %v1908 = vpop.f32.mrf.mxu0
        %v1909 = vadd.f32 %v836, %v1908
        %v1910 = vpop.f32.mrf.mxu0
        %v1911 = vpop.f32.mrf.mxu0
        %v1912 = vadd.f32 %v837, %v1911
        %v1913 = vpop.f32.mrf.mxu0
        %1914 = vmatprep.mubr.bf16.mxu0 0
        %1915 = vmatmul.mubr.bf16.gmra.mxu0 %v1805
        %v1916 = vpop.f32.mrf.mxu0
        %v1917 = vadd.f32 %v838, %v1916
        %v1918 = vpop.f32.mrf.mxu0
        %v1919 = vpop.f32.mrf.mxu0
        %v1920 = vadd.f32 %v839, %v1919
        %v1921 = vpop.f32.mrf.mxu0
        %1922 = vmatprep.mubr.bf16.mxu0 0
        %1923 = vmatmul.mubr.bf16.gmra.mxu0 %v1808
        %v1924 = vpop.f32.mrf.mxu0
        %v1925 = vadd.f32 %v840, %v1924
        %v1926 = vpop.f32.mrf.mxu0
        %v1927 = vpop.f32.mrf.mxu0
        %v1928 = vadd.f32 %v841, %v1927
        %v1929 = vpop.f32.mrf.mxu0
        %1930 = vdwg.mxu0
        %1931 = vmax.xlane.f32.xlu0 %v1869
        %v1932 = vpop.xlane.xlu0 %1931
        %1933 = vmax.xlane.f32.xlu0 %v1872
        %v1934 = vpop.xlane.xlu0 %1933
        %1935 = vmax.xlane.f32.xlu0 %v1877
        %v1936 = vpop.xlane.xlu0 %1935
        %1937 = vmax.xlane.f32.xlu0 %v1880
        %v1938 = vpop.xlane.xlu0 %1937
        %1939 = vmax.xlane.f32.xlu0 %v1885
        %v1940 = vpop.xlane.xlu0 %1939
        %1941 = vmax.xlane.f32.xlu0 %v1888
        %v1942 = vpop.xlane.xlu0 %1941
        %1943 = vmax.xlane.f32.xlu0 %v1893
        %v1944 = vpop.xlane.xlu0 %1943
        %1945 = vmax.xlane.f32.xlu0 %v1896
        %v1946 = vpop.xlane.xlu0 %1945
        %1947 = vmax.xlane.f32.xlu0 %v1901
        %v1948 = vpop.xlane.xlu0 %1947
        %1949 = vmax.xlane.f32.xlu0 %v1904
        %v1950 = vpop.xlane.xlu0 %1949
        %1951 = vmax.xlane.f32.xlu0 %v1909
        %v1952 = vpop.xlane.xlu0 %1951
        %1953 = vmax.xlane.f32.xlu0 %v1912
        %v1954 = vpop.xlane.xlu0 %1953
        %1955 = vmax.xlane.f32.xlu0 %v1917
        %v1956 = vpop.xlane.xlu0 %1955
        %1957 = vmax.xlane.f32.xlu0 %v1920
        %v1958 = vpop.xlane.xlu0 %1957
        %1959 = vmax.xlane.f32.xlu0 %v1925
        %v1960 = vpop.xlane.xlu0 %1959
        %1961 = vmax.xlane.f32.xlu0 %v1928
        %v1962 = vpop.xlane.xlu0 %1961
        %v1963 = vsub.f32 %v1869, %v1932
        %v1964 = vsub.f32 %v1872, %v1934
        %v1965 = vsub.f32 %v1877, %v1936
        %v1966 = vsub.f32 %v1880, %v1938
        %v1967 = vsub.f32 %v1885, %v1940
        %v1968 = vsub.f32 %v1888, %v1942
        %v1969 = vsub.f32 %v1893, %v1944
        %v1970 = vsub.f32 %v1896, %v1946
        %v1971 = vsub.f32 %v1901, %v1948
        %v1972 = vsub.f32 %v1904, %v1950
        %v1973 = vsub.f32 %v1909, %v1952
        %v1974 = vsub.f32 %v1912, %v1954
        %v1975 = vsub.f32 %v1917, %v1956
        %v1976 = vsub.f32 %v1920, %v1958
        %v1977 = vsub.f32 %v1925, %v1960
        %v1978 = vsub.f32 %v1928, %v1962
        %v1979 = vmul.f32 %v1963, 1.442695
        %v1980 = vpow.pop %v1979
        %v1981 = vmul.f32 %v1964, 1.442695
        %v1982 = vpow.pop %v1981
        %v1983 = vmul.f32 %v1965, 1.442695
        %v1984 = vpow.pop %v1983
        %v1985 = vmul.f32 %v1966, 1.442695
        %v1986 = vpow.pop %v1985
        %v1987 = vmul.f32 %v1967, 1.442695
        %v1988 = vpow.pop %v1987
        %v1989 = vmul.f32 %v1968, 1.442695
        %v1990 = vpow.pop %v1989
        %v1991 = vmul.f32 %v1969, 1.442695
        %v1992 = vpow.pop %v1991
        %v1993 = vmul.f32 %v1970, 1.442695
        %v1994 = vpow.pop %v1993
        %v1995 = vmul.f32 %v1971, 1.442695
        %v1996 = vpow.pop %v1995
        %v1997 = vmul.f32 %v1972, 1.442695
        %v1998 = vpow.pop %v1997
        %v1999 = vmul.f32 %v1973, 1.442695
        %v2000 = vpow.pop %v1999
        %v2001 = vmul.f32 %v1974, 1.442695
        %v2002 = vpow.pop %v2001
        %v2003 = vmul.f32 %v1975, 1.442695
        %v2004 = vpow.pop %v2003
        %v2005 = vmul.f32 %v1976, 1.442695
        %v2006 = vpow.pop %v2005
        %v2007 = vmul.f32 %v1977, 1.442695
        %v2008 = vpow.pop %v2007
        %v2009 = vmul.f32 %v1978, 1.442695
        %v2010 = vpow.pop %v2009
        %2011 = vadd.xlane.f32.xlu0 %v1980
        %v2012 = vpop.xlane.xlu0 %2011
        %2013 = vadd.xlane.f32.xlu0 %v1982
        %v2014 = vpop.xlane.xlu0 %2013
        %2015 = vadd.xlane.f32.xlu0 %v1984
        %v2016 = vpop.xlane.xlu0 %2015
        %2017 = vadd.xlane.f32.xlu0 %v1986
        %v2018 = vpop.xlane.xlu0 %2017
        %2019 = vadd.xlane.f32.xlu0 %v1988
        %v2020 = vpop.xlane.xlu0 %2019
        %2021 = vadd.xlane.f32.xlu0 %v1990
        %v2022 = vpop.xlane.xlu0 %2021
        %2023 = vadd.xlane.f32.xlu0 %v1992
        %v2024 = vpop.xlane.xlu0 %2023
        %2025 = vadd.xlane.f32.xlu0 %v1994
        %v2026 = vpop.xlane.xlu0 %2025
        %2027 = vadd.xlane.f32.xlu0 %v1996
        %v2028 = vpop.xlane.xlu0 %2027
        %2029 = vadd.xlane.f32.xlu0 %v1998
        %v2030 = vpop.xlane.xlu0 %2029
        %2031 = vadd.xlane.f32.xlu0 %v2000
        %v2032 = vpop.xlane.xlu0 %2031
        %2033 = vadd.xlane.f32.xlu0 %v2002
        %v2034 = vpop.xlane.xlu0 %2033
        %2035 = vadd.xlane.f32.xlu0 %v2004
        %v2036 = vpop.xlane.xlu0 %2035
        %2037 = vadd.xlane.f32.xlu0 %v2006
        %v2038 = vpop.xlane.xlu0 %2037
        %2039 = vadd.xlane.f32.xlu0 %v2008
        %v2040 = vpop.xlane.xlu0 %2039
        %2041 = vadd.xlane.f32.xlu0 %v2010
        %v2042 = vpop.xlane.xlu0 %2041
        %v2043 = vrcp.pop %v2012
        %v2044 = vmul.f32 %v1980, %v2043
        %v2045 = vrcp.pop %v2014
        %v2046 = vmul.f32 %v1982, %v2045
        %v2047 = vrcp.pop %v2016
        %v2048 = vmul.f32 %v1984, %v2047
        %v2049 = vrcp.pop %v2018
        %v2050 = vmul.f32 %v1986, %v2049
        %v2051 = vrcp.pop %v2020
        %v2052 = vmul.f32 %v1988, %v2051
        %v2053 = vrcp.pop %v2022
        %v2054 = vmul.f32 %v1990, %v2053
        %v2055 = vrcp.pop %v2024
        %v2056 = vmul.f32 %v1992, %v2055
        %v2057 = vrcp.pop %v2026
        %v2058 = vmul.f32 %v1994, %v2057
        %v2059 = vrcp.pop %v2028
        %v2060 = vmul.f32 %v1996, %v2059
        %v2061 = vrcp.pop %v2030
        %v2062 = vmul.f32 %v1998, %v2061
        %v2063 = vrcp.pop %v2032
        %v2064 = vmul.f32 %v2000, %v2063
        %v2065 = vrcp.pop %v2034
        %v2066 = vmul.f32 %v2002, %v2065
        %v2067 = vrcp.pop %v2036
        %v2068 = vmul.f32 %v2004, %v2067
        %v2069 = vrcp.pop %v2038
        %v2070 = vmul.f32 %v2006, %v2069
        %v2071 = vrcp.pop %v2040
        %v2072 = vmul.f32 %v2008, %v2071
        %v2073 = vrcp.pop %v2042
        %v2074 = vmul.f32 %v2010, %v2073
        %v2075 = vpack.c.bf16 %v2046, %v2044
        %v2076 = vpack.c.bf16 %v2050, %v2048
        %v2077 = vpack.c.bf16 %v2054, %v2052
        %v2078 = vpack.c.bf16 %v2058, %v2056
        %v2079 = vpack.c.bf16 %v2062, %v2060
        %v2080 = vpack.c.bf16 %v2066, %v2064
        %v2081 = vpack.c.bf16 %v2070, %v2068
        %v2082 = vpack.c.bf16 %v2074, %v2072
        %2091 = vrot.lane.b32.xlu0 %v1319, 112
        %v2092 = vpop.permute.xlu0 %2091
        %2093 = vrot.lane.b32.xlu0 %v1320, 112
        %v2094 = vpop.permute.xlu0 %2093
        %2095 = vrot.lane.b32.xlu0 %v1321, 112
        %v2096 = vpop.permute.xlu0 %2095
        %2097 = vrot.lane.b32.xlu0 %v1322, 112
        %v2098 = vpop.permute.xlu0 %2097
        %2099 = vrot.lane.b32.xlu0 %v1323, 112
        %v2100 = vpop.permute.xlu0 %2099
        %2101 = vrot.lane.b32.xlu0 %v1324, 112
        %v2102 = vpop.permute.xlu0 %2101
        %2103 = vrot.lane.b32.xlu0 %v1325, 112
        %v2104 = vpop.permute.xlu0 %2103
        %2105 = vrot.lane.b32.xlu0 %v1326, 112
        %v2106 = vpop.permute.xlu0 %2105
        %2115 = vmatprep.subr.bf16.mxu0 0
        %2116 = vmatpush1.bf16.msra.mxu0 %v2106
        %2117 = vmatprep.subr.bf16.mxu0 0
        %2118 = vmatpush1.bf16.msra.mxu0 %v2104
        %2119 = vmatprep.subr.bf16.mxu0 0
        %2120 = vmatpush1.bf16.msra.mxu0 %v2102
        %2121 = vmatprep.subr.bf16.mxu0 0
        %2122 = vmatpush1.bf16.msra.mxu0 %v2100
        %2123 = vmatprep.subr.bf16.mxu0 0
        %2124 = vmatpush1.bf16.msra.mxu0 %v2098
        %2125 = vmatprep.subr.bf16.mxu0 0
        %2126 = vmatpush1.bf16.msra.mxu0 %v2096
        %2127 = vmatprep.subr.bf16.mxu0 0
        %2128 = vmatpush1.bf16.msra.mxu0 %v2094
        %2129 = vmatprep.subr.bf16.mxu0 0
        %2130 = vmatpush1.bf16.msra.mxu0 %v2092
        %2131 = vmatprep.subr.bf16.mxu0 0
        %2132 = vmatpush2.bf16.msra.mxu0 0
        %2133 = vmatprep.subr.bf16.mxu0 0
        %2134 = vmatpush2.bf16.msra.mxu0 0
        %2135 = vmatprep.subr.bf16.mxu0 0
        %2136 = vmatpush2.bf16.msra.mxu0 0
        %2137 = vmatprep.subr.bf16.mxu0 0
        %2138 = vmatpush2.bf16.msra.mxu0 0
        %2139 = vmatprep.subr.bf16.mxu0 0
        %2140 = vmatpush2.bf16.msra.mxu0 0
        %2141 = vmatprep.subr.bf16.mxu0 0
        %2142 = vmatpush2.bf16.msra.mxu0 0
        %2143 = vmatprep.subr.bf16.mxu0 0
        %2144 = vmatpush2.bf16.msra.mxu0 0
        %2145 = vmatprep.subr.bf16.mxu0 0
        %2146 = vmatpush2.bf16.msra.mxu0 0
        %2147 = vmatprep.mubr.bf16.mxu0 0
        %2148 = vmatmul.mubr.bf16.gmra.mxu0 %v2075
        %v2149 = vpop.f32.mrf.mxu0
        %v2150 = vadd.f32 0.0, %v2149
        %v2151 = vpop.f32.mrf.mxu0
        %v2152 = vpop.f32.mrf.mxu0
        %v2153 = vadd.f32 0.0, %v2152
        %v2154 = vpop.f32.mrf.mxu0
        %2155 = vmatprep.mubr.bf16.mxu0 0
        %2156 = vmatmul.mubr.bf16.gmra.mxu0 %v2076
        %v2157 = vpop.f32.mrf.mxu0
        %v2158 = vadd.f32 0.0, %v2157
        %v2159 = vpop.f32.mrf.mxu0
        %v2160 = vpop.f32.mrf.mxu0
        %v2161 = vadd.f32 0.0, %v2160
        %v2162 = vpop.f32.mrf.mxu0
        %2163 = vmatprep.mubr.bf16.mxu0 0
        %2164 = vmatmul.mubr.bf16.gmra.mxu0 %v2077
        %v2165 = vpop.f32.mrf.mxu0
        %v2166 = vadd.f32 0.0, %v2165
        %v2167 = vpop.f32.mrf.mxu0
        %v2168 = vpop.f32.mrf.mxu0
        %v2169 = vadd.f32 0.0, %v2168
        %v2170 = vpop.f32.mrf.mxu0
        %2171 = vmatprep.mubr.bf16.mxu0 0
        %2172 = vmatmul.mubr.bf16.gmra.mxu0 %v2078
        %v2173 = vpop.f32.mrf.mxu0
        %v2174 = vadd.f32 0.0, %v2173
        %v2175 = vpop.f32.mrf.mxu0
        %v2176 = vpop.f32.mrf.mxu0
        %v2177 = vadd.f32 0.0, %v2176
        %v2178 = vpop.f32.mrf.mxu0
        %2179 = vmatprep.mubr.bf16.mxu0 0
        %2180 = vmatmul.mubr.bf16.gmra.mxu0 %v2079
        %v2181 = vpop.f32.mrf.mxu0
        %v2182 = vadd.f32 0.0, %v2181
        %v2183 = vpop.f32.mrf.mxu0
        %v2184 = vpop.f32.mrf.mxu0
        %v2185 = vadd.f32 0.0, %v2184
        %v2186 = vpop.f32.mrf.mxu0
        %2187 = vmatprep.mubr.bf16.mxu0 0
        %2188 = vmatmul.mubr.bf16.gmra.mxu0 %v2080
        %v2189 = vpop.f32.mrf.mxu0
        %v2190 = vadd.f32 0.0, %v2189
        %v2191 = vpop.f32.mrf.mxu0
        %v2192 = vpop.f32.mrf.mxu0
        %v2193 = vadd.f32 0.0, %v2192
        %v2194 = vpop.f32.mrf.mxu0
        %2195 = vmatprep.mubr.bf16.mxu0 0
        %2196 = vmatmul.mubr.bf16.gmra.mxu0 %v2081
        %v2197 = vpop.f32.mrf.mxu0
        %v2198 = vadd.f32 0.0, %v2197
        %v2199 = vpop.f32.mrf.mxu0
        %v2200 = vpop.f32.mrf.mxu0
        %v2201 = vadd.f32 0.0, %v2200
        %v2202 = vpop.f32.mrf.mxu0
        %2203 = vmatprep.mubr.bf16.mxu0 0
        %2204 = vmatmul.mubr.bf16.gmra.mxu0 %v2082
        %v2205 = vpop.f32.mrf.mxu0
        %v2206 = vadd.f32 0.0, %v2205
        %v2207 = vpop.f32.mrf.mxu0
        %v2208 = vpop.f32.mrf.mxu0
        %v2209 = vadd.f32 0.0, %v2208
        %v2210 = vpop.f32.mrf.mxu0
        %2211 = vdwg.mxu0
        %v2212 = vpack.c.bf16 %v2153, %v2150
        %v2213 = vpack.c.bf16 %v2161, %v2158
        %v2214 = vpack.c.bf16 %v2169, %v2166
        %v2215 = vpack.c.bf16 %v2177, %v2174
        %v2216 = vpack.c.bf16 %v2185, %v2182
        %v2217 = vpack.c.bf16 %v2193, %v2190
        %v2218 = vpack.c.bf16 %v2201, %v2198
        %v2219 = vpack.c.bf16 %v2209, %v2206
        %v2222 = vunpack.c.l.b16 %v1305
        %v2223 = vunpack.c.l.b16 %v1306
        %v2224 = vpack.c.b16 %v2223, %v2222
        %v2227 = vsel %vm1351, %v2212, 0
        %v2230 = vsel %vm1351, %v2213, 0
        %v2233 = vsel %vm1351, %v2214, 0
        %v2236 = vsel %vm1351, %v2215, 0
        %v2239 = vsel %vm1351, %v2216, 0
        %v2242 = vsel %vm1351, %v2217, 0
        %v2245 = vsel %vm1351, %v2218, 0
        %v2248 = vsel %vm1351, %v2219, 0
        %2250 = vmatprep.subr.bf16.mxu0 0
        %2251 = vmatpush1.bf16.msra.mxu0 0
        %2252 = vmatprep.subr.bf16.mxu0 0
        %2253 = vmatpush1.bf16.msra.mxu0 0
        %2254 = vmatprep.subr.bf16.mxu0 0
        %2255 = vmatpush1.bf16.msra.mxu0 0
        %2256 = vmatprep.subr.bf16.mxu0 0
        %2257 = vmatpush1.bf16.msra.mxu0 0
        %2258 = vmatprep.subr.bf16.mxu0 0
        %2259 = vmatpush1.bf16.msra.mxu0 0
        %2260 = vmatprep.subr.bf16.mxu0 0
        %2261 = vmatpush1.bf16.msra.mxu0 0
        %2262 = vmatprep.subr.bf16.mxu0 0
        %2263 = vmatpush1.bf16.msra.mxu0 0
        %2264 = vmatprep.subr.bf16.mxu0 0
        %2265 = vmatpush1.bf16.msra.mxu0 %v2224
        %2266 = vmatprep.subr.bf16.mxu0 0
        %2267 = vmatpush2.bf16.msra.mxu0 0
        %2268 = vmatprep.subr.bf16.mxu0 0
        %2269 = vmatpush2.bf16.msra.mxu0 0
        %2270 = vmatprep.subr.bf16.mxu0 0
        %2271 = vmatpush2.bf16.msra.mxu0 0
        %2272 = vmatprep.subr.bf16.mxu0 0
        %2273 = vmatpush2.bf16.msra.mxu0 0
        %2274 = vmatprep.subr.bf16.mxu0 0
        %2275 = vmatpush2.bf16.msra.mxu0 0
        %2276 = vmatprep.subr.bf16.mxu0 0
        %2277 = vmatpush2.bf16.msra.mxu0 0
        %2278 = vmatprep.subr.bf16.mxu0 0
        %2279 = vmatpush2.bf16.msra.mxu0 0
        %2280 = vmatprep.subr.bf16.mxu0 0
        %2281 = vmatpush2.bf16.msra.mxu0 0
        %2282 = vmatprep.mubr.bf16.mxu0 0
        %2283 = vmatmul.mubr.bf16.gmra.mxu0 %v2227
        %v2284 = vpop.f32.mrf.mxu0
        %v2285 = vadd.f32 0.0, %v2284
        %v2286 = vpop.f32.mrf.mxu0
        %v2287 = vpop.f32.mrf.mxu0
        %v2288 = vadd.f32 0.0, %v2287
        %v2289 = vpop.f32.mrf.mxu0
        %2290 = vmatprep.mubr.bf16.mxu0 0
        %2291 = vmatmul.mubr.bf16.gmra.mxu0 %v2230
        %v2292 = vpop.f32.mrf.mxu0
        %v2293 = vadd.f32 0.0, %v2292
        %v2294 = vpop.f32.mrf.mxu0
        %v2295 = vpop.f32.mrf.mxu0
        %v2296 = vadd.f32 0.0, %v2295
        %v2297 = vpop.f32.mrf.mxu0
        %2298 = vmatprep.mubr.bf16.mxu0 0
        %2299 = vmatmul.mubr.bf16.gmra.mxu0 %v2233
        %v2300 = vpop.f32.mrf.mxu0
        %v2301 = vadd.f32 0.0, %v2300
        %v2302 = vpop.f32.mrf.mxu0
        %v2303 = vpop.f32.mrf.mxu0
        %v2304 = vadd.f32 0.0, %v2303
        %v2305 = vpop.f32.mrf.mxu0
        %2306 = vmatprep.mubr.bf16.mxu0 0
        %2307 = vmatmul.mubr.bf16.gmra.mxu0 %v2236
        %v2308 = vpop.f32.mrf.mxu0
        %v2309 = vadd.f32 0.0, %v2308
        %v2310 = vpop.f32.mrf.mxu0
        %v2311 = vpop.f32.mrf.mxu0
        %v2312 = vadd.f32 0.0, %v2311
        %v2313 = vpop.f32.mrf.mxu0
        %2314 = vmatprep.mubr.bf16.mxu0 0
        %2315 = vmatmul.mubr.bf16.gmra.mxu0 %v2239
        %v2316 = vpop.f32.mrf.mxu0
        %v2317 = vadd.f32 0.0, %v2316
        %v2318 = vpop.f32.mrf.mxu0
        %v2319 = vpop.f32.mrf.mxu0
        %v2320 = vadd.f32 0.0, %v2319
        %v2321 = vpop.f32.mrf.mxu0
        %2322 = vmatprep.mubr.bf16.mxu0 0
        %2323 = vmatmul.mubr.bf16.gmra.mxu0 %v2242
        %v2324 = vpop.f32.mrf.mxu0
        %v2325 = vadd.f32 0.0, %v2324
        %v2326 = vpop.f32.mrf.mxu0
        %v2327 = vpop.f32.mrf.mxu0
        %v2328 = vadd.f32 0.0, %v2327
        %v2329 = vpop.f32.mrf.mxu0
        %2330 = vmatprep.mubr.bf16.mxu0 0
        %2331 = vmatmul.mubr.bf16.gmra.mxu0 %v2245
        %v2332 = vpop.f32.mrf.mxu0
        %v2333 = vadd.f32 0.0, %v2332
        %v2334 = vpop.f32.mrf.mxu0
        %v2335 = vpop.f32.mrf.mxu0
        %v2336 = vadd.f32 0.0, %v2335
        %v2337 = vpop.f32.mrf.mxu0
        %2338 = vmatprep.mubr.bf16.mxu0 0
        %2339 = vmatmul.mubr.bf16.gmra.mxu0 %v2248
        %v2340 = vpop.f32.mrf.mxu0
        %v2341 = vadd.f32 0.0, %v2340
        %v2342 = vpop.f32.mrf.mxu0
        %v2343 = vpop.f32.mrf.mxu0
        %v2344 = vadd.f32 0.0, %v2343
        %v2345 = vpop.f32.mrf.mxu0
        %2346 = vdwg.mxu0
        %v2349 = vunpack.c.l.b16 %v1303
        %v2350 = vunpack.c.l.b16 %v1304
        %v2351 = vpack.c.b16 %v2350, %v2349
        %v2354 = vsel %vm1351, %v1746, 0
        %v2357 = vsel %vm1351, %v1747, 0
        %v2360 = vsel %vm1351, %v1748, 0
        %v2363 = vsel %vm1351, %v1749, 0
        %v2366 = vsel %vm1351, %v1750, 0
        %v2369 = vsel %vm1351, %v1751, 0
        %v2372 = vsel %vm1351, %v1752, 0
        %v2375 = vsel %vm1351, %v1753, 0
        %2377 = vmatprep.subr.bf16.mxu0 0
        %2378 = vmatpush1.bf16.msra.mxu0 0
        %2379 = vmatprep.subr.bf16.mxu0 0
        %2380 = vmatpush1.bf16.msra.mxu0 0
        %2381 = vmatprep.subr.bf16.mxu0 0
        %2382 = vmatpush1.bf16.msra.mxu0 0
        %2383 = vmatprep.subr.bf16.mxu0 0
        %2384 = vmatpush1.bf16.msra.mxu0 0
        %2385 = vmatprep.subr.bf16.mxu0 0
        %2386 = vmatpush1.bf16.msra.mxu0 0
        %2387 = vmatprep.subr.bf16.mxu0 0
        %2388 = vmatpush1.bf16.msra.mxu0 0
        %2389 = vmatprep.subr.bf16.mxu0 0
        %2390 = vmatpush1.bf16.msra.mxu0 0
        %2391 = vmatprep.subr.bf16.mxu0 0
        %2392 = vmatpush1.bf16.msra.mxu0 %v2351
        %2393 = vmatprep.subr.bf16.mxu0 0
        %2394 = vmatpush2.bf16.msra.mxu0 0
        %2395 = vmatprep.subr.bf16.mxu0 0
        %2396 = vmatpush2.bf16.msra.mxu0 0
        %2397 = vmatprep.subr.bf16.mxu0 0
        %2398 = vmatpush2.bf16.msra.mxu0 0
        %2399 = vmatprep.subr.bf16.mxu0 0
        %2400 = vmatpush2.bf16.msra.mxu0 0
        %2401 = vmatprep.subr.bf16.mxu0 0
        %2402 = vmatpush2.bf16.msra.mxu0 0
        %2403 = vmatprep.subr.bf16.mxu0 0
        %2404 = vmatpush2.bf16.msra.mxu0 0
        %2405 = vmatprep.subr.bf16.mxu0 0
        %2406 = vmatpush2.bf16.msra.mxu0 0
        %2407 = vmatprep.subr.bf16.mxu0 0
        %2408 = vmatpush2.bf16.msra.mxu0 0
        %2409 = vmatprep.mubr.bf16.mxu0 0
        %2410 = vmatmul.mubr.bf16.gmra.mxu0 %v2354
        %v2411 = vpop.f32.mrf.mxu0
        %v2412 = vadd.f32 %v2285, %v2411
        %v2413 = vpop.f32.mrf.mxu0
        %v2414 = vpop.f32.mrf.mxu0
        %v2415 = vadd.f32 %v2288, %v2414
        %v2416 = vpop.f32.mrf.mxu0
        %2417 = vmatprep.mubr.bf16.mxu0 0
        %2418 = vmatmul.mubr.bf16.gmra.mxu0 %v2357
        %v2419 = vpop.f32.mrf.mxu0
        %v2420 = vadd.f32 %v2293, %v2419
        %v2421 = vpop.f32.mrf.mxu0
        %v2422 = vpop.f32.mrf.mxu0
        %v2423 = vadd.f32 %v2296, %v2422
        %v2424 = vpop.f32.mrf.mxu0
        %2425 = vmatprep.mubr.bf16.mxu0 0
        %2426 = vmatmul.mubr.bf16.gmra.mxu0 %v2360
        %v2427 = vpop.f32.mrf.mxu0
        %v2428 = vadd.f32 %v2301, %v2427
        %v2429 = vpop.f32.mrf.mxu0
        %v2430 = vpop.f32.mrf.mxu0
        %v2431 = vadd.f32 %v2304, %v2430
        %v2432 = vpop.f32.mrf.mxu0
        %2433 = vmatprep.mubr.bf16.mxu0 0
        %2434 = vmatmul.mubr.bf16.gmra.mxu0 %v2363
        %v2435 = vpop.f32.mrf.mxu0
        %v2436 = vadd.f32 %v2309, %v2435
        %v2437 = vpop.f32.mrf.mxu0
        %v2438 = vpop.f32.mrf.mxu0
        %v2439 = vadd.f32 %v2312, %v2438
        %v2440 = vpop.f32.mrf.mxu0
        %2441 = vmatprep.mubr.bf16.mxu0 0
        %2442 = vmatmul.mubr.bf16.gmra.mxu0 %v2366
        %v2443 = vpop.f32.mrf.mxu0
        %v2444 = vadd.f32 %v2317, %v2443
        %v2445 = vpop.f32.mrf.mxu0
        %v2446 = vpop.f32.mrf.mxu0
        %v2447 = vadd.f32 %v2320, %v2446
        %v2448 = vpop.f32.mrf.mxu0
        %2449 = vmatprep.mubr.bf16.mxu0 0
        %2450 = vmatmul.mubr.bf16.gmra.mxu0 %v2369
        %v2451 = vpop.f32.mrf.mxu0
        %v2452 = vadd.f32 %v2325, %v2451
        %v2453 = vpop.f32.mrf.mxu0
        %v2454 = vpop.f32.mrf.mxu0
        %v2455 = vadd.f32 %v2328, %v2454
        %v2456 = vpop.f32.mrf.mxu0
        %2457 = vmatprep.mubr.bf16.mxu0 0
        %2458 = vmatmul.mubr.bf16.gmra.mxu0 %v2372
        %v2459 = vpop.f32.mrf.mxu0
        %v2460 = vadd.f32 %v2333, %v2459
        %v2461 = vpop.f32.mrf.mxu0
        %v2462 = vpop.f32.mrf.mxu0
        %v2463 = vadd.f32 %v2336, %v2462
        %v2464 = vpop.f32.mrf.mxu0
        %2465 = vmatprep.mubr.bf16.mxu0 0
        %2466 = vmatmul.mubr.bf16.gmra.mxu0 %v2375
        %v2467 = vpop.f32.mrf.mxu0
        %v2468 = vadd.f32 %v2341, %v2467
        %v2469 = vpop.f32.mrf.mxu0
        %v2470 = vpop.f32.mrf.mxu0
        %v2471 = vadd.f32 %v2344, %v2470
        %v2472 = vpop.f32.mrf.mxu0
        %2473 = vdwg.mxu0
        %2474 = vrot.lane.b32.xlu0 %v1311, 96
        %v2475 = vpop.permute.xlu0 %2474
        %2476 = vrot.lane.b32.xlu0 %v1312, 96
        %v2477 = vpop.permute.xlu0 %2476
        %2478 = vrot.lane.b32.xlu0 %v1313, 96
        %v2479 = vpop.permute.xlu0 %2478
        %2480 = vrot.lane.b32.xlu0 %v1314, 96
        %v2481 = vpop.permute.xlu0 %2480
        %2482 = vrot.lane.b32.xlu0 %v1315, 96
        %v2483 = vpop.permute.xlu0 %2482
        %2484 = vrot.lane.b32.xlu0 %v1316, 96
        %v2485 = vpop.permute.xlu0 %2484
        %2486 = vrot.lane.b32.xlu0 %v1317, 96
        %v2487 = vpop.permute.xlu0 %2486
        %2488 = vrot.lane.b32.xlu0 %v1318, 96
        %v2489 = vpop.permute.xlu0 %2488
        %2490 = vrot.lane.b32.xlu0 %v1311, 32
        %v2491 = vpop.permute.xlu0 %2490
        %2492 = vrot.lane.b32.xlu0 %v1312, 32
        %v2493 = vpop.permute.xlu0 %2492
        %2494 = vrot.lane.b32.xlu0 %v1313, 32
        %v2495 = vpop.permute.xlu0 %2494
        %2496 = vrot.lane.b32.xlu0 %v1314, 32
        %v2497 = vpop.permute.xlu0 %2496
        %2498 = vrot.lane.b32.xlu0 %v1315, 32
        %v2499 = vpop.permute.xlu0 %2498
        %2500 = vrot.lane.b32.xlu0 %v1316, 32
        %v2501 = vpop.permute.xlu0 %2500
        %2502 = vrot.lane.b32.xlu0 %v1317, 32
        %v2503 = vpop.permute.xlu0 %2502
        %2504 = vrot.lane.b32.xlu0 %v1318, 32
        %v2505 = vpop.permute.xlu0 %2504
        %v2507 = vsel %vm1351, %v2475, 0
        %v2510 = vsel %vm1351, %v2477, 0
        %v2513 = vsel %vm1351, %v2479, 0
        %v2516 = vsel %vm1351, %v2481, 0
        %v2519 = vsel %vm1351, %v2483, 0
        %v2522 = vsel %vm1351, %v2485, 0
        %v2525 = vsel %vm1351, %v2487, 0
        %v2528 = vsel %vm1351, %v2489, 0
        %v2531 = vsel %vm1351, %v2491, 0
        %v2534 = vsel %vm1351, %v2493, 0
        %v2537 = vsel %vm1351, %v2495, 0
        %v2540 = vsel %vm1351, %v2497, 0
        %v2543 = vsel %vm1351, %v2499, 0
        %v2546 = vsel %vm1351, %v2501, 0
        %v2549 = vsel %vm1351, %v2503, 0
        %v2552 = vsel %vm1351, %v2505, 0
        %2554 = vmatprep.subr.bf16.mxu0 0
        %2555 = vmatpush1.bf16.xpose.msra.mxu0 %v2552
        %2556 = vmatprep.subr.bf16.mxu0 0
        %2557 = vmatpush1.bf16.xpose.msra.mxu0 %v2549
        %2558 = vmatprep.subr.bf16.mxu0 0
        %2559 = vmatpush1.bf16.xpose.msra.mxu0 %v2546
        %2560 = vmatprep.subr.bf16.mxu0 0
        %2561 = vmatpush1.bf16.xpose.msra.mxu0 %v2543
        %2562 = vmatprep.subr.bf16.mxu0 0
        %2563 = vmatpush1.bf16.xpose.msra.mxu0 %v2540
        %2564 = vmatprep.subr.bf16.mxu0 0
        %2565 = vmatpush1.bf16.xpose.msra.mxu0 %v2537
        %2566 = vmatprep.subr.bf16.mxu0 0
        %2567 = vmatpush1.bf16.xpose.msra.mxu0 %v2534
        %2568 = vmatprep.subr.bf16.mxu0 0
        %2569 = vmatpush1.bf16.xpose.msra.mxu0 %v2531
        %2570 = vmatprep.subr.bf16.mxu0 0
        %2571 = vmatpush2.bf16.xpose.msra.mxu0 0
        %2572 = vmatprep.subr.bf16.mxu0 0
        %2573 = vmatpush2.bf16.xpose.msra.mxu0 0
        %2574 = vmatprep.subr.bf16.mxu0 0
        %2575 = vmatpush2.bf16.xpose.msra.mxu0 0
        %2576 = vmatprep.subr.bf16.mxu0 0
        %2577 = vmatpush2.bf16.xpose.msra.mxu0 0
        %2578 = vmatprep.subr.bf16.mxu0 0
        %2579 = vmatpush2.bf16.xpose.msra.mxu0 0
        %2580 = vmatprep.subr.bf16.mxu0 0
        %2581 = vmatpush2.bf16.xpose.msra.mxu0 0
        %2582 = vmatprep.subr.bf16.mxu0 0
        %2583 = vmatpush2.bf16.xpose.msra.mxu0 0
        %2584 = vmatprep.subr.bf16.mxu0 0
        %2585 = vmatpush2.bf16.xpose.msra.mxu0 0
        %2586 = vmatprep.mubr.bf16.mxu0 0
        %2587 = vmatmul.mubr.bf16.gmra.mxu0 %v2507
        %v2588 = vpop.f32.mrf.mxu0
        %v2589 = vadd.f32 %v826, %v2588
        %v2590 = vpop.f32.mrf.mxu0
        %v2591 = vpop.f32.mrf.mxu0
        %v2592 = vadd.f32 %v827, %v2591
        %v2593 = vpop.f32.mrf.mxu0
        %2594 = vmatprep.mubr.bf16.mxu0 0
        %2595 = vmatmul.mubr.bf16.gmra.mxu0 %v2510
        %v2596 = vpop.f32.mrf.mxu0
        %v2597 = vadd.f32 %v828, %v2596
        %v2598 = vpop.f32.mrf.mxu0
        %v2599 = vpop.f32.mrf.mxu0
        %v2600 = vadd.f32 %v829, %v2599
        %v2601 = vpop.f32.mrf.mxu0
        %2602 = vmatprep.mubr.bf16.mxu0 0
        %2603 = vmatmul.mubr.bf16.gmra.mxu0 %v2513
        %v2604 = vpop.f32.mrf.mxu0
        %v2605 = vadd.f32 %v830, %v2604
        %v2606 = vpop.f32.mrf.mxu0
        %v2607 = vpop.f32.mrf.mxu0
        %v2608 = vadd.f32 %v831, %v2607
        %v2609 = vpop.f32.mrf.mxu0
        %2610 = vmatprep.mubr.bf16.mxu0 0
        %2611 = vmatmul.mubr.bf16.gmra.mxu0 %v2516
        %v2612 = vpop.f32.mrf.mxu0
        %v2613 = vadd.f32 %v832, %v2612
        %v2614 = vpop.f32.mrf.mxu0
        %v2615 = vpop.f32.mrf.mxu0
        %v2616 = vadd.f32 %v833, %v2615
        %v2617 = vpop.f32.mrf.mxu0
        %2618 = vmatprep.mubr.bf16.mxu0 0
        %2619 = vmatmul.mubr.bf16.gmra.mxu0 %v2519
        %v2620 = vpop.f32.mrf.mxu0
        %v2621 = vadd.f32 %v834, %v2620
        %v2622 = vpop.f32.mrf.mxu0
        %v2623 = vpop.f32.mrf.mxu0
        %v2624 = vadd.f32 %v835, %v2623
        %v2625 = vpop.f32.mrf.mxu0
        %2626 = vmatprep.mubr.bf16.mxu0 0
        %2627 = vmatmul.mubr.bf16.gmra.mxu0 %v2522
        %v2628 = vpop.f32.mrf.mxu0
        %v2629 = vadd.f32 %v836, %v2628
        %v2630 = vpop.f32.mrf.mxu0
        %v2631 = vpop.f32.mrf.mxu0
        %v2632 = vadd.f32 %v837, %v2631
        %v2633 = vpop.f32.mrf.mxu0
        %2634 = vmatprep.mubr.bf16.mxu0 0
        %2635 = vmatmul.mubr.bf16.gmra.mxu0 %v2525
        %v2636 = vpop.f32.mrf.mxu0
        %v2637 = vadd.f32 %v838, %v2636
        %v2638 = vpop.f32.mrf.mxu0
        %v2639 = vpop.f32.mrf.mxu0
        %v2640 = vadd.f32 %v839, %v2639
        %v2641 = vpop.f32.mrf.mxu0
        %2642 = vmatprep.mubr.bf16.mxu0 0
        %2643 = vmatmul.mubr.bf16.gmra.mxu0 %v2528
        %v2644 = vpop.f32.mrf.mxu0
        %v2645 = vadd.f32 %v840, %v2644
        %v2646 = vpop.f32.mrf.mxu0
        %v2647 = vpop.f32.mrf.mxu0
        %v2648 = vadd.f32 %v841, %v2647
        %v2649 = vpop.f32.mrf.mxu0
        %2650 = vdwg.mxu0
        %2651 = vmax.xlane.f32.xlu0 %v2589
        %v2652 = vpop.xlane.xlu0 %2651
        %2653 = vmax.xlane.f32.xlu0 %v2592
        %v2654 = vpop.xlane.xlu0 %2653
        %2655 = vmax.xlane.f32.xlu0 %v2597
        %v2656 = vpop.xlane.xlu0 %2655
        %2657 = vmax.xlane.f32.xlu0 %v2600
        %v2658 = vpop.xlane.xlu0 %2657
        %2659 = vmax.xlane.f32.xlu0 %v2605
        %v2660 = vpop.xlane.xlu0 %2659
        %2661 = vmax.xlane.f32.xlu0 %v2608
        %v2662 = vpop.xlane.xlu0 %2661
        %2663 = vmax.xlane.f32.xlu0 %v2613
        %v2664 = vpop.xlane.xlu0 %2663
        %2665 = vmax.xlane.f32.xlu0 %v2616
        %v2666 = vpop.xlane.xlu0 %2665
        %2667 = vmax.xlane.f32.xlu0 %v2621
        %v2668 = vpop.xlane.xlu0 %2667
        %2669 = vmax.xlane.f32.xlu0 %v2624
        %v2670 = vpop.xlane.xlu0 %2669
        %2671 = vmax.xlane.f32.xlu0 %v2629
        %v2672 = vpop.xlane.xlu0 %2671
        %2673 = vmax.xlane.f32.xlu0 %v2632
        %v2674 = vpop.xlane.xlu0 %2673
        %2675 = vmax.xlane.f32.xlu0 %v2637
        %v2676 = vpop.xlane.xlu0 %2675
        %2677 = vmax.xlane.f32.xlu0 %v2640
        %v2678 = vpop.xlane.xlu0 %2677
        %2679 = vmax.xlane.f32.xlu0 %v2645
        %v2680 = vpop.xlane.xlu0 %2679
        %2681 = vmax.xlane.f32.xlu0 %v2648
        %v2682 = vpop.xlane.xlu0 %2681
        %v2683 = vsub.f32 %v2589, %v2652
        %v2684 = vsub.f32 %v2592, %v2654
        %v2685 = vsub.f32 %v2597, %v2656
        %v2686 = vsub.f32 %v2600, %v2658
        %v2687 = vsub.f32 %v2605, %v2660
        %v2688 = vsub.f32 %v2608, %v2662
        %v2689 = vsub.f32 %v2613, %v2664
        %v2690 = vsub.f32 %v2616, %v2666
        %v2691 = vsub.f32 %v2621, %v2668
        %v2692 = vsub.f32 %v2624, %v2670
        %v2693 = vsub.f32 %v2629, %v2672
        %v2694 = vsub.f32 %v2632, %v2674
        %v2695 = vsub.f32 %v2637, %v2676
        %v2696 = vsub.f32 %v2640, %v2678
        %v2697 = vsub.f32 %v2645, %v2680
        %v2698 = vsub.f32 %v2648, %v2682
        %v2699 = vmul.f32 %v2683, 1.442695
        %v2700 = vpow.pop %v2699
        %v2701 = vmul.f32 %v2684, 1.442695
        %v2702 = vpow.pop %v2701
        %v2703 = vmul.f32 %v2685, 1.442695
        %v2704 = vpow.pop %v2703
        %v2705 = vmul.f32 %v2686, 1.442695
        %v2706 = vpow.pop %v2705
        %v2707 = vmul.f32 %v2687, 1.442695
        %v2708 = vpow.pop %v2707
        %v2709 = vmul.f32 %v2688, 1.442695
        %v2710 = vpow.pop %v2709
        %v2711 = vmul.f32 %v2689, 1.442695
        %v2712 = vpow.pop %v2711
        %v2713 = vmul.f32 %v2690, 1.442695
        %v2714 = vpow.pop %v2713
        %v2715 = vmul.f32 %v2691, 1.442695
        %v2716 = vpow.pop %v2715
        %v2717 = vmul.f32 %v2692, 1.442695
        %v2718 = vpow.pop %v2717
        %v2719 = vmul.f32 %v2693, 1.442695
        %v2720 = vpow.pop %v2719
        %v2721 = vmul.f32 %v2694, 1.442695
        %v2722 = vpow.pop %v2721
        %v2723 = vmul.f32 %v2695, 1.442695
        %v2724 = vpow.pop %v2723
        %v2725 = vmul.f32 %v2696, 1.442695
        %v2726 = vpow.pop %v2725
        %v2727 = vmul.f32 %v2697, 1.442695
        %v2728 = vpow.pop %v2727
        %v2729 = vmul.f32 %v2698, 1.442695
        %v2730 = vpow.pop %v2729
        %2731 = vadd.xlane.f32.xlu0 %v2700
        %v2732 = vpop.xlane.xlu0 %2731
        %2733 = vadd.xlane.f32.xlu0 %v2702
        %v2734 = vpop.xlane.xlu0 %2733
        %2735 = vadd.xlane.f32.xlu0 %v2704
        %v2736 = vpop.xlane.xlu0 %2735
        %2737 = vadd.xlane.f32.xlu0 %v2706
        %v2738 = vpop.xlane.xlu0 %2737
        %2739 = vadd.xlane.f32.xlu0 %v2708
        %v2740 = vpop.xlane.xlu0 %2739
        %2741 = vadd.xlane.f32.xlu0 %v2710
        %v2742 = vpop.xlane.xlu0 %2741
        %2743 = vadd.xlane.f32.xlu0 %v2712
        %v2744 = vpop.xlane.xlu0 %2743
        %2745 = vadd.xlane.f32.xlu0 %v2714
        %v2746 = vpop.xlane.xlu0 %2745
        %2747 = vadd.xlane.f32.xlu0 %v2716
        %v2748 = vpop.xlane.xlu0 %2747
        %2749 = vadd.xlane.f32.xlu0 %v2718
        %v2750 = vpop.xlane.xlu0 %2749
        %2751 = vadd.xlane.f32.xlu0 %v2720
        %v2752 = vpop.xlane.xlu0 %2751
        %2753 = vadd.xlane.f32.xlu0 %v2722
        %v2754 = vpop.xlane.xlu0 %2753
        %2755 = vadd.xlane.f32.xlu0 %v2724
        %v2756 = vpop.xlane.xlu0 %2755
        %2757 = vadd.xlane.f32.xlu0 %v2726
        %v2758 = vpop.xlane.xlu0 %2757
        %2759 = vadd.xlane.f32.xlu0 %v2728
        %v2760 = vpop.xlane.xlu0 %2759
        %2761 = vadd.xlane.f32.xlu0 %v2730
        %v2762 = vpop.xlane.xlu0 %2761
        %v2763 = vrcp.pop %v2732
        %v2764 = vmul.f32 %v2700, %v2763
        %v2765 = vrcp.pop %v2734
        %v2766 = vmul.f32 %v2702, %v2765
        %v2767 = vrcp.pop %v2736
        %v2768 = vmul.f32 %v2704, %v2767
        %v2769 = vrcp.pop %v2738
        %v2770 = vmul.f32 %v2706, %v2769
        %v2771 = vrcp.pop %v2740
        %v2772 = vmul.f32 %v2708, %v2771
        %v2773 = vrcp.pop %v2742
        %v2774 = vmul.f32 %v2710, %v2773
        %v2775 = vrcp.pop %v2744
        %v2776 = vmul.f32 %v2712, %v2775
        %v2777 = vrcp.pop %v2746
        %v2778 = vmul.f32 %v2714, %v2777
        %v2779 = vrcp.pop %v2748
        %v2780 = vmul.f32 %v2716, %v2779
        %v2781 = vrcp.pop %v2750
        %v2782 = vmul.f32 %v2718, %v2781
        %v2783 = vrcp.pop %v2752
        %v2784 = vmul.f32 %v2720, %v2783
        %v2785 = vrcp.pop %v2754
        %v2786 = vmul.f32 %v2722, %v2785
        %v2787 = vrcp.pop %v2756
        %v2788 = vmul.f32 %v2724, %v2787
        %v2789 = vrcp.pop %v2758
        %v2790 = vmul.f32 %v2726, %v2789
        %v2791 = vrcp.pop %v2760
        %v2792 = vmul.f32 %v2728, %v2791
        %v2793 = vrcp.pop %v2762
        %v2794 = vmul.f32 %v2730, %v2793
        %v2795 = vpack.c.bf16 %v2766, %v2764
        %v2796 = vpack.c.bf16 %v2770, %v2768
        %v2797 = vpack.c.bf16 %v2774, %v2772
        %v2798 = vpack.c.bf16 %v2778, %v2776
        %v2799 = vpack.c.bf16 %v2782, %v2780
        %v2800 = vpack.c.bf16 %v2786, %v2784
        %v2801 = vpack.c.bf16 %v2790, %v2788
        %v2802 = vpack.c.bf16 %v2794, %v2792
        %2803 = vrot.lane.b32.xlu0 %v1319, 96
        %v2804 = vpop.permute.xlu0 %2803
        %2805 = vrot.lane.b32.xlu0 %v1320, 96
        %v2806 = vpop.permute.xlu0 %2805
        %2807 = vrot.lane.b32.xlu0 %v1321, 96
        %v2808 = vpop.permute.xlu0 %2807
        %2809 = vrot.lane.b32.xlu0 %v1322, 96
        %v2810 = vpop.permute.xlu0 %2809
        %2811 = vrot.lane.b32.xlu0 %v1323, 96
        %v2812 = vpop.permute.xlu0 %2811
        %2813 = vrot.lane.b32.xlu0 %v1324, 96
        %v2814 = vpop.permute.xlu0 %2813
        %2815 = vrot.lane.b32.xlu0 %v1325, 96
        %v2816 = vpop.permute.xlu0 %2815
        %2817 = vrot.lane.b32.xlu0 %v1326, 96
        %v2818 = vpop.permute.xlu0 %2817
        %2827 = vmatprep.subr.bf16.mxu0 0
        %2828 = vmatpush1.bf16.msra.mxu0 %v2818
        %2829 = vmatprep.subr.bf16.mxu0 0
        %2830 = vmatpush1.bf16.msra.mxu0 %v2816
        %2831 = vmatprep.subr.bf16.mxu0 0
        %2832 = vmatpush1.bf16.msra.mxu0 %v2814
        %2833 = vmatprep.subr.bf16.mxu0 0
        %2834 = vmatpush1.bf16.msra.mxu0 %v2812
        %2835 = vmatprep.subr.bf16.mxu0 0
        %2836 = vmatpush1.bf16.msra.mxu0 %v2810
        %2837 = vmatprep.subr.bf16.mxu0 0
        %2838 = vmatpush1.bf16.msra.mxu0 %v2808
        %2839 = vmatprep.subr.bf16.mxu0 0
        %2840 = vmatpush1.bf16.msra.mxu0 %v2806
        %2841 = vmatprep.subr.bf16.mxu0 0
        %2842 = vmatpush1.bf16.msra.mxu0 %v2804
        %2843 = vmatprep.subr.bf16.mxu0 0
        %2844 = vmatpush2.bf16.msra.mxu0 0
        %2845 = vmatprep.subr.bf16.mxu0 0
        %2846 = vmatpush2.bf16.msra.mxu0 0
        %2847 = vmatprep.subr.bf16.mxu0 0
        %2848 = vmatpush2.bf16.msra.mxu0 0
        %2849 = vmatprep.subr.bf16.mxu0 0
        %2850 = vmatpush2.bf16.msra.mxu0 0
        %2851 = vmatprep.subr.bf16.mxu0 0
        %2852 = vmatpush2.bf16.msra.mxu0 0
        %2853 = vmatprep.subr.bf16.mxu0 0
        %2854 = vmatpush2.bf16.msra.mxu0 0
        %2855 = vmatprep.subr.bf16.mxu0 0
        %2856 = vmatpush2.bf16.msra.mxu0 0
        %2857 = vmatprep.subr.bf16.mxu0 0
        %2858 = vmatpush2.bf16.msra.mxu0 0
        %2859 = vmatprep.mubr.bf16.mxu0 0
        %2860 = vmatmul.mubr.bf16.gmra.mxu0 %v2795
        %v2861 = vpop.f32.mrf.mxu0
        %v2862 = vadd.f32 0.0, %v2861
        %v2863 = vpop.f32.mrf.mxu0
        %v2864 = vpop.f32.mrf.mxu0
        %v2865 = vadd.f32 0.0, %v2864
        %v2866 = vpop.f32.mrf.mxu0
        %2867 = vmatprep.mubr.bf16.mxu0 0
        %2868 = vmatmul.mubr.bf16.gmra.mxu0 %v2796
        %v2869 = vpop.f32.mrf.mxu0
        %v2870 = vadd.f32 0.0, %v2869
        %v2871 = vpop.f32.mrf.mxu0
        %v2872 = vpop.f32.mrf.mxu0
        %v2873 = vadd.f32 0.0, %v2872
        %v2874 = vpop.f32.mrf.mxu0
        %2875 = vmatprep.mubr.bf16.mxu0 0
        %2876 = vmatmul.mubr.bf16.gmra.mxu0 %v2797
        %v2877 = vpop.f32.mrf.mxu0
        %v2878 = vadd.f32 0.0, %v2877
        %v2879 = vpop.f32.mrf.mxu0
        %v2880 = vpop.f32.mrf.mxu0
        %v2881 = vadd.f32 0.0, %v2880
        %v2882 = vpop.f32.mrf.mxu0
        %2883 = vmatprep.mubr.bf16.mxu0 0
        %2884 = vmatmul.mubr.bf16.gmra.mxu0 %v2798
        %v2885 = vpop.f32.mrf.mxu0
        %v2886 = vadd.f32 0.0, %v2885
        %v2887 = vpop.f32.mrf.mxu0
        %v2888 = vpop.f32.mrf.mxu0
        %v2889 = vadd.f32 0.0, %v2888
        %v2890 = vpop.f32.mrf.mxu0
        %2891 = vmatprep.mubr.bf16.mxu0 0
        %2892 = vmatmul.mubr.bf16.gmra.mxu0 %v2799
        %v2893 = vpop.f32.mrf.mxu0
        %v2894 = vadd.f32 0.0, %v2893
        %v2895 = vpop.f32.mrf.mxu0
        %v2896 = vpop.f32.mrf.mxu0
        %v2897 = vadd.f32 0.0, %v2896
        %v2898 = vpop.f32.mrf.mxu0
        %2899 = vmatprep.mubr.bf16.mxu0 0
        %2900 = vmatmul.mubr.bf16.gmra.mxu0 %v2800
        %v2901 = vpop.f32.mrf.mxu0
        %v2902 = vadd.f32 0.0, %v2901
        %v2903 = vpop.f32.mrf.mxu0
        %v2904 = vpop.f32.mrf.mxu0
        %v2905 = vadd.f32 0.0, %v2904
        %v2906 = vpop.f32.mrf.mxu0
        %2907 = vmatprep.mubr.bf16.mxu0 0
        %2908 = vmatmul.mubr.bf16.gmra.mxu0 %v2801
        %v2909 = vpop.f32.mrf.mxu0
        %v2910 = vadd.f32 0.0, %v2909
        %v2911 = vpop.f32.mrf.mxu0
        %v2912 = vpop.f32.mrf.mxu0
        %v2913 = vadd.f32 0.0, %v2912
        %v2914 = vpop.f32.mrf.mxu0
        %2915 = vmatprep.mubr.bf16.mxu0 0
        %2916 = vmatmul.mubr.bf16.gmra.mxu0 %v2802
        %v2917 = vpop.f32.mrf.mxu0
        %v2918 = vadd.f32 0.0, %v2917
        %v2919 = vpop.f32.mrf.mxu0
        %v2920 = vpop.f32.mrf.mxu0
        %v2921 = vadd.f32 0.0, %v2920
        %v2922 = vpop.f32.mrf.mxu0
        %2923 = vdwg.mxu0
        %v2924 = vpack.c.bf16 %v2865, %v2862
        %v2925 = vpack.c.bf16 %v2873, %v2870
        %v2926 = vpack.c.bf16 %v2881, %v2878
        %v2927 = vpack.c.bf16 %v2889, %v2886
        %v2928 = vpack.c.bf16 %v2897, %v2894
        %v2929 = vpack.c.bf16 %v2905, %v2902
        %v2930 = vpack.c.bf16 %v2913, %v2910
        %v2931 = vpack.c.bf16 %v2921, %v2918
        %v2934 = vunpack.c.l.b16 %v1307
        %v2935 = vunpack.c.l.b16 %v1308
        %v2936 = vpack.c.b16 %v2935, %v2934
        %v2939 = vsel %vm1351, %v2924, 0
        %v2942 = vsel %vm1351, %v2925, 0
        %v2945 = vsel %vm1351, %v2926, 0
        %v2948 = vsel %vm1351, %v2927, 0
        %v2951 = vsel %vm1351, %v2928, 0
        %v2954 = vsel %vm1351, %v2929, 0
        %v2957 = vsel %vm1351, %v2930, 0
        %v2960 = vsel %vm1351, %v2931, 0
        %2962 = vmatprep.subr.bf16.mxu0 0
        %2963 = vmatpush1.bf16.msra.mxu0 0
        %2964 = vmatprep.subr.bf16.mxu0 0
        %2965 = vmatpush1.bf16.msra.mxu0 0
        %2966 = vmatprep.subr.bf16.mxu0 0
        %2967 = vmatpush1.bf16.msra.mxu0 0
        %2968 = vmatprep.subr.bf16.mxu0 0
        %2969 = vmatpush1.bf16.msra.mxu0 0
        %2970 = vmatprep.subr.bf16.mxu0 0
        %2971 = vmatpush1.bf16.msra.mxu0 0
        %2972 = vmatprep.subr.bf16.mxu0 0
        %2973 = vmatpush1.bf16.msra.mxu0 0
        %2974 = vmatprep.subr.bf16.mxu0 0
        %2975 = vmatpush1.bf16.msra.mxu0 0
        %2976 = vmatprep.subr.bf16.mxu0 0
        %2977 = vmatpush1.bf16.msra.mxu0 %v2936
        %2978 = vmatprep.subr.bf16.mxu0 0
        %2979 = vmatpush2.bf16.msra.mxu0 0
        %2980 = vmatprep.subr.bf16.mxu0 0
        %2981 = vmatpush2.bf16.msra.mxu0 0
        %2982 = vmatprep.subr.bf16.mxu0 0
        %2983 = vmatpush2.bf16.msra.mxu0 0
        %2984 = vmatprep.subr.bf16.mxu0 0
        %2985 = vmatpush2.bf16.msra.mxu0 0
        %2986 = vmatprep.subr.bf16.mxu0 0
        %2987 = vmatpush2.bf16.msra.mxu0 0
        %2988 = vmatprep.subr.bf16.mxu0 0
        %2989 = vmatpush2.bf16.msra.mxu0 0
        %2990 = vmatprep.subr.bf16.mxu0 0
        %2991 = vmatpush2.bf16.msra.mxu0 0
        %2992 = vmatprep.subr.bf16.mxu0 0
        %2993 = vmatpush2.bf16.msra.mxu0 0
        %2994 = vmatprep.mubr.bf16.mxu0 0
        %2995 = vmatmul.mubr.bf16.gmra.mxu0 %v2939
        %v2996 = vpop.f32.mrf.mxu0
        %v2997 = vadd.f32 0.0, %v2996
        %v2998 = vpop.f32.mrf.mxu0
        %v2999 = vpop.f32.mrf.mxu0
        %v3000 = vadd.f32 0.0, %v2999
        %v3001 = vpop.f32.mrf.mxu0
        %3002 = vmatprep.mubr.bf16.mxu0 0
        %3003 = vmatmul.mubr.bf16.gmra.mxu0 %v2942
        %v3004 = vpop.f32.mrf.mxu0
        %v3005 = vadd.f32 0.0, %v3004
        %v3006 = vpop.f32.mrf.mxu0
        %v3007 = vpop.f32.mrf.mxu0
        %v3008 = vadd.f32 0.0, %v3007
        %v3009 = vpop.f32.mrf.mxu0
        %3010 = vmatprep.mubr.bf16.mxu0 0
        %3011 = vmatmul.mubr.bf16.gmra.mxu0 %v2945
        %v3012 = vpop.f32.mrf.mxu0
        %v3013 = vadd.f32 0.0, %v3012
        %v3014 = vpop.f32.mrf.mxu0
        %v3015 = vpop.f32.mrf.mxu0
        %v3016 = vadd.f32 0.0, %v3015
        %v3017 = vpop.f32.mrf.mxu0
        %3018 = vmatprep.mubr.bf16.mxu0 0
        %3019 = vmatmul.mubr.bf16.gmra.mxu0 %v2948
        %v3020 = vpop.f32.mrf.mxu0
        %v3021 = vadd.f32 0.0, %v3020
        %v3022 = vpop.f32.mrf.mxu0
        %v3023 = vpop.f32.mrf.mxu0
        %v3024 = vadd.f32 0.0, %v3023
        %v3025 = vpop.f32.mrf.mxu0
        %3026 = vmatprep.mubr.bf16.mxu0 0
        %3027 = vmatmul.mubr.bf16.gmra.mxu0 %v2951
        %v3028 = vpop.f32.mrf.mxu0
        %v3029 = vadd.f32 0.0, %v3028
        %v3030 = vpop.f32.mrf.mxu0
        %v3031 = vpop.f32.mrf.mxu0
        %v3032 = vadd.f32 0.0, %v3031
        %v3033 = vpop.f32.mrf.mxu0
        %3034 = vmatprep.mubr.bf16.mxu0 0
        %3035 = vmatmul.mubr.bf16.gmra.mxu0 %v2954
        %v3036 = vpop.f32.mrf.mxu0
        %v3037 = vadd.f32 0.0, %v3036
        %v3038 = vpop.f32.mrf.mxu0
        %v3039 = vpop.f32.mrf.mxu0
        %v3040 = vadd.f32 0.0, %v3039
        %v3041 = vpop.f32.mrf.mxu0
        %3042 = vmatprep.mubr.bf16.mxu0 0
        %3043 = vmatmul.mubr.bf16.gmra.mxu0 %v2957
        %v3044 = vpop.f32.mrf.mxu0
        %v3045 = vadd.f32 0.0, %v3044
        %v3046 = vpop.f32.mrf.mxu0
        %v3047 = vpop.f32.mrf.mxu0
        %v3048 = vadd.f32 0.0, %v3047
        %v3049 = vpop.f32.mrf.mxu0
        %3050 = vmatprep.mubr.bf16.mxu0 0
        %3051 = vmatmul.mubr.bf16.gmra.mxu0 %v2960
        %v3052 = vpop.f32.mrf.mxu0
        %v3053 = vadd.f32 0.0, %v3052
        %v3054 = vpop.f32.mrf.mxu0
        %v3055 = vpop.f32.mrf.mxu0
        %v3056 = vadd.f32 0.0, %v3055
        %v3057 = vpop.f32.mrf.mxu0
        %3058 = vdwg.mxu0
        %v3059 = vadd.f32 %v2412, %v2997
        %v3060 = vadd.f32 %v2415, %v3000
        %v3061 = vadd.f32 %v2420, %v3005
        %v3062 = vadd.f32 %v2423, %v3008
        %v3063 = vadd.f32 %v2428, %v3013
        %v3064 = vadd.f32 %v2431, %v3016
        %v3065 = vadd.f32 %v2436, %v3021
        %v3066 = vadd.f32 %v2439, %v3024
        %v3067 = vadd.f32 %v2444, %v3029
        %v3068 = vadd.f32 %v2447, %v3032
        %v3069 = vadd.f32 %v2452, %v3037
        %v3070 = vadd.f32 %v2455, %v3040
        %v3071 = vadd.f32 %v2460, %v3045
        %v3072 = vadd.f32 %v2463, %v3048
        %v3073 = vadd.f32 %v2468, %v3053
        %v3074 = vadd.f32 %v2471, %v3056
        %3075 = vrot.lane.b32.xlu0 %v1311, 80
        %v3076 = vpop.permute.xlu0 %3075
        %3077 = vrot.lane.b32.xlu0 %v1312, 80
        %v3078 = vpop.permute.xlu0 %3077
        %3079 = vrot.lane.b32.xlu0 %v1313, 80
        %v3080 = vpop.permute.xlu0 %3079
        %3081 = vrot.lane.b32.xlu0 %v1314, 80
        %v3082 = vpop.permute.xlu0 %3081
        %3083 = vrot.lane.b32.xlu0 %v1315, 80
        %v3084 = vpop.permute.xlu0 %3083
        %3085 = vrot.lane.b32.xlu0 %v1316, 80
        %v3086 = vpop.permute.xlu0 %3085
        %3087 = vrot.lane.b32.xlu0 %v1317, 80
        %v3088 = vpop.permute.xlu0 %3087
        %3089 = vrot.lane.b32.xlu0 %v1318, 80
        %v3090 = vpop.permute.xlu0 %3089
        %3091 = vrot.lane.b32.xlu0 %v1311, 16
        %v3092 = vpop.permute.xlu0 %3091
        %3093 = vrot.lane.b32.xlu0 %v1312, 16
        %v3094 = vpop.permute.xlu0 %3093
        %3095 = vrot.lane.b32.xlu0 %v1313, 16
        %v3096 = vpop.permute.xlu0 %3095
        %3097 = vrot.lane.b32.xlu0 %v1314, 16
        %v3098 = vpop.permute.xlu0 %3097
        %3099 = vrot.lane.b32.xlu0 %v1315, 16
        %v3100 = vpop.permute.xlu0 %3099
        %3101 = vrot.lane.b32.xlu0 %v1316, 16
        %v3102 = vpop.permute.xlu0 %3101
        %3103 = vrot.lane.b32.xlu0 %v1317, 16
        %v3104 = vpop.permute.xlu0 %3103
        %3105 = vrot.lane.b32.xlu0 %v1318, 16
        %v3106 = vpop.permute.xlu0 %3105
        %v3108 = vsel %vm1351, %v3076, 0
        %v3111 = vsel %vm1351, %v3078, 0
        %v3114 = vsel %vm1351, %v3080, 0
        %v3117 = vsel %vm1351, %v3082, 0
        %v3120 = vsel %vm1351, %v3084, 0
        %v3123 = vsel %vm1351, %v3086, 0
        %v3126 = vsel %vm1351, %v3088, 0
        %v3129 = vsel %vm1351, %v3090, 0
        %v3132 = vsel %vm1351, %v3092, 0
        %v3135 = vsel %vm1351, %v3094, 0
        %v3138 = vsel %vm1351, %v3096, 0
        %v3141 = vsel %vm1351, %v3098, 0
        %v3144 = vsel %vm1351, %v3100, 0
        %v3147 = vsel %vm1351, %v3102, 0
        %v3150 = vsel %vm1351, %v3104, 0
        %v3153 = vsel %vm1351, %v3106, 0
        %3155 = vmatprep.subr.bf16.mxu0 0
        %3156 = vmatpush1.bf16.xpose.msra.mxu0 %v3153
        %3157 = vmatprep.subr.bf16.mxu0 0
        %3158 = vmatpush1.bf16.xpose.msra.mxu0 %v3150
        %3159 = vmatprep.subr.bf16.mxu0 0
        %3160 = vmatpush1.bf16.xpose.msra.mxu0 %v3147
        %3161 = vmatprep.subr.bf16.mxu0 0
        %3162 = vmatpush1.bf16.xpose.msra.mxu0 %v3144
        %3163 = vmatprep.subr.bf16.mxu0 0
        %3164 = vmatpush1.bf16.xpose.msra.mxu0 %v3141
        %3165 = vmatprep.subr.bf16.mxu0 0
        %3166 = vmatpush1.bf16.xpose.msra.mxu0 %v3138
        %3167 = vmatprep.subr.bf16.mxu0 0
        %3168 = vmatpush1.bf16.xpose.msra.mxu0 %v3135
        %3169 = vmatprep.subr.bf16.mxu0 0
        %3170 = vmatpush1.bf16.xpose.msra.mxu0 %v3132
        %3171 = vmatprep.subr.bf16.mxu0 0
        %3172 = vmatpush2.bf16.xpose.msra.mxu0 0
        %3173 = vmatprep.subr.bf16.mxu0 0
        %3174 = vmatpush2.bf16.xpose.msra.mxu0 0
        %3175 = vmatprep.subr.bf16.mxu0 0
        %3176 = vmatpush2.bf16.xpose.msra.mxu0 0
        %3177 = vmatprep.subr.bf16.mxu0 0
        %3178 = vmatpush2.bf16.xpose.msra.mxu0 0
        %3179 = vmatprep.subr.bf16.mxu0 0
        %3180 = vmatpush2.bf16.xpose.msra.mxu0 0
        %3181 = vmatprep.subr.bf16.mxu0 0
        %3182 = vmatpush2.bf16.xpose.msra.mxu0 0
        %3183 = vmatprep.subr.bf16.mxu0 0
        %3184 = vmatpush2.bf16.xpose.msra.mxu0 0
        %3185 = vmatprep.subr.bf16.mxu0 0
        %3186 = vmatpush2.bf16.xpose.msra.mxu0 0
        %3187 = vmatprep.mubr.bf16.mxu0 0
        %3188 = vmatmul.mubr.bf16.gmra.mxu0 %v3108
        %v3189 = vpop.f32.mrf.mxu0
        %v3190 = vadd.f32 %v826, %v3189
        %v3191 = vpop.f32.mrf.mxu0
        %v3192 = vpop.f32.mrf.mxu0
        %v3193 = vadd.f32 %v827, %v3192
        %v3194 = vpop.f32.mrf.mxu0
        %3195 = vmatprep.mubr.bf16.mxu0 0
        %3196 = vmatmul.mubr.bf16.gmra.mxu0 %v3111
        %v3197 = vpop.f32.mrf.mxu0
        %v3198 = vadd.f32 %v828, %v3197
        %v3199 = vpop.f32.mrf.mxu0
        %v3200 = vpop.f32.mrf.mxu0
        %v3201 = vadd.f32 %v829, %v3200
        %v3202 = vpop.f32.mrf.mxu0
        %3203 = vmatprep.mubr.bf16.mxu0 0
        %3204 = vmatmul.mubr.bf16.gmra.mxu0 %v3114
        %v3205 = vpop.f32.mrf.mxu0
        %v3206 = vadd.f32 %v830, %v3205
        %v3207 = vpop.f32.mrf.mxu0
        %v3208 = vpop.f32.mrf.mxu0
        %v3209 = vadd.f32 %v831, %v3208
        %v3210 = vpop.f32.mrf.mxu0
        %3211 = vmatprep.mubr.bf16.mxu0 0
        %3212 = vmatmul.mubr.bf16.gmra.mxu0 %v3117
        %v3213 = vpop.f32.mrf.mxu0
        %v3214 = vadd.f32 %v832, %v3213
        %v3215 = vpop.f32.mrf.mxu0
        %v3216 = vpop.f32.mrf.mxu0
        %v3217 = vadd.f32 %v833, %v3216
        %v3218 = vpop.f32.mrf.mxu0
        %3219 = vmatprep.mubr.bf16.mxu0 0
        %3220 = vmatmul.mubr.bf16.gmra.mxu0 %v3120
        %v3221 = vpop.f32.mrf.mxu0
        %v3222 = vadd.f32 %v834, %v3221
        %v3223 = vpop.f32.mrf.mxu0
        %v3224 = vpop.f32.mrf.mxu0
        %v3225 = vadd.f32 %v835, %v3224
        %v3226 = vpop.f32.mrf.mxu0
        %3227 = vmatprep.mubr.bf16.mxu0 0
        %3228 = vmatmul.mubr.bf16.gmra.mxu0 %v3123
        %v3229 = vpop.f32.mrf.mxu0
        %v3230 = vadd.f32 %v836, %v3229
        %v3231 = vpop.f32.mrf.mxu0
        %v3232 = vpop.f32.mrf.mxu0
        %v3233 = vadd.f32 %v837, %v3232
        %v3234 = vpop.f32.mrf.mxu0
        %3235 = vmatprep.mubr.bf16.mxu0 0
        %3236 = vmatmul.mubr.bf16.gmra.mxu0 %v3126
        %v3237 = vpop.f32.mrf.mxu0
        %v3238 = vadd.f32 %v838, %v3237
        %v3239 = vpop.f32.mrf.mxu0
        %v3240 = vpop.f32.mrf.mxu0
        %v3241 = vadd.f32 %v839, %v3240
        %v3242 = vpop.f32.mrf.mxu0
        %3243 = vmatprep.mubr.bf16.mxu0 0
        %3244 = vmatmul.mubr.bf16.gmra.mxu0 %v3129
        %v3245 = vpop.f32.mrf.mxu0
        %v3246 = vadd.f32 %v840, %v3245
        %v3247 = vpop.f32.mrf.mxu0
        %v3248 = vpop.f32.mrf.mxu0
        %v3249 = vadd.f32 %v841, %v3248
        %v3250 = vpop.f32.mrf.mxu0
        %3251 = vdwg.mxu0
        %3252 = vmax.xlane.f32.xlu0 %v3190
        %v3253 = vpop.xlane.xlu0 %3252
        %3254 = vmax.xlane.f32.xlu0 %v3193
        %v3255 = vpop.xlane.xlu0 %3254
        %3256 = vmax.xlane.f32.xlu0 %v3198
        %v3257 = vpop.xlane.xlu0 %3256
        %3258 = vmax.xlane.f32.xlu0 %v3201
        %v3259 = vpop.xlane.xlu0 %3258
        %3260 = vmax.xlane.f32.xlu0 %v3206
        %v3261 = vpop.xlane.xlu0 %3260
        %3262 = vmax.xlane.f32.xlu0 %v3209
        %v3263 = vpop.xlane.xlu0 %3262
        %3264 = vmax.xlane.f32.xlu0 %v3214
        %v3265 = vpop.xlane.xlu0 %3264
        %3266 = vmax.xlane.f32.xlu0 %v3217
        %v3267 = vpop.xlane.xlu0 %3266
        %3268 = vmax.xlane.f32.xlu0 %v3222
        %v3269 = vpop.xlane.xlu0 %3268
        %3270 = vmax.xlane.f32.xlu0 %v3225
        %v3271 = vpop.xlane.xlu0 %3270
        %3272 = vmax.xlane.f32.xlu0 %v3230
        %v3273 = vpop.xlane.xlu0 %3272
        %3274 = vmax.xlane.f32.xlu0 %v3233
        %v3275 = vpop.xlane.xlu0 %3274
        %3276 = vmax.xlane.f32.xlu0 %v3238
        %v3277 = vpop.xlane.xlu0 %3276
        %3278 = vmax.xlane.f32.xlu0 %v3241
        %v3279 = vpop.xlane.xlu0 %3278
        %3280 = vmax.xlane.f32.xlu0 %v3246
        %v3281 = vpop.xlane.xlu0 %3280
        %3282 = vmax.xlane.f32.xlu0 %v3249
        %v3283 = vpop.xlane.xlu0 %3282
        %v3284 = vsub.f32 %v3190, %v3253
        %v3285 = vsub.f32 %v3193, %v3255
        %v3286 = vsub.f32 %v3198, %v3257
        %v3287 = vsub.f32 %v3201, %v3259
        %v3288 = vsub.f32 %v3206, %v3261
        %v3289 = vsub.f32 %v3209, %v3263
        %v3290 = vsub.f32 %v3214, %v3265
        %v3291 = vsub.f32 %v3217, %v3267
        %v3292 = vsub.f32 %v3222, %v3269
        %v3293 = vsub.f32 %v3225, %v3271
        %v3294 = vsub.f32 %v3230, %v3273
        %v3295 = vsub.f32 %v3233, %v3275
        %v3296 = vsub.f32 %v3238, %v3277
        %v3297 = vsub.f32 %v3241, %v3279
        %v3298 = vsub.f32 %v3246, %v3281
        %v3299 = vsub.f32 %v3249, %v3283
        %v3300 = vmul.f32 %v3284, 1.442695
        %v3301 = vpow.pop %v3300
        %v3302 = vmul.f32 %v3285, 1.442695
        %v3303 = vpow.pop %v3302
        %v3304 = vmul.f32 %v3286, 1.442695
        %v3305 = vpow.pop %v3304
        %v3306 = vmul.f32 %v3287, 1.442695
        %v3307 = vpow.pop %v3306
        %v3308 = vmul.f32 %v3288, 1.442695
        %v3309 = vpow.pop %v3308
        %v3310 = vmul.f32 %v3289, 1.442695
        %v3311 = vpow.pop %v3310
        %v3312 = vmul.f32 %v3290, 1.442695
        %v3313 = vpow.pop %v3312
        %v3314 = vmul.f32 %v3291, 1.442695
        %v3315 = vpow.pop %v3314
        %v3316 = vmul.f32 %v3292, 1.442695
        %v3317 = vpow.pop %v3316
        %v3318 = vmul.f32 %v3293, 1.442695
        %v3319 = vpow.pop %v3318
        %v3320 = vmul.f32 %v3294, 1.442695
        %v3321 = vpow.pop %v3320
        %v3322 = vmul.f32 %v3295, 1.442695
        %v3323 = vpow.pop %v3322
        %v3324 = vmul.f32 %v3296, 1.442695
        %v3325 = vpow.pop %v3324
        %v3326 = vmul.f32 %v3297, 1.442695
        %v3327 = vpow.pop %v3326
        %v3328 = vmul.f32 %v3298, 1.442695
        %v3329 = vpow.pop %v3328
        %v3330 = vmul.f32 %v3299, 1.442695
        %v3331 = vpow.pop %v3330
        %3332 = vadd.xlane.f32.xlu0 %v3301
        %v3333 = vpop.xlane.xlu0 %3332
        %3334 = vadd.xlane.f32.xlu0 %v3303
        %v3335 = vpop.xlane.xlu0 %3334
        %3336 = vadd.xlane.f32.xlu0 %v3305
        %v3337 = vpop.xlane.xlu0 %3336
        %3338 = vadd.xlane.f32.xlu0 %v3307
        %v3339 = vpop.xlane.xlu0 %3338
        %3340 = vadd.xlane.f32.xlu0 %v3309
        %v3341 = vpop.xlane.xlu0 %3340
        %3342 = vadd.xlane.f32.xlu0 %v3311
        %v3343 = vpop.xlane.xlu0 %3342
        %3344 = vadd.xlane.f32.xlu0 %v3313
        %v3345 = vpop.xlane.xlu0 %3344
        %3346 = vadd.xlane.f32.xlu0 %v3315
        %v3347 = vpop.xlane.xlu0 %3346
        %3348 = vadd.xlane.f32.xlu0 %v3317
        %v3349 = vpop.xlane.xlu0 %3348
        %3350 = vadd.xlane.f32.xlu0 %v3319
        %v3351 = vpop.xlane.xlu0 %3350
        %3352 = vadd.xlane.f32.xlu0 %v3321
        %v3353 = vpop.xlane.xlu0 %3352
        %3354 = vadd.xlane.f32.xlu0 %v3323
        %v3355 = vpop.xlane.xlu0 %3354
        %3356 = vadd.xlane.f32.xlu0 %v3325
        %v3357 = vpop.xlane.xlu0 %3356
        %3358 = vadd.xlane.f32.xlu0 %v3327
        %v3359 = vpop.xlane.xlu0 %3358
        %3360 = vadd.xlane.f32.xlu0 %v3329
        %v3361 = vpop.xlane.xlu0 %3360
        %3362 = vadd.xlane.f32.xlu0 %v3331
        %v3363 = vpop.xlane.xlu0 %3362
        %v3364 = vrcp.pop %v3333
        %v3365 = vmul.f32 %v3301, %v3364
        %v3366 = vrcp.pop %v3335
        %v3367 = vmul.f32 %v3303, %v3366
        %v3368 = vrcp.pop %v3337
        %v3369 = vmul.f32 %v3305, %v3368
        %v3370 = vrcp.pop %v3339
        %v3371 = vmul.f32 %v3307, %v3370
        %v3372 = vrcp.pop %v3341
        %v3373 = vmul.f32 %v3309, %v3372
        %v3374 = vrcp.pop %v3343
        %v3375 = vmul.f32 %v3311, %v3374
        %v3376 = vrcp.pop %v3345
        %v3377 = vmul.f32 %v3313, %v3376
        %v3378 = vrcp.pop %v3347
        %v3379 = vmul.f32 %v3315, %v3378
        %v3380 = vrcp.pop %v3349
        %v3381 = vmul.f32 %v3317, %v3380
        %v3382 = vrcp.pop %v3351
        %v3383 = vmul.f32 %v3319, %v3382
        %v3384 = vrcp.pop %v3353
        %v3385 = vmul.f32 %v3321, %v3384
        %v3386 = vrcp.pop %v3355
        %v3387 = vmul.f32 %v3323, %v3386
        %v3388 = vrcp.pop %v3357
        %v3389 = vmul.f32 %v3325, %v3388
        %v3390 = vrcp.pop %v3359
        %v3391 = vmul.f32 %v3327, %v3390
        %v3392 = vrcp.pop %v3361
        %v3393 = vmul.f32 %v3329, %v3392
        %v3394 = vrcp.pop %v3363
        %v3395 = vmul.f32 %v3331, %v3394
        %v3396 = vpack.c.bf16 %v3367, %v3365
        %v3397 = vpack.c.bf16 %v3371, %v3369
        %v3398 = vpack.c.bf16 %v3375, %v3373
        %v3399 = vpack.c.bf16 %v3379, %v3377
        %v3400 = vpack.c.bf16 %v3383, %v3381
        %v3401 = vpack.c.bf16 %v3387, %v3385
        %v3402 = vpack.c.bf16 %v3391, %v3389
        %v3403 = vpack.c.bf16 %v3395, %v3393
        %3404 = vrot.lane.b32.xlu0 %v1319, 80
        %v3405 = vpop.permute.xlu0 %3404
        %3406 = vrot.lane.b32.xlu0 %v1320, 80
        %v3407 = vpop.permute.xlu0 %3406
        %3408 = vrot.lane.b32.xlu0 %v1321, 80
        %v3409 = vpop.permute.xlu0 %3408
        %3410 = vrot.lane.b32.xlu0 %v1322, 80
        %v3411 = vpop.permute.xlu0 %3410
        %3412 = vrot.lane.b32.xlu0 %v1323, 80
        %v3413 = vpop.permute.xlu0 %3412
        %3414 = vrot.lane.b32.xlu0 %v1324, 80
        %v3415 = vpop.permute.xlu0 %3414
        %3416 = vrot.lane.b32.xlu0 %v1325, 80
        %v3417 = vpop.permute.xlu0 %3416
        %3418 = vrot.lane.b32.xlu0 %v1326, 80
        %v3419 = vpop.permute.xlu0 %3418
        %3428 = vmatprep.subr.bf16.mxu0 0
        %3429 = vmatpush1.bf16.msra.mxu0 %v3419
        %3430 = vmatprep.subr.bf16.mxu0 0
        %3431 = vmatpush1.bf16.msra.mxu0 %v3417
        %3432 = vmatprep.subr.bf16.mxu0 0
        %3433 = vmatpush1.bf16.msra.mxu0 %v3415
        %3434 = vmatprep.subr.bf16.mxu0 0
        %3435 = vmatpush1.bf16.msra.mxu0 %v3413
        %3436 = vmatprep.subr.bf16.mxu0 0
        %3437 = vmatpush1.bf16.msra.mxu0 %v3411
        %3438 = vmatprep.subr.bf16.mxu0 0
        %3439 = vmatpush1.bf16.msra.mxu0 %v3409
        %3440 = vmatprep.subr.bf16.mxu0 0
        %3441 = vmatpush1.bf16.msra.mxu0 %v3407
        %3442 = vmatprep.subr.bf16.mxu0 0
        %3443 = vmatpush1.bf16.msra.mxu0 %v3405
        %3444 = vmatprep.subr.bf16.mxu0 0
        %3445 = vmatpush2.bf16.msra.mxu0 0
        %3446 = vmatprep.subr.bf16.mxu0 0
        %3447 = vmatpush2.bf16.msra.mxu0 0
        %3448 = vmatprep.subr.bf16.mxu0 0
        %3449 = vmatpush2.bf16.msra.mxu0 0
        %3450 = vmatprep.subr.bf16.mxu0 0
        %3451 = vmatpush2.bf16.msra.mxu0 0
        %3452 = vmatprep.subr.bf16.mxu0 0
        %3453 = vmatpush2.bf16.msra.mxu0 0
        %3454 = vmatprep.subr.bf16.mxu0 0
        %3455 = vmatpush2.bf16.msra.mxu0 0
        %3456 = vmatprep.subr.bf16.mxu0 0
        %3457 = vmatpush2.bf16.msra.mxu0 0
        %3458 = vmatprep.subr.bf16.mxu0 0
        %3459 = vmatpush2.bf16.msra.mxu0 0
        %3460 = vmatprep.mubr.bf16.mxu0 0
        %3461 = vmatmul.mubr.bf16.gmra.mxu0 %v3396
        %v3462 = vpop.f32.mrf.mxu0
        %v3463 = vadd.f32 0.0, %v3462
        %v3464 = vpop.f32.mrf.mxu0
        %v3465 = vpop.f32.mrf.mxu0
        %v3466 = vadd.f32 0.0, %v3465
        %v3467 = vpop.f32.mrf.mxu0
        %3468 = vmatprep.mubr.bf16.mxu0 0
        %3469 = vmatmul.mubr.bf16.gmra.mxu0 %v3397
        %v3470 = vpop.f32.mrf.mxu0
        %v3471 = vadd.f32 0.0, %v3470
        %v3472 = vpop.f32.mrf.mxu0
        %v3473 = vpop.f32.mrf.mxu0
        %v3474 = vadd.f32 0.0, %v3473
        %v3475 = vpop.f32.mrf.mxu0
        %3476 = vmatprep.mubr.bf16.mxu0 0
        %3477 = vmatmul.mubr.bf16.gmra.mxu0 %v3398
        %v3478 = vpop.f32.mrf.mxu0
        %v3479 = vadd.f32 0.0, %v3478
        %v3480 = vpop.f32.mrf.mxu0
        %v3481 = vpop.f32.mrf.mxu0
        %v3482 = vadd.f32 0.0, %v3481
        %v3483 = vpop.f32.mrf.mxu0
        %3484 = vmatprep.mubr.bf16.mxu0 0
        %3485 = vmatmul.mubr.bf16.gmra.mxu0 %v3399
        %v3486 = vpop.f32.mrf.mxu0
        %v3487 = vadd.f32 0.0, %v3486
        %v3488 = vpop.f32.mrf.mxu0
        %v3489 = vpop.f32.mrf.mxu0
        %v3490 = vadd.f32 0.0, %v3489
        %v3491 = vpop.f32.mrf.mxu0
        %3492 = vmatprep.mubr.bf16.mxu0 0
        %3493 = vmatmul.mubr.bf16.gmra.mxu0 %v3400
        %v3494 = vpop.f32.mrf.mxu0
        %v3495 = vadd.f32 0.0, %v3494
        %v3496 = vpop.f32.mrf.mxu0
        %v3497 = vpop.f32.mrf.mxu0
        %v3498 = vadd.f32 0.0, %v3497
        %v3499 = vpop.f32.mrf.mxu0
        %3500 = vmatprep.mubr.bf16.mxu0 0
        %3501 = vmatmul.mubr.bf16.gmra.mxu0 %v3401
        %v3502 = vpop.f32.mrf.mxu0
        %v3503 = vadd.f32 0.0, %v3502
        %v3504 = vpop.f32.mrf.mxu0
        %v3505 = vpop.f32.mrf.mxu0
        %v3506 = vadd.f32 0.0, %v3505
        %v3507 = vpop.f32.mrf.mxu0
        %3508 = vmatprep.mubr.bf16.mxu0 0
        %3509 = vmatmul.mubr.bf16.gmra.mxu0 %v3402
        %v3510 = vpop.f32.mrf.mxu0
        %v3511 = vadd.f32 0.0, %v3510
        %v3512 = vpop.f32.mrf.mxu0
        %v3513 = vpop.f32.mrf.mxu0
        %v3514 = vadd.f32 0.0, %v3513
        %v3515 = vpop.f32.mrf.mxu0
        %3516 = vmatprep.mubr.bf16.mxu0 0
        %3517 = vmatmul.mubr.bf16.gmra.mxu0 %v3403
        %v3518 = vpop.f32.mrf.mxu0
        %v3519 = vadd.f32 0.0, %v3518
        %v3520 = vpop.f32.mrf.mxu0
        %v3521 = vpop.f32.mrf.mxu0
        %v3522 = vadd.f32 0.0, %v3521
        %v3523 = vpop.f32.mrf.mxu0
        %3524 = vdwg.mxu0
        %v3525 = vpack.c.bf16 %v3466, %v3463
        %v3526 = vpack.c.bf16 %v3474, %v3471
        %v3527 = vpack.c.bf16 %v3482, %v3479
        %v3528 = vpack.c.bf16 %v3490, %v3487
        %v3529 = vpack.c.bf16 %v3498, %v3495
        %v3530 = vpack.c.bf16 %v3506, %v3503
        %v3531 = vpack.c.bf16 %v3514, %v3511
        %v3532 = vpack.c.bf16 %v3522, %v3519
        %v3535 = vunpack.c.l.b16 %v1309
        %v3536 = vunpack.c.l.b16 %v1310
        %v3537 = vpack.c.b16 %v3536, %v3535
        %v3540 = vsel %vm1351, %v3525, 0
        %v3543 = vsel %vm1351, %v3526, 0
        %v3546 = vsel %vm1351, %v3527, 0
        %v3549 = vsel %vm1351, %v3528, 0
        %v3552 = vsel %vm1351, %v3529, 0
        %v3555 = vsel %vm1351, %v3530, 0
        %v3558 = vsel %vm1351, %v3531, 0
        %v3561 = vsel %vm1351, %v3532, 0
        %3563 = vmatprep.subr.bf16.mxu0 0
        %3564 = vmatpush1.bf16.msra.mxu0 0
        %3565 = vmatprep.subr.bf16.mxu0 0
        %3566 = vmatpush1.bf16.msra.mxu0 0
        %3567 = vmatprep.subr.bf16.mxu0 0
        %3568 = vmatpush1.bf16.msra.mxu0 0
        %3569 = vmatprep.subr.bf16.mxu0 0
        %3570 = vmatpush1.bf16.msra.mxu0 0
        %3571 = vmatprep.subr.bf16.mxu0 0
        %3572 = vmatpush1.bf16.msra.mxu0 0
        %3573 = vmatprep.subr.bf16.mxu0 0
        %3574 = vmatpush1.bf16.msra.mxu0 0
        %3575 = vmatprep.subr.bf16.mxu0 0
        %3576 = vmatpush1.bf16.msra.mxu0 0
        %3577 = vmatprep.subr.bf16.mxu0 0
        %3578 = vmatpush1.bf16.msra.mxu0 %v3537
        %3579 = vmatprep.subr.bf16.mxu0 0
        %3580 = vmatpush2.bf16.msra.mxu0 0
        %3581 = vmatprep.subr.bf16.mxu0 0
        %3582 = vmatpush2.bf16.msra.mxu0 0
        %3583 = vmatprep.subr.bf16.mxu0 0
        %3584 = vmatpush2.bf16.msra.mxu0 0
        %3585 = vmatprep.subr.bf16.mxu0 0
        %3586 = vmatpush2.bf16.msra.mxu0 0
        %3587 = vmatprep.subr.bf16.mxu0 0
        %3588 = vmatpush2.bf16.msra.mxu0 0
        %3589 = vmatprep.subr.bf16.mxu0 0
        %3590 = vmatpush2.bf16.msra.mxu0 0
        %3591 = vmatprep.subr.bf16.mxu0 0
        %3592 = vmatpush2.bf16.msra.mxu0 0
        %3593 = vmatprep.subr.bf16.mxu0 0
        %3594 = vmatpush2.bf16.msra.mxu0 0
        %3595 = vmatprep.mubr.bf16.mxu0 0
        %3596 = vmatmul.mubr.bf16.gmra.mxu0 %v3540
        %v3597 = vpop.f32.mrf.mxu0
        %v3598 = vadd.f32 0.0, %v3597
        %v3599 = vpop.f32.mrf.mxu0
        %v3600 = vpop.f32.mrf.mxu0
        %v3601 = vadd.f32 0.0, %v3600
        %v3602 = vpop.f32.mrf.mxu0
        %3603 = vmatprep.mubr.bf16.mxu0 0
        %3604 = vmatmul.mubr.bf16.gmra.mxu0 %v3543
        %v3605 = vpop.f32.mrf.mxu0
        %v3606 = vadd.f32 0.0, %v3605
        %v3607 = vpop.f32.mrf.mxu0
        %v3608 = vpop.f32.mrf.mxu0
        %v3609 = vadd.f32 0.0, %v3608
        %v3610 = vpop.f32.mrf.mxu0
        %3611 = vmatprep.mubr.bf16.mxu0 0
        %3612 = vmatmul.mubr.bf16.gmra.mxu0 %v3546
        %v3613 = vpop.f32.mrf.mxu0
        %v3614 = vadd.f32 0.0, %v3613
        %v3615 = vpop.f32.mrf.mxu0
        %v3616 = vpop.f32.mrf.mxu0
        %v3617 = vadd.f32 0.0, %v3616
        %v3618 = vpop.f32.mrf.mxu0
        %3619 = vmatprep.mubr.bf16.mxu0 0
        %3620 = vmatmul.mubr.bf16.gmra.mxu0 %v3549
        %v3621 = vpop.f32.mrf.mxu0
        %v3622 = vadd.f32 0.0, %v3621
        %v3623 = vpop.f32.mrf.mxu0
        %v3624 = vpop.f32.mrf.mxu0
        %v3625 = vadd.f32 0.0, %v3624
        %v3626 = vpop.f32.mrf.mxu0
        %3627 = vmatprep.mubr.bf16.mxu0 0
        %3628 = vmatmul.mubr.bf16.gmra.mxu0 %v3552
        %v3629 = vpop.f32.mrf.mxu0
        %v3630 = vadd.f32 0.0, %v3629
        %v3631 = vpop.f32.mrf.mxu0
        %v3632 = vpop.f32.mrf.mxu0
        %v3633 = vadd.f32 0.0, %v3632
        %v3634 = vpop.f32.mrf.mxu0
        %3635 = vmatprep.mubr.bf16.mxu0 0
        %3636 = vmatmul.mubr.bf16.gmra.mxu0 %v3555
        %v3637 = vpop.f32.mrf.mxu0
        %v3638 = vadd.f32 0.0, %v3637
        %v3639 = vpop.f32.mrf.mxu0
        %v3640 = vpop.f32.mrf.mxu0
        %v3641 = vadd.f32 0.0, %v3640
        %v3642 = vpop.f32.mrf.mxu0
        %3643 = vmatprep.mubr.bf16.mxu0 0
        %3644 = vmatmul.mubr.bf16.gmra.mxu0 %v3558
        %v3645 = vpop.f32.mrf.mxu0
        %v3646 = vadd.f32 0.0, %v3645
        %v3647 = vpop.f32.mrf.mxu0
        %v3648 = vpop.f32.mrf.mxu0
        %v3649 = vadd.f32 0.0, %v3648
        %v3650 = vpop.f32.mrf.mxu0
        %3651 = vmatprep.mubr.bf16.mxu0 0
        %3652 = vmatmul.mubr.bf16.gmra.mxu0 %v3561
        %v3653 = vpop.f32.mrf.mxu0
        %v3654 = vadd.f32 0.0, %v3653
        %v3655 = vpop.f32.mrf.mxu0
        %v3656 = vpop.f32.mrf.mxu0
        %v3657 = vadd.f32 0.0, %v3656
        %v3658 = vpop.f32.mrf.mxu0
        %3659 = vdwg.mxu0
        %v3660 = vadd.f32 %v3059, %v3598
        %v3661 = vadd.f32 %v3060, %v3601
        %v3662 = vadd.f32 %v3061, %v3606
        %v3663 = vadd.f32 %v3062, %v3609
        %v3664 = vadd.f32 %v3063, %v3614
        %v3665 = vadd.f32 %v3064, %v3617
        %v3666 = vadd.f32 %v3065, %v3622
        %v3667 = vadd.f32 %v3066, %v3625
        %v3668 = vadd.f32 %v3067, %v3630
        %v3669 = vadd.f32 %v3068, %v3633
        %v3670 = vadd.f32 %v3069, %v3638
        %v3671 = vadd.f32 %v3070, %v3641
        %v3672 = vadd.f32 %v3071, %v3646
        %v3673 = vadd.f32 %v3072, %v3649
        %v3674 = vadd.f32 %v3073, %v3654
        %v3675 = vadd.f32 %v3074, %v3657
        %v3676 = vadd.f32 %v741, %v3660
        %v3677 = vadd.f32 %v742, %v3661
        %v3678 = vadd.f32 %v743, %v3662
        %v3679 = vadd.f32 %v744, %v3663
        %v3680 = vadd.f32 %v745, %v3664
        %v3681 = vadd.f32 %v746, %v3665
        %v3682 = vadd.f32 %v747, %v3666
        %v3683 = vadd.f32 %v748, %v3667
        %v3684 = vadd.f32 %v749, %v3668
        %v3685 = vadd.f32 %v750, %v3669
        %v3686 = vadd.f32 %v751, %v3670
        %v3687 = vadd.f32 %v752, %v3671
        %v3688 = vadd.f32 %v753, %v3672
        %v3689 = vadd.f32 %v754, %v3673
        %v3690 = vadd.f32 %v755, %v3674
        %v3691 = vadd.f32 %v756, %v3675
        %v3692 = vld [vmem:[%s679] sm:$0x1]
        %v3694 = vlaneseq
        %v3695 = vshrl.u32 %v3694, 7
        %v3696 = vsub.s32 0, %v3695
        %v3697 = vrot.slane %v3692, %v3696
        %v3699 = vadd.f32 %v3676, %v3697
        %v3700 = vadd.f32 %v3677, %v3697
        %v3701 = vadd.f32 %v3678, %v3697
        %v3702 = vadd.f32 %v3679, %v3697
        %v3703 = vadd.f32 %v3680, %v3697
        %v3704 = vadd.f32 %v3681, %v3697
        %v3705 = vadd.f32 %v3682, %v3697
        %v3706 = vadd.f32 %v3683, %v3697
        %v3707 = vadd.f32 %v3684, %v3697
        %v3708 = vadd.f32 %v3685, %v3697
        %v3709 = vadd.f32 %v3686, %v3697
        %v3710 = vadd.f32 %v3687, %v3697
        %v3711 = vadd.f32 %v3688, %v3697
        %v3712 = vadd.f32 %v3689, %v3697
        %v3713 = vadd.f32 %v3690, %v3697
        %v3714 = vadd.f32 %v3691, %v3697
        %v3715 = vld [vmem:[%s682] sm:$0x1]
        %v3716 = vld [vmem:[%s685] sm:$0x1]
        %v3717 = vsel %vm844, %v3699, 0.0
        %3718 = vadd.xlane.f32.xlu0 %v3717
        %v3719 = vpop.xlane.xlu0 %3718
        %v3720 = vsel %vm844, %v3700, 0.0
        %3721 = vadd.xlane.f32.xlu0 %v3720
        %v3722 = vpop.xlane.xlu0 %3721
        %v3723 = vsel %vm844, %v3701, 0.0
        %3724 = vadd.xlane.f32.xlu0 %v3723
        %v3725 = vpop.xlane.xlu0 %3724
        %v3726 = vsel %vm844, %v3702, 0.0
        %3727 = vadd.xlane.f32.xlu0 %v3726
        %v3728 = vpop.xlane.xlu0 %3727
        %v3729 = vsel %vm844, %v3703, 0.0
        %3730 = vadd.xlane.f32.xlu0 %v3729
        %v3731 = vpop.xlane.xlu0 %3730
        %v3732 = vsel %vm844, %v3704, 0.0
        %3733 = vadd.xlane.f32.xlu0 %v3732
        %v3734 = vpop.xlane.xlu0 %3733
        %v3735 = vsel %vm844, %v3705, 0.0
        %3736 = vadd.xlane.f32.xlu0 %v3735
        %v3737 = vpop.xlane.xlu0 %3736
        %v3738 = vsel %vm844, %v3706, 0.0
        %3739 = vadd.xlane.f32.xlu0 %v3738
        %v3740 = vpop.xlane.xlu0 %3739
        %v3741 = vsel %vm844, %v3707, 0.0
        %3742 = vadd.xlane.f32.xlu0 %v3741
        %v3743 = vpop.xlane.xlu0 %3742
        %v3744 = vsel %vm844, %v3708, 0.0
        %3745 = vadd.xlane.f32.xlu0 %v3744
        %v3746 = vpop.xlane.xlu0 %3745
        %v3747 = vsel %vm844, %v3709, 0.0
        %3748 = vadd.xlane.f32.xlu0 %v3747
        %v3749 = vpop.xlane.xlu0 %3748
        %v3750 = vsel %vm844, %v3710, 0.0
        %3751 = vadd.xlane.f32.xlu0 %v3750
        %v3752 = vpop.xlane.xlu0 %3751
        %v3753 = vsel %vm844, %v3711, 0.0
        %3754 = vadd.xlane.f32.xlu0 %v3753
        %v3755 = vpop.xlane.xlu0 %3754
        %v3756 = vsel %vm844, %v3712, 0.0
        %3757 = vadd.xlane.f32.xlu0 %v3756
        %v3758 = vpop.xlane.xlu0 %3757
        %v3759 = vsel %vm844, %v3713, 0.0
        %3760 = vadd.xlane.f32.xlu0 %v3759
        %v3761 = vpop.xlane.xlu0 %3760
        %v3762 = vsel %vm844, %v3714, 0.0
        %3763 = vadd.xlane.f32.xlu0 %v3762
        %v3764 = vpop.xlane.xlu0 %3763
        %v3765 = vmul.f32 %v3719, %v893
        %v3766 = vmul.f32 %v3722, %v893
        %v3767 = vmul.f32 %v3725, %v893
        %v3768 = vmul.f32 %v3728, %v893
        %v3769 = vmul.f32 %v3731, %v893
        %v3770 = vmul.f32 %v3734, %v893
        %v3771 = vmul.f32 %v3737, %v893
        %v3772 = vmul.f32 %v3740, %v893
        %v3773 = vmul.f32 %v3743, %v893
        %v3774 = vmul.f32 %v3746, %v893
        %v3775 = vmul.f32 %v3749, %v893
        %v3776 = vmul.f32 %v3752, %v893
        %v3777 = vmul.f32 %v3755, %v893
        %v3778 = vmul.f32 %v3758, %v893
        %v3779 = vmul.f32 %v3761, %v893
        %v3780 = vmul.f32 %v3764, %v893
        %v3781 = vsub.f32 %v3699, %v3765
        %v3782 = vsub.f32 %v3700, %v3766
        %v3783 = vsub.f32 %v3701, %v3767
        %v3784 = vsub.f32 %v3702, %v3768
        %v3785 = vsub.f32 %v3703, %v3769
        %v3786 = vsub.f32 %v3704, %v3770
        %v3787 = vsub.f32 %v3705, %v3771
        %v3788 = vsub.f32 %v3706, %v3772
        %v3789 = vsub.f32 %v3707, %v3773
        %v3790 = vsub.f32 %v3708, %v3774
        %v3791 = vsub.f32 %v3709, %v3775
        %v3792 = vsub.f32 %v3710, %v3776
        %v3793 = vsub.f32 %v3711, %v3777
        %v3794 = vsub.f32 %v3712, %v3778
        %v3795 = vsub.f32 %v3713, %v3779
        %v3796 = vsub.f32 %v3714, %v3780
        %v3797 = vmul.f32 %v3781, %v3781
        %v3798 = vmul.f32 %v3782, %v3782
        %v3799 = vmul.f32 %v3783, %v3783
        %v3800 = vmul.f32 %v3784, %v3784
        %v3801 = vmul.f32 %v3785, %v3785
        %v3802 = vmul.f32 %v3786, %v3786
        %v3803 = vmul.f32 %v3787, %v3787
        %v3804 = vmul.f32 %v3788, %v3788
        %v3805 = vmul.f32 %v3789, %v3789
        %v3806 = vmul.f32 %v3790, %v3790
        %v3807 = vmul.f32 %v3791, %v3791
        %v3808 = vmul.f32 %v3792, %v3792
        %v3809 = vmul.f32 %v3793, %v3793
        %v3810 = vmul.f32 %v3794, %v3794
        %v3811 = vmul.f32 %v3795, %v3795
        %v3812 = vmul.f32 %v3796, %v3796
        %v3813 = vsel %vm844, %v3797, 0.0
        %3814 = vadd.xlane.f32.xlu0 %v3813
        %v3815 = vpop.xlane.xlu0 %3814
        %v3816 = vsel %vm844, %v3798, 0.0
        %3817 = vadd.xlane.f32.xlu0 %v3816
        %v3818 = vpop.xlane.xlu0 %3817
        %v3819 = vsel %vm844, %v3799, 0.0
        %3820 = vadd.xlane.f32.xlu0 %v3819
        %v3821 = vpop.xlane.xlu0 %3820
        %v3822 = vsel %vm844, %v3800, 0.0
        %3823 = vadd.xlane.f32.xlu0 %v3822
        %v3824 = vpop.xlane.xlu0 %3823
        %v3825 = vsel %vm844, %v3801, 0.0
        %3826 = vadd.xlane.f32.xlu0 %v3825
        %v3827 = vpop.xlane.xlu0 %3826
        %v3828 = vsel %vm844, %v3802, 0.0
        %3829 = vadd.xlane.f32.xlu0 %v3828
        %v3830 = vpop.xlane.xlu0 %3829
        %v3831 = vsel %vm844, %v3803, 0.0
        %3832 = vadd.xlane.f32.xlu0 %v3831
        %v3833 = vpop.xlane.xlu0 %3832
        %v3834 = vsel %vm844, %v3804, 0.0
        %3835 = vadd.xlane.f32.xlu0 %v3834
        %v3836 = vpop.xlane.xlu0 %3835
        %v3837 = vsel %vm844, %v3805, 0.0
        %3838 = vadd.xlane.f32.xlu0 %v3837
        %v3839 = vpop.xlane.xlu0 %3838
        %v3840 = vsel %vm844, %v3806, 0.0
        %3841 = vadd.xlane.f32.xlu0 %v3840
        %v3842 = vpop.xlane.xlu0 %3841
        %v3843 = vsel %vm844, %v3807, 0.0
        %3844 = vadd.xlane.f32.xlu0 %v3843
        %v3845 = vpop.xlane.xlu0 %3844
        %v3846 = vsel %vm844, %v3808, 0.0
        %3847 = vadd.xlane.f32.xlu0 %v3846
        %v3848 = vpop.xlane.xlu0 %3847
        %v3849 = vsel %vm844, %v3809, 0.0
        %3850 = vadd.xlane.f32.xlu0 %v3849
        %v3851 = vpop.xlane.xlu0 %3850
        %v3852 = vsel %vm844, %v3810, 0.0
        %3853 = vadd.xlane.f32.xlu0 %v3852
        %v3854 = vpop.xlane.xlu0 %3853
        %v3855 = vsel %vm844, %v3811, 0.0
        %3856 = vadd.xlane.f32.xlu0 %v3855
        %v3857 = vpop.xlane.xlu0 %3856
        %v3858 = vsel %vm844, %v3812, 0.0
        %3859 = vadd.xlane.f32.xlu0 %v3858
        %v3860 = vpop.xlane.xlu0 %3859
        %v3861 = vmul.f32 %v3815, %v893
        %v3862 = vmul.f32 %v3818, %v893
        %v3863 = vmul.f32 %v3821, %v893
        %v3864 = vmul.f32 %v3824, %v893
        %v3865 = vmul.f32 %v3827, %v893
        %v3866 = vmul.f32 %v3830, %v893
        %v3867 = vmul.f32 %v3833, %v893
        %v3868 = vmul.f32 %v3836, %v893
        %v3869 = vmul.f32 %v3839, %v893
        %v3870 = vmul.f32 %v3842, %v893
        %v3871 = vmul.f32 %v3845, %v893
        %v3872 = vmul.f32 %v3848, %v893
        %v3873 = vmul.f32 %v3851, %v893
        %v3874 = vmul.f32 %v3854, %v893
        %v3875 = vmul.f32 %v3857, %v893
        %v3876 = vmul.f32 %v3860, %v893
        %v3877 = vadd.f32 %v3861, 1e-12
        %v3878 = vadd.f32 %v3862, 1e-12
        %v3879 = vadd.f32 %v3863, 1e-12
        %v3880 = vadd.f32 %v3864, 1e-12
        %v3881 = vadd.f32 %v3865, 1e-12
        %v3882 = vadd.f32 %v3866, 1e-12
        %v3883 = vadd.f32 %v3867, 1e-12
        %v3884 = vadd.f32 %v3868, 1e-12
        %v3885 = vadd.f32 %v3869, 1e-12
        %v3886 = vadd.f32 %v3870, 1e-12
        %v3887 = vadd.f32 %v3871, 1e-12
        %v3888 = vadd.f32 %v3872, 1e-12
        %v3889 = vadd.f32 %v3873, 1e-12
        %v3890 = vadd.f32 %v3874, 1e-12
        %v3891 = vadd.f32 %v3875, 1e-12
        %v3892 = vadd.f32 %v3876, 1e-12
        %v3893 = vrsqrt.pop %v3877
        %v3894 = vrsqrt.pop %v3878
        %v3895 = vrsqrt.pop %v3879
        %v3896 = vrsqrt.pop %v3880
        %v3897 = vrsqrt.pop %v3881
        %v3898 = vrsqrt.pop %v3882
        %v3899 = vrsqrt.pop %v3883
        %v3900 = vrsqrt.pop %v3884
        %v3901 = vrsqrt.pop %v3885
        %v3902 = vrsqrt.pop %v3886
        %v3903 = vrsqrt.pop %v3887
        %v3904 = vrsqrt.pop %v3888
        %v3905 = vrsqrt.pop %v3889
        %v3906 = vrsqrt.pop %v3890
        %v3907 = vrsqrt.pop %v3891
        %v3908 = vrsqrt.pop %v3892
        %v3909 = vmul.f32 %v3781, %v3893
        %v3910 = vmul.f32 %v3782, %v3894
        %v3911 = vmul.f32 %v3783, %v3895
        %v3912 = vmul.f32 %v3784, %v3896
        %v3913 = vmul.f32 %v3785, %v3897
        %v3914 = vmul.f32 %v3786, %v3898
        %v3915 = vmul.f32 %v3787, %v3899
        %v3916 = vmul.f32 %v3788, %v3900
        %v3917 = vmul.f32 %v3789, %v3901
        %v3918 = vmul.f32 %v3790, %v3902
        %v3919 = vmul.f32 %v3791, %v3903
        %v3920 = vmul.f32 %v3792, %v3904
        %v3921 = vmul.f32 %v3793, %v3905
        %v3922 = vmul.f32 %v3794, %v3906
        %v3923 = vmul.f32 %v3795, %v3907
        %v3924 = vmul.f32 %v3796, %v3908
        %v3926 = vlaneseq
        %v3927 = vshrl.u32 %v3926, 7
        %v3928 = vsub.s32 0, %v3927
        %v3929 = vrot.slane %v3715, %v3928
        %v3931 = vmul.f32 %v3909, %v3929
        %v3932 = vmul.f32 %v3910, %v3929
        %v3933 = vmul.f32 %v3911, %v3929
        %v3934 = vmul.f32 %v3912, %v3929
        %v3935 = vmul.f32 %v3913, %v3929
        %v3936 = vmul.f32 %v3914, %v3929
        %v3937 = vmul.f32 %v3915, %v3929
        %v3938 = vmul.f32 %v3916, %v3929
        %v3939 = vmul.f32 %v3917, %v3929
        %v3940 = vmul.f32 %v3918, %v3929
        %v3941 = vmul.f32 %v3919, %v3929
        %v3942 = vmul.f32 %v3920, %v3929
        %v3943 = vmul.f32 %v3921, %v3929
        %v3944 = vmul.f32 %v3922, %v3929
        %v3945 = vmul.f32 %v3923, %v3929
        %v3946 = vmul.f32 %v3924, %v3929
        %v3948 = vlaneseq
        %v3949 = vshrl.u32 %v3948, 7
        %v3950 = vsub.s32 0, %v3949
        %v3951 = vrot.slane %v3716, %v3950
        %v3953 = vadd.f32 %v3931, %v3951
        %v3954 = vadd.f32 %v3932, %v3951
        %v3955 = vadd.f32 %v3933, %v3951
        %v3956 = vadd.f32 %v3934, %v3951
        %v3957 = vadd.f32 %v3935, %v3951
        %v3958 = vadd.f32 %v3936, %v3951
        %v3959 = vadd.f32 %v3937, %v3951
        %v3960 = vadd.f32 %v3938, %v3951
        %v3961 = vadd.f32 %v3939, %v3951
        %v3962 = vadd.f32 %v3940, %v3951
        %v3963 = vadd.f32 %v3941, %v3951
        %v3964 = vadd.f32 %v3942, %v3951
        %v3965 = vadd.f32 %v3943, %v3951
        %v3966 = vadd.f32 %v3944, %v3951
        %v3967 = vadd.f32 %v3945, %v3951
        %v3968 = vadd.f32 %v3946, %v3951
        %v3969 = vpack.c.bf16 %v3954, %v3953
        %v3970 = vpack.c.bf16 %v3956, %v3955
        %v3971 = vpack.c.bf16 %v3958, %v3957
        %v3972 = vpack.c.bf16 %v3960, %v3959
        %v3973 = vpack.c.bf16 %v3962, %v3961
        %v3974 = vpack.c.bf16 %v3964, %v3963
        %v3975 = vpack.c.bf16 %v3966, %v3965
        %v3976 = vpack.c.bf16 %v3968, %v3967
        %v3977 = vld [vmem:[%s690] sm:$0xf]
        %v3978 = vld [vmem:[%s690 + $0x4] sm:$0xf]
        %v3979 = vld [vmem:[%s690 + $0x8] sm:$0xf]
        %v3980 = vld [vmem:[%s690 + $0xc] sm:$0xf]
        %v3981 = vld [vmem:[%s690 + $0x10] sm:$0xf]
        %v3982 = vld [vmem:[%s690 + $0x14] sm:$0xf]
        %v3983 = vld [vmem:[%s690 + $0x18] sm:$0xf]
        %v3984 = vld [vmem:[%s690 + $0x1c] sm:$0xf]
        %v3985 = vld [vmem:[%s693] sm:$0x1]
        %v3987 = vlaneseq
        %v3988 = vshrl.u32 %v3987, 7
        %v3989 = vsub.s32 0, %v3988
        %v3990 = vrot.slane %v3985, %v3989
        %v4000 = vunpack.c.l.b16 %v3977
        %v4001 = vunpack.c.l.b16 %v3978
        %v4002 = vunpack.c.l.b16 %v3979
        %v4003 = vunpack.c.l.b16 %v3980
        %v4004 = vunpack.c.l.b16 %v3981
        %v4005 = vunpack.c.l.b16 %v3982
        %v4006 = vunpack.c.l.b16 %v3983
        %v4007 = vunpack.c.l.b16 %v3984
        %v4008 = vpack.c.b16 %v4001, %v4000
        %v4009 = vpack.c.b16 %v4003, %v4002
        %v4010 = vpack.c.b16 %v4005, %v4004
        %v4011 = vpack.c.b16 %v4007, %v4006
        %v4017 = vsel %vm844, %v3969, 0
        %v4020 = vsel %vm844, %v3970, 0
        %v4023 = vsel %vm844, %v3971, 0
        %v4026 = vsel %vm844, %v3972, 0
        %v4029 = vsel %vm844, %v3973, 0
        %v4032 = vsel %vm844, %v3974, 0
        %v4035 = vsel %vm844, %v3975, 0
        %v4038 = vsel %vm844, %v3976, 0
        %4040 = vmatprep.subr.bf16.mxu0 0
        %4041 = vmatpush1.bf16.msra.mxu0 0
        %4042 = vmatprep.subr.bf16.mxu0 0
        %4043 = vmatpush1.bf16.msra.mxu0 0
        %4044 = vmatprep.subr.bf16.mxu0 0
        %4045 = vmatpush1.bf16.msra.mxu0 0
        %4046 = vmatprep.subr.bf16.mxu0 0
        %4047 = vmatpush1.bf16.msra.mxu0 0
        %4048 = vmatprep.subr.bf16.mxu0 0
        %4049 = vmatpush1.bf16.msra.mxu0 %v4011
        %4050 = vmatprep.subr.bf16.mxu0 0
        %4051 = vmatpush1.bf16.msra.mxu0 %v4010
        %4052 = vmatprep.subr.bf16.mxu0 0
        %4053 = vmatpush1.bf16.msra.mxu0 %v4009
        %4054 = vmatprep.subr.bf16.mxu0 0
        %4055 = vmatpush1.bf16.msra.mxu0 %v4008
        %4056 = vmatprep.subr.bf16.mxu0 0
        %4057 = vmatpush2.bf16.msra.mxu0 0
        %4058 = vmatprep.subr.bf16.mxu0 0
        %4059 = vmatpush2.bf16.msra.mxu0 0
        %4060 = vmatprep.subr.bf16.mxu0 0
        %4061 = vmatpush2.bf16.msra.mxu0 0
        %4062 = vmatprep.subr.bf16.mxu0 0
        %4063 = vmatpush2.bf16.msra.mxu0 0
        %4064 = vmatprep.subr.bf16.mxu0 0
        %4065 = vmatpush2.bf16.msra.mxu0 0
        %4066 = vmatprep.subr.bf16.mxu0 0
        %4067 = vmatpush2.bf16.msra.mxu0 0
        %4068 = vmatprep.subr.bf16.mxu0 0
        %4069 = vmatpush2.bf16.msra.mxu0 0
        %4070 = vmatprep.subr.bf16.mxu0 0
        %4071 = vmatpush2.bf16.msra.mxu0 0
        %4072 = vmatprep.mubr.bf16.mxu0 0
        %4073 = vmatmul.mubr.bf16.gmra.mxu0 %v4017
        %v4074 = vpop.f32.mrf.mxu0
        %v4075 = vadd.f32 %v3990, %v4074
        %v4076 = vpop.f32.mrf.mxu0
        %v4077 = vpop.f32.mrf.mxu0
        %v4078 = vadd.f32 %v3990, %v4077
        %v4079 = vpop.f32.mrf.mxu0
        %4080 = vmatprep.mubr.bf16.mxu0 0
        %4081 = vmatmul.mubr.bf16.gmra.mxu0 %v4020
        %v4082 = vpop.f32.mrf.mxu0
        %v4083 = vadd.f32 %v3990, %v4082
        %v4084 = vpop.f32.mrf.mxu0
        %v4085 = vpop.f32.mrf.mxu0
        %v4086 = vadd.f32 %v3990, %v4085
        %v4087 = vpop.f32.mrf.mxu0
        %4088 = vmatprep.mubr.bf16.mxu0 0
        %4089 = vmatmul.mubr.bf16.gmra.mxu0 %v4023
        %v4090 = vpop.f32.mrf.mxu0
        %v4091 = vadd.f32 %v3990, %v4090
        %v4092 = vpop.f32.mrf.mxu0
        %v4093 = vpop.f32.mrf.mxu0
        %v4094 = vadd.f32 %v3990, %v4093
        %v4095 = vpop.f32.mrf.mxu0
        %4096 = vmatprep.mubr.bf16.mxu0 0
        %4097 = vmatmul.mubr.bf16.gmra.mxu0 %v4026
        %v4098 = vpop.f32.mrf.mxu0
        %v4099 = vadd.f32 %v3990, %v4098
        %v4100 = vpop.f32.mrf.mxu0
        %v4101 = vpop.f32.mrf.mxu0
        %v4102 = vadd.f32 %v3990, %v4101
        %v4103 = vpop.f32.mrf.mxu0
        %4104 = vmatprep.mubr.bf16.mxu0 0
        %4105 = vmatmul.mubr.bf16.gmra.mxu0 %v4029
        %v4106 = vpop.f32.mrf.mxu0
        %v4107 = vadd.f32 %v3990, %v4106
        %v4108 = vpop.f32.mrf.mxu0
        %v4109 = vpop.f32.mrf.mxu0
        %v4110 = vadd.f32 %v3990, %v4109
        %v4111 = vpop.f32.mrf.mxu0
        %4112 = vmatprep.mubr.bf16.mxu0 0
        %4113 = vmatmul.mubr.bf16.gmra.mxu0 %v4032
        %v4114 = vpop.f32.mrf.mxu0
        %v4115 = vadd.f32 %v3990, %v4114
        %v4116 = vpop.f32.mrf.mxu0
        %v4117 = vpop.f32.mrf.mxu0
        %v4118 = vadd.f32 %v3990, %v4117
        %v4119 = vpop.f32.mrf.mxu0
        %4120 = vmatprep.mubr.bf16.mxu0 0
        %4121 = vmatmul.mubr.bf16.gmra.mxu0 %v4035
        %v4122 = vpop.f32.mrf.mxu0
        %v4123 = vadd.f32 %v3990, %v4122
        %v4124 = vpop.f32.mrf.mxu0
        %v4125 = vpop.f32.mrf.mxu0
        %v4126 = vadd.f32 %v3990, %v4125
        %v4127 = vpop.f32.mrf.mxu0
        %4128 = vmatprep.mubr.bf16.mxu0 0
        %4129 = vmatmul.mubr.bf16.gmra.mxu0 %v4038
        %v4130 = vpop.f32.mrf.mxu0
        %v4131 = vadd.f32 %v3990, %v4130
        %v4132 = vpop.f32.mrf.mxu0
        %v4133 = vpop.f32.mrf.mxu0
        %v4134 = vadd.f32 %v3990, %v4133
        %v4135 = vpop.f32.mrf.mxu0
        %4136 = vdwg.mxu0
        %v4137 = vmul.f32 %v4075, 0.5
        %v4138 = vmul.f32 %v4078, 0.5
        %v4139 = vmul.f32 %v4083, 0.5
        %v4140 = vmul.f32 %v4086, 0.5
        %v4141 = vmul.f32 %v4091, 0.5
        %v4142 = vmul.f32 %v4094, 0.5
        %v4143 = vmul.f32 %v4099, 0.5
        %v4144 = vmul.f32 %v4102, 0.5
        %v4145 = vmul.f32 %v4107, 0.5
        %v4146 = vmul.f32 %v4110, 0.5
        %v4147 = vmul.f32 %v4115, 0.5
        %v4148 = vmul.f32 %v4118, 0.5
        %v4149 = vmul.f32 %v4123, 0.5
        %v4150 = vmul.f32 %v4126, 0.5
        %v4151 = vmul.f32 %v4131, 0.5
        %v4152 = vmul.f32 %v4134, 0.5
        %v4153 = vmul.f32 %v4075, 0.044715
        %v4154 = vmul.f32 %v4078, 0.044715
        %v4155 = vmul.f32 %v4083, 0.044715
        %v4156 = vmul.f32 %v4086, 0.044715
        %v4157 = vmul.f32 %v4091, 0.044715
        %v4158 = vmul.f32 %v4094, 0.044715
        %v4159 = vmul.f32 %v4099, 0.044715
        %v4160 = vmul.f32 %v4102, 0.044715
        %v4161 = vmul.f32 %v4107, 0.044715
        %v4162 = vmul.f32 %v4110, 0.044715
        %v4163 = vmul.f32 %v4115, 0.044715
        %v4164 = vmul.f32 %v4118, 0.044715
        %v4165 = vmul.f32 %v4123, 0.044715
        %v4166 = vmul.f32 %v4126, 0.044715
        %v4167 = vmul.f32 %v4131, 0.044715
        %v4168 = vmul.f32 %v4134, 0.044715
        %v4169 = vmul.f32 %v4153, %v4075
        %v4170 = vmul.f32 %v4154, %v4078
        %v4171 = vmul.f32 %v4155, %v4083
        %v4172 = vmul.f32 %v4156, %v4086
        %v4173 = vmul.f32 %v4157, %v4091
        %v4174 = vmul.f32 %v4158, %v4094
        %v4175 = vmul.f32 %v4159, %v4099
        %v4176 = vmul.f32 %v4160, %v4102
        %v4177 = vmul.f32 %v4161, %v4107
        %v4178 = vmul.f32 %v4162, %v4110
        %v4179 = vmul.f32 %v4163, %v4115
        %v4180 = vmul.f32 %v4164, %v4118
        %v4181 = vmul.f32 %v4165, %v4123
        %v4182 = vmul.f32 %v4166, %v4126
        %v4183 = vmul.f32 %v4167, %v4131
        %v4184 = vmul.f32 %v4168, %v4134
        %v4185 = vmul.f32 %v4169, %v4075
        %v4186 = vmul.f32 %v4170, %v4078
        %v4187 = vmul.f32 %v4171, %v4083
        %v4188 = vmul.f32 %v4172, %v4086
        %v4189 = vmul.f32 %v4173, %v4091
        %v4190 = vmul.f32 %v4174, %v4094
        %v4191 = vmul.f32 %v4175, %v4099
        %v4192 = vmul.f32 %v4176, %v4102
        %v4193 = vmul.f32 %v4177, %v4107
        %v4194 = vmul.f32 %v4178, %v4110
        %v4195 = vmul.f32 %v4179, %v4115
        %v4196 = vmul.f32 %v4180, %v4118
        %v4197 = vmul.f32 %v4181, %v4123
        %v4198 = vmul.f32 %v4182, %v4126
        %v4199 = vmul.f32 %v4183, %v4131
        %v4200 = vmul.f32 %v4184, %v4134
        %v4201 = vadd.f32 %v4075, %v4185
        %v4202 = vadd.f32 %v4078, %v4186
        %v4203 = vadd.f32 %v4083, %v4187
        %v4204 = vadd.f32 %v4086, %v4188
        %v4205 = vadd.f32 %v4091, %v4189
        %v4206 = vadd.f32 %v4094, %v4190
        %v4207 = vadd.f32 %v4099, %v4191
        %v4208 = vadd.f32 %v4102, %v4192
        %v4209 = vadd.f32 %v4107, %v4193
        %v4210 = vadd.f32 %v4110, %v4194
        %v4211 = vadd.f32 %v4115, %v4195
        %v4212 = vadd.f32 %v4118, %v4196
        %v4213 = vadd.f32 %v4123, %v4197
        %v4214 = vadd.f32 %v4126, %v4198
        %v4215 = vadd.f32 %v4131, %v4199
        %v4216 = vadd.f32 %v4134, %v4200
        %v4217 = vmul.f32 %v4201, 0.7978846
        %v4218 = vmul.f32 %v4202, 0.7978846
        %v4219 = vmul.f32 %v4203, 0.7978846
        %v4220 = vmul.f32 %v4204, 0.7978846
        %v4221 = vmul.f32 %v4205, 0.7978846
        %v4222 = vmul.f32 %v4206, 0.7978846
        %v4223 = vmul.f32 %v4207, 0.7978846
        %v4224 = vmul.f32 %v4208, 0.7978846
        %v4225 = vmul.f32 %v4209, 0.7978846
        %v4226 = vmul.f32 %v4210, 0.7978846
        %v4227 = vmul.f32 %v4211, 0.7978846
        %v4228 = vmul.f32 %v4212, 0.7978846
        %v4229 = vmul.f32 %v4213, 0.7978846
        %v4230 = vmul.f32 %v4214, 0.7978846
        %v4231 = vmul.f32 %v4215, 0.7978846
        %v4232 = vmul.f32 %v4216, 0.7978846
        %v4233 = vtanh.pop %v4217
        %v4234 = vtanh.pop %v4218
        %v4235 = vtanh.pop %v4219
        %v4236 = vtanh.pop %v4220
        %v4237 = vtanh.pop %v4221
        %v4238 = vtanh.pop %v4222
        %v4239 = vtanh.pop %v4223
        %v4240 = vtanh.pop %v4224
        %v4241 = vtanh.pop %v4225
        %v4242 = vtanh.pop %v4226
        %v4243 = vtanh.pop %v4227
        %v4244 = vtanh.pop %v4228
        %v4245 = vtanh.pop %v4229
        %v4246 = vtanh.pop %v4230
        %v4247 = vtanh.pop %v4231
        %v4248 = vtanh.pop %v4232
        %v4249 = vadd.f32 %v4233, 1.0
        %v4250 = vadd.f32 %v4234, 1.0
        %v4251 = vadd.f32 %v4235, 1.0
        %v4252 = vadd.f32 %v4236, 1.0
        %v4253 = vadd.f32 %v4237, 1.0
        %v4254 = vadd.f32 %v4238, 1.0
        %v4255 = vadd.f32 %v4239, 1.0
        %v4256 = vadd.f32 %v4240, 1.0
        %v4257 = vadd.f32 %v4241, 1.0
        %v4258 = vadd.f32 %v4242, 1.0
        %v4259 = vadd.f32 %v4243, 1.0
        %v4260 = vadd.f32 %v4244, 1.0
        %v4261 = vadd.f32 %v4245, 1.0
        %v4262 = vadd.f32 %v4246, 1.0
        %v4263 = vadd.f32 %v4247, 1.0
        %v4264 = vadd.f32 %v4248, 1.0
        %v4265 = vmul.f32 %v4137, %v4249
        %v4266 = vmul.f32 %v4138, %v4250
        %v4267 = vmul.f32 %v4139, %v4251
        %v4268 = vmul.f32 %v4140, %v4252
        %v4269 = vmul.f32 %v4141, %v4253
        %v4270 = vmul.f32 %v4142, %v4254
        %v4271 = vmul.f32 %v4143, %v4255
        %v4272 = vmul.f32 %v4144, %v4256
        %v4273 = vmul.f32 %v4145, %v4257
        %v4274 = vmul.f32 %v4146, %v4258
        %v4275 = vmul.f32 %v4147, %v4259
        %v4276 = vmul.f32 %v4148, %v4260
        %v4277 = vmul.f32 %v4149, %v4261
        %v4278 = vmul.f32 %v4150, %v4262
        %v4279 = vmul.f32 %v4151, %v4263
        %v4280 = vmul.f32 %v4152, %v4264
        %v4281 = vpack.c.bf16 %v4266, %v4265
        %v4282 = vpack.c.bf16 %v4268, %v4267
        %v4283 = vpack.c.bf16 %v4270, %v4269
        %v4284 = vpack.c.bf16 %v4272, %v4271
        %v4285 = vpack.c.bf16 %v4274, %v4273
        %v4286 = vpack.c.bf16 %v4276, %v4275
        %v4287 = vpack.c.bf16 %v4278, %v4277
        %v4288 = vpack.c.bf16 %v4280, %v4279
        %v4289 = vld [vmem:[%s698] sm:$0xf]
        %v4290 = vld [vmem:[%s698 + $0x4] sm:$0xf]
        %v4291 = vld [vmem:[%s698 + $0x8] sm:$0xf]
        %v4292 = vld [vmem:[%s698 + $0xc] sm:$0xf]
        %v4293 = vld [vmem:[%s698 + $0x10] sm:$0xf]
        %v4294 = vld [vmem:[%s698 + $0x14] sm:$0xf]
        %v4295 = vld [vmem:[%s698 + $0x18] sm:$0xf]
        %v4296 = vld [vmem:[%s698 + $0x1c] sm:$0xf]
        %v4297 = vld [vmem:[%s698 + $0x20] sm:$0xf]
        %v4298 = vld [vmem:[%s698 + $0x24] sm:$0xf]
        %v4299 = vld [vmem:[%s698 + $0x28] sm:$0xf]
        %v4300 = vld [vmem:[%s698 + $0x2c] sm:$0xf]
        %v4301 = vld [vmem:[%s698 + $0x30] sm:$0xf]
        %v4302 = vld [vmem:[%s698 + $0x34] sm:$0xf]
        %v4303 = vld [vmem:[%s698 + $0x38] sm:$0xf]
        %v4304 = vld [vmem:[%s698 + $0x3c] sm:$0xf]
        %v4305 = vld [vmem:[%s701] sm:$0x1]
        %v4307 = vlaneseq
        %v4308 = vshrl.u32 %v4307, 7
        %v4309 = vsub.s32 0, %v4308
        %v4310 = vrot.slane %v4305, %v4309
        %v4328 = vunpack.c.l.b16 %v4289
        %v4329 = vunpack.c.l.b16 %v4290
        %v4330 = vunpack.c.l.b16 %v4291
        %v4331 = vunpack.c.l.b16 %v4292
        %v4332 = vunpack.c.l.b16 %v4293
        %v4333 = vunpack.c.l.b16 %v4294
        %v4334 = vunpack.c.l.b16 %v4295
        %v4335 = vunpack.c.l.b16 %v4296
        %v4336 = vunpack.c.l.b16 %v4297
        %v4337 = vunpack.c.l.b16 %v4298
        %v4338 = vunpack.c.l.b16 %v4299
        %v4339 = vunpack.c.l.b16 %v4300
        %v4340 = vunpack.c.l.b16 %v4301
        %v4341 = vunpack.c.l.b16 %v4302
        %v4342 = vunpack.c.l.b16 %v4303
        %v4343 = vunpack.c.l.b16 %v4304
        %v4344 = vpack.c.b16 %v4329, %v4328
        %v4345 = vpack.c.b16 %v4331, %v4330
        %v4346 = vpack.c.b16 %v4333, %v4332
        %v4347 = vpack.c.b16 %v4335, %v4334
        %v4348 = vpack.c.b16 %v4337, %v4336
        %v4349 = vpack.c.b16 %v4339, %v4338
        %v4350 = vpack.c.b16 %v4341, %v4340
        %v4351 = vpack.c.b16 %v4343, %v4342
        %4360 = vmatprep.subr.bf16.mxu0 0
        %4361 = vmatpush1.bf16.msra.mxu0 %v4351
        %4362 = vmatprep.subr.bf16.mxu0 0
        %4363 = vmatpush1.bf16.msra.mxu0 %v4350
        %4364 = vmatprep.subr.bf16.mxu0 0
        %4365 = vmatpush1.bf16.msra.mxu0 %v4349
        %4366 = vmatprep.subr.bf16.mxu0 0
        %4367 = vmatpush1.bf16.msra.mxu0 %v4348
        %4368 = vmatprep.subr.bf16.mxu0 0
        %4369 = vmatpush1.bf16.msra.mxu0 %v4347
        %4370 = vmatprep.subr.bf16.mxu0 0
        %4371 = vmatpush1.bf16.msra.mxu0 %v4346
        %4372 = vmatprep.subr.bf16.mxu0 0
        %4373 = vmatpush1.bf16.msra.mxu0 %v4345
        %4374 = vmatprep.subr.bf16.mxu0 0
        %4375 = vmatpush1.bf16.msra.mxu0 %v4344
        %4376 = vmatprep.subr.bf16.mxu0 0
        %4377 = vmatpush2.bf16.msra.mxu0 0
        %4378 = vmatprep.subr.bf16.mxu0 0
        %4379 = vmatpush2.bf16.msra.mxu0 0
        %4380 = vmatprep.subr.bf16.mxu0 0
        %4381 = vmatpush2.bf16.msra.mxu0 0
        %4382 = vmatprep.subr.bf16.mxu0 0
        %4383 = vmatpush2.bf16.msra.mxu0 0
        %4384 = vmatprep.subr.bf16.mxu0 0
        %4385 = vmatpush2.bf16.msra.mxu0 0
        %4386 = vmatprep.subr.bf16.mxu0 0
        %4387 = vmatpush2.bf16.msra.mxu0 0
        %4388 = vmatprep.subr.bf16.mxu0 0
        %4389 = vmatpush2.bf16.msra.mxu0 0
        %4390 = vmatprep.subr.bf16.mxu0 0
        %4391 = vmatpush2.bf16.msra.mxu0 0
        %4392 = vmatprep.mubr.bf16.mxu0 0
        %4393 = vmatmul.mubr.bf16.gmra.mxu0 %v4281
        %v4394 = vpop.f32.mrf.mxu0
        %v4395 = vadd.f32 %v4310, %v4394
        %v4396 = vpop.f32.mrf.mxu0
        %v4397 = vpop.f32.mrf.mxu0
        %v4398 = vadd.f32 %v4310, %v4397
        %v4399 = vpop.f32.mrf.mxu0
        %4400 = vmatprep.mubr.bf16.mxu0 0
        %4401 = vmatmul.mubr.bf16.gmra.mxu0 %v4282
        %v4402 = vpop.f32.mrf.mxu0
        %v4403 = vadd.f32 %v4310, %v4402
        %v4404 = vpop.f32.mrf.mxu0
        %v4405 = vpop.f32.mrf.mxu0
        %v4406 = vadd.f32 %v4310, %v4405
        %v4407 = vpop.f32.mrf.mxu0
        %4408 = vmatprep.mubr.bf16.mxu0 0
        %4409 = vmatmul.mubr.bf16.gmra.mxu0 %v4283
        %v4410 = vpop.f32.mrf.mxu0
        %v4411 = vadd.f32 %v4310, %v4410
        %v4412 = vpop.f32.mrf.mxu0
        %v4413 = vpop.f32.mrf.mxu0
        %v4414 = vadd.f32 %v4310, %v4413
        %v4415 = vpop.f32.mrf.mxu0
        %4416 = vmatprep.mubr.bf16.mxu0 0
        %4417 = vmatmul.mubr.bf16.gmra.mxu0 %v4284
        %v4418 = vpop.f32.mrf.mxu0
        %v4419 = vadd.f32 %v4310, %v4418
        %v4420 = vpop.f32.mrf.mxu0
        %v4421 = vpop.f32.mrf.mxu0
        %v4422 = vadd.f32 %v4310, %v4421
        %v4423 = vpop.f32.mrf.mxu0
        %4424 = vmatprep.mubr.bf16.mxu0 0
        %4425 = vmatmul.mubr.bf16.gmra.mxu0 %v4285
        %v4426 = vpop.f32.mrf.mxu0
        %v4427 = vadd.f32 %v4310, %v4426
        %v4428 = vpop.f32.mrf.mxu0
        %v4429 = vpop.f32.mrf.mxu0
        %v4430 = vadd.f32 %v4310, %v4429
        %v4431 = vpop.f32.mrf.mxu0
        %4432 = vmatprep.mubr.bf16.mxu0 0
        %4433 = vmatmul.mubr.bf16.gmra.mxu0 %v4286
        %v4434 = vpop.f32.mrf.mxu0
        %v4435 = vadd.f32 %v4310, %v4434
        %v4436 = vpop.f32.mrf.mxu0
        %v4437 = vpop.f32.mrf.mxu0
        %v4438 = vadd.f32 %v4310, %v4437
        %v4439 = vpop.f32.mrf.mxu0
        %4440 = vmatprep.mubr.bf16.mxu0 0
        %4441 = vmatmul.mubr.bf16.gmra.mxu0 %v4287
        %v4442 = vpop.f32.mrf.mxu0
        %v4443 = vadd.f32 %v4310, %v4442
        %v4444 = vpop.f32.mrf.mxu0
        %v4445 = vpop.f32.mrf.mxu0
        %v4446 = vadd.f32 %v4310, %v4445
        %v4447 = vpop.f32.mrf.mxu0
        %4448 = vmatprep.mubr.bf16.mxu0 0
        %4449 = vmatmul.mubr.bf16.gmra.mxu0 %v4288
        %v4450 = vpop.f32.mrf.mxu0
        %v4451 = vadd.f32 %v4310, %v4450
        %v4452 = vpop.f32.mrf.mxu0
        %v4453 = vpop.f32.mrf.mxu0
        %v4454 = vadd.f32 %v4310, %v4453
        %v4455 = vpop.f32.mrf.mxu0
        %4456 = vdwg.mxu0
        %v4457 = vadd.f32 %v3699, %v4395
        %v4458 = vadd.f32 %v3700, %v4398
        %v4459 = vadd.f32 %v3701, %v4403
        %v4460 = vadd.f32 %v3702, %v4406
        %v4461 = vadd.f32 %v3703, %v4411
        %v4462 = vadd.f32 %v3704, %v4414
        %v4463 = vadd.f32 %v3705, %v4419
        %v4464 = vadd.f32 %v3706, %v4422
        %v4465 = vadd.f32 %v3707, %v4427
        %v4466 = vadd.f32 %v3708, %v4430
        %v4467 = vadd.f32 %v3709, %v4435
        %v4468 = vadd.f32 %v3710, %v4438
        %v4469 = vadd.f32 %v3711, %v4443
        %v4470 = vadd.f32 %v3712, %v4446
        %v4471 = vadd.f32 %v3713, %v4451
        %v4472 = vadd.f32 %v3714, %v4454
        %4473 = vst.msk [vmem:[#allocation2] sm:$0xff] %vm844, %v4457
        %4474 = vst.msk [vmem:[#allocation2 + $0x8] sm:$0xff] %vm844, %v4458
        %4475 = vst.msk [vmem:[#allocation2 + $0x10] sm:$0xff] %vm844, %v4459
        %4476 = vst.msk [vmem:[#allocation2 + $0x18] sm:$0xff] %vm844, %v4460
        %4477 = vst.msk [vmem:[#allocation2 + $0x20] sm:$0xff] %vm844, %v4461
        %4478 = vst.msk [vmem:[#allocation2 + $0x28] sm:$0xff] %vm844, %v4462
        %4479 = vst.msk [vmem:[#allocation2 + $0x30] sm:$0xff] %vm844, %v4463
        %4480 = vst.msk [vmem:[#allocation2 + $0x38] sm:$0xff] %vm844, %v4464
        %4481 = vst.msk [vmem:[#allocation2 + $0x40] sm:$0xff] %vm844, %v4465
        %4482 = vst.msk [vmem:[#allocation2 + $0x48] sm:$0xff] %vm844, %v4466
        %4483 = vst.msk [vmem:[#allocation2 + $0x50] sm:$0xff] %vm844, %v4467
        %4484 = vst.msk [vmem:[#allocation2 + $0x58] sm:$0xff] %vm844, %v4468
        %4485 = vst.msk [vmem:[#allocation2 + $0x60] sm:$0xff] %vm844, %v4469
        %4486 = vst.msk [vmem:[#allocation2 + $0x68] sm:$0xff] %vm844, %v4470
        %4487 = vst.msk [vmem:[#allocation2 + $0x70] sm:$0xff] %vm844, %v4471
        %4488 = vst.msk [vmem:[#allocation2 + $0x78] sm:$0xff] %vm844, %v4472
        %p4489 = scmp.eq.s32.totalorder %s34, 1
        // Predicated region
        $region85: #{vit_encoder_forward.3} parent=79 // pred_check
          %p4490 = pneg %p4489
        $region86: #{vit_encoder_forward.3} parent=79 // pred_check_branch
          %4492 = sbr.rel (%p4490) target = $region88
        $region87: #{vit_encoder_forward.3} parent=79 // pred_region
          %v4493 = vld [vmem:[%s13] sm:$0x1]
          %v4494 = vld [vmem:[%s14] sm:$0x1]
          %v4495 = vsel %vm844, %v4457, 0.0
          %4496 = vadd.xlane.f32.xlu0 %v4495
          %v4497 = vpop.xlane.xlu0 %4496
          %v4498 = vsel %vm844, %v4458, 0.0
          %4499 = vadd.xlane.f32.xlu0 %v4498
          %v4500 = vpop.xlane.xlu0 %4499
          %v4501 = vmul.f32 %v4497, %v893
          %v4502 = vmul.f32 %v4500, %v893
          %v4503 = vsub.f32 %v4457, %v4501
          %v4504 = vsub.f32 %v4458, %v4502
          %v4505 = vmul.f32 %v4503, %v4503
          %v4506 = vmul.f32 %v4504, %v4504
          %v4507 = vsel %vm844, %v4505, 0.0
          %4508 = vadd.xlane.f32.xlu0 %v4507
          %v4509 = vpop.xlane.xlu0 %4508
          %v4510 = vsel %vm844, %v4506, 0.0
          %4511 = vadd.xlane.f32.xlu0 %v4510
          %v4512 = vpop.xlane.xlu0 %4511
          %v4513 = vmul.f32 %v4509, %v893
          %v4514 = vmul.f32 %v4512, %v893
          %v4515 = vadd.f32 %v4513, 1e-12
          %v4516 = vadd.f32 %v4514, 1e-12
          %v4517 = vrsqrt.pop %v4515
          %v4518 = vrsqrt.pop %v4516
          %v4519 = vmul.f32 %v4503, %v4517
          %v4520 = vmul.f32 %v4504, %v4518
          %v4522 = vlaneseq
          %v4523 = vshrl.u32 %v4522, 7
          %v4524 = vsub.s32 0, %v4523
          %v4525 = vrot.slane %v4493, %v4524
          %v4527 = vmul.f32 %v4519, %v4525
          %v4528 = vmul.f32 %v4520, %v4525
          %v4530 = vlaneseq
          %v4531 = vshrl.u32 %v4530, 7
          %v4532 = vsub.s32 0, %v4531
          %v4533 = vrot.slane %v4494, %v4532
          %v4535 = vadd.f32 %v4527, %v4533
          %v4536 = vadd.f32 %v4528, %v4533
          %4537 = vst.msk [vmem:[%s650] sm:$0xff] %vm844, %v4535
          %4538 = vst.msk [vmem:[%s650 + $0x8] sm:$0xff] %vm844, %v4536
        $region88: #{vit_encoder_forward.3} parent=79 // pred_fallthru
          _
        %s4539 = sand.u32 %s429, 1
        %s4540 = scalar_lea.sflag [#allocation4], %s4539
        %s4541 = sand.u32 %s429, 1
        %s4542 = smul.addr %s4541, 16
        %s4543 = scalar_lea.vmem [#allocation3], %s4542
        // Predicated region
        $region89: #{vit_encoder_forward.3} parent=79 // pred_check
          %p4544 = pneg %p439
        $region90: #{vit_encoder_forward.3} parent=79 // pred_check_branch
          %4546 = sbr.rel (%p4544) target = $region92
        $region91: #{vit_encoder_forward.3} parent=79 // pred_region
          %s4547 = smul.u32 2, %s33
          %s4549 = ssub.s32 256, 256
          %4550 = vsyncadd %s4540, %s4549
          %s4551 = smul.addr %s4547, 128
          %s4552 = scalar_lea.hbm %s15, %s4551
          %s4553 = sshll.u32 %s4543, 4
          %s4554 = int_to_ptr.vmem [resolvable:$true] %s4553
          %4559 = dma.vmem_to_hbm [thread:$0]  %s4554, 256, %s4552, %s4540, 128, 128, 8
        $region92: #{vit_encoder_forward.3} parent=79 // pred_fallthru
          _
      $region80: #{vit_encoder_forward.3} parent=5 // pred_fallthru
        _
      %p4560 = scmp.le.s32.totalorder 2, %s24
      // Predicated region
      $region93: #{vit_encoder_forward.3} parent=5 // pred_check
        %p4561 = pneg %p4560
      $region94: #{vit_encoder_forward.3} parent=5 // pred_check_branch
        %4563 = sbr.rel (%p4561) target = $region96
      $region95: #{vit_encoder_forward.3} parent=5 // pred_region
        %s4564 = ssub.s32 %s24, 2
        // Predicated region
        $region97: #{vit_encoder_forward.3} parent=95 // pred_check
          %p4565 = pneg %p445
        $region98: #{vit_encoder_forward.3} parent=95 // pred_check_branch
          %4567 = sbr.rel (%p4565) target = $region100
        $region99: #{vit_encoder_forward.3} parent=95 // pred_region
          %s4568 = sand.u32 %s430, 1
          %s4569 = scalar_lea.sflag [#allocation4], %s4568
          %s4570 = sand.u32 %s430, 1
          %s4571 = smul.addr %s4570, 16
          %s4572 = scalar_lea.vmem [#allocation3], %s4571
          %4573 = dma.done %s4569, 256
        $region100: #{vit_encoder_forward.3} parent=95 // pred_fallthru
          _
      $region96: #{vit_encoder_forward.3} parent=5 // pred_fallthru
        _
    $region6: #{vit_encoder_forward.3} parent=1 // loop_footer
      %s28 = sadd.s32 1, %s24
    $region7: #{vit_encoder_forward.3} parent=1 // loop_footer_branch
      %23 = sbr.rel target = $region3
    $region8: #{vit_encoder_forward.3} parent=1 // loop_exit
      _
    %4574 = vsyncpa [#allocation4], 1
    %s4575 = scalar_lea.sflag [#allocation4], 1
    %4576 = vsyncpa %s4575, 1

</llo_original>
